<compile_context>
chip_gen: v7x
topology: tpu7x:2x2x1
jax: 0.10.0
libtpu: 0.0.40
codegen_flags: <defaults>
</compile_context>

<pallas_src>
import functools

import jax
import jax.numpy as jnp
from jax import lax
from jax.experimental import pallas as pl
from jax.experimental.pallas import tpu as pltpu

BN_EPS = 1e-5

# Conv-form of every stage: (Cin, Cout, K, stride, pad).
# Stage 0 is ConvTranspose1d(1, 64, 5) rewritten as a Conv1d (flipped taps, pad=K-1).
_LAYER_CFG = (
    (1, 64, 5, 1, 4),
    (64, 64, 7, 2, 3),
    (64, 32, 5, 2, 2),
    (32, 32, 3, 1, 1),
    (32, 16, 3, 2, 1),
    (16, 8, 3, 1, 1),
)


def _out_len(lin, k, stride, pad):
    return (lin + 2 * pad - k) // stride + 1


def _round_up(v, m):
    return (v + m - 1) // m * m


def _stage_meta(lin0):
    """Static per-stage geometry + lane-aligned weight offsets."""
    metas = []
    lin = lin0
    w_off = 0
    for (cin, cout, k, stride, pad) in _LAYER_CFG:
        lpad = lin + 2 * pad            # zero-padded input length (per batch elem)
        lfull = lpad - k + 1            # stride-1 output length
        lout = _out_len(lin, k, stride, pad)
        metas.append(dict(cin=cin, cout=cout, k=k, stride=stride, pad=pad,
                          lin=lin, lpad=lpad, lfull=lfull, lout=lout, w_off=w_off))
        w_off += _round_up(k * cin, 128)   # 128-aligned column block per stage
        lin = lout
    return metas, w_off


def _pool_matrix(in_size, out_size):
    """PyTorch adaptive-average-pool weights: (out_size, in_size)."""
    i = jnp.arange(out_size)
    starts = (i * in_size) // out_size
    ends = ((i + 1) * in_size + out_size - 1) // out_size  # ceil
    j = jnp.arange(in_size)
    mask = (j[None, :] >= starts[:, None]) & (j[None, :] < ends[:, None])
    return mask.astype(jnp.float32) / (ends - starts)[:, None].astype(jnp.float32)


# ----------------------------- the fused kernel -----------------------------

def _make_kernel(metas, nb, latent):
    n_stage = len(metas)

    def _decim(lfull, lout):
        """Block-diagonal 0/1 matrix (nb*lfull, nb*lout) selecting every 2nd column
        per batch block — built from 2-D iota, nothing DMA'd."""
        rows, cols = nb * lfull, nb * lout
        ii = lax.broadcasted_iota(jnp.int32, (rows, cols), 0)
        jj = lax.broadcasted_iota(jnp.int32, (rows, cols), 1)
        cond = None
        for n in range(nb):
            jloc = jj - n * lout
            c = (jloc >= 0) & (jloc < lout) & (ii == n * lfull + 2 * jloc)
            cond = c if cond is None else jnp.logical_or(cond, c)
        return cond.astype(jnp.float32)

    def kernel(x_ref, w_ref, p_ref, pool_ref, o_ref, pat_ref, *xp_refs):
        # Zero every padded activation slab once; pad columns stay zero afterwards.
        for xp in xp_refs:
            xp[...] = jnp.zeros(xp.shape, jnp.float32)

        # Scatter raw input into stage-0's zero-padded slab (Cin=1, nb*Lpad).
        m0 = metas[0]
        for n in range(nb):
            off = n * m0["lpad"] + m0["pad"]
            xp_refs[0][:, off:off + m0["lin"]] = x_ref[n]

        y = None
        for si, m in enumerate(metas):
            cin, cout, k = m["cin"], m["cout"], m["k"]
            lpad, lfull, lout = m["lpad"], m["lfull"], m["lout"]
            src = xp_refs[si]

            # im2col: patches[t*Cin + c, n*Lfull + j] = xpad[c, n*Lpad + j + t]
            # (contiguous lane slices of the padded slab; no strided access).
            for t in range(k):
                for n in range(nb):
                    pat_ref[t * cin:(t + 1) * cin, n * lfull:(n + 1) * lfull] = (
                        src[:, n * lpad + t:n * lpad + t + lfull])

            # One MXU dot per stage, bf16 operands, f32 accumulation.
            w2d = w_ref[:cout, m["w_off"]:m["w_off"] + k * cin]            # bf16
            patches = pat_ref[:k * cin, :nb * lfull].astype(jnp.bfloat16)
            y = jnp.dot(w2d, patches,
                        preferred_element_type=jnp.float32)               # (Cout, nb*Lfull)

            # Fold stride-2 as one exact f32 column-select dot.
            if m["stride"] == 2:
                y = jnp.dot(y, _decim(lfull, lout),
                            preferred_element_type=jnp.float32)           # (Cout, nb*Lout)

            # Epilogue (f32): bias + training-mode BatchNorm1d (stats over N*L) + ReLU.
            y = y + p_ref[:cout, 3 * si:3 * si + 1]
            if si > 0:
                cnt = float(nb * lout)
                mean = jnp.sum(y, axis=1, keepdims=True) / cnt
                cen = y - mean
                var = jnp.sum(cen * cen, axis=1, keepdims=True) / cnt
                gamma = p_ref[:cout, 3 * si + 1:3 * si + 2]
                beta = p_ref[:cout, 3 * si + 2:3 * si + 3]
                y = cen * (gamma * lax.rsqrt(var + BN_EPS)) + beta
            y = jnp.maximum(y, 0.0)

            # Scatter into the next stage's zero-padded slab (one slab store per batch).
            if si + 1 < n_stage:
                mn = metas[si + 1]
                dst = xp_refs[si + 1]
                for n in range(nb):
                    off = n * mn["lpad"] + mn["pad"]
                    dst[:, off:off + lout] = y[:, n * lout:(n + 1) * lout]

        # AdaptiveAvgPool2d((latent, latent)) over (C_last, L_last) as two small dots:
        # Ph @ Y_slab @ blockdiag(Pw^T)  ->  (latent, nb*latent)
        c_last = metas[-1]["cout"]
        l_last = metas[-1]["lout"]
        ph = pool_ref[:latent, :c_last]
        pwt = pool_ref[:nb * l_last, c_last:c_last + nb * latent]
        t1 = jnp.dot(y, pwt, preferred_element_type=jnp.float32)          # (C_last, nb*latent)
        o_ref[...] = jnp.dot(ph, t1, preferred_element_type=jnp.float32)  # (latent, nb*latent)

    return kernel


# ----------------------------- host-side glue -------------------------------

@functools.partial(jax.jit, static_argnames=("latent_dim",))
def encoder_forward(params, x, *, latent_dim):
    nb, _, lin0 = x.shape
    metas, w_total = _stage_meta(lin0)
    max_cout = max(m["cout"] for m in metas)

    # ---- pack ALL conv weights into one lane-aligned bf16 buffer (1 DMA) ----
    # Stage 0: ConvTranspose1d(Cin,Cout,K) -> equivalent Conv1d (Cout,Cin,K), flipped taps.
    w_convs = [jnp.flip(jnp.transpose(params["w1"], (1, 0, 2)), axis=-1)]
    w_convs += [params[f"w{i}"] for i in range(2, 7)]
    w_all = jnp.zeros((max_cout, w_total), jnp.float32)
    for m, w in zip(metas, w_convs):
        w2d = jnp.transpose(w, (0, 2, 1)).reshape(m["cout"], m["k"] * m["cin"])
        w_all = w_all.at[:m["cout"], m["w_off"]:m["w_off"] + m["k"] * m["cin"]].set(w2d)
    w_all = w_all.astype(jnp.bfloat16)

    # ---- pack per-channel params (bias / gamma / beta) into one buffer (1 DMA) ----
    p_all = jnp.zeros((max_cout, 3 * len(metas)), jnp.float32)
    biases = [params["b1"]] + [params[f"b{i}"] for i in range(2, 7)]
    for si, (m, b) in enumerate(zip(metas, biases)):
        p_all = p_all.at[:m["cout"], 3 * si].set(b)
        if si > 0:
            p_all = p_all.at[:m["cout"], 3 * si + 1].set(params[f"g{si + 1}"])
            p_all = p_all.at[:m["cout"], 3 * si + 2].set(params[f"be{si + 1}"])

    # ---- pack pooling matrices (Ph and block-diagonal Pw^T) into one buffer (1 DMA) ----
    c_last, l_last = metas[-1]["cout"], metas[-1]["lout"]
    ph = _pool_matrix(c_last, latent_dim)          # (latent, C_last)
    pwt = _pool_matrix(l_last, latent_dim).T       # (L_last, latent)
    pool_rows = max(latent_dim, nb * l_last)
    pool_pack = jnp.zeros((pool_rows, c_last + nb * latent_dim), jnp.float32)
    pool_pack = pool_pack.at[:latent_dim, :c_last].set(ph)
    for n in range(nb):
        pool_pack = pool_pack.at[
            n * l_last:(n + 1) * l_last,
            c_last + n * latent_dim:c_last + (n + 1) * latent_dim].set(pwt)

    # ---- VMEM scratch: shared im2col buffer + per-stage zero-padded slabs ----
    max_kcin = max(m["k"] * m["cin"] for m in metas)
    max_nlf = max(nb * m["lfull"] for m in metas)
    scratch = [pltpu.VMEM((max_kcin, max_nlf), jnp.float32)]
    scratch += [pltpu.VMEM((m["cin"], nb * m["lpad"]), jnp.float32) for m in metas]

    kernel = _make_kernel(metas, nb, latent_dim)

    out = pl.pallas_call(
        kernel,
        out_shape=jax.ShapeDtypeStruct((latent_dim, nb * latent_dim), jnp.float32),
        in_specs=[pl.BlockSpec(memory_space=pltpu.MemorySpace.VMEM)] * 4,
        out_specs=pl.BlockSpec(memory_space=pltpu.MemorySpace.VMEM),
        scratch_shapes=scratch,
    )(x.astype(jnp.float32), w_all, p_all, pool_pack)

    # (latent, nb*latent) lane-dense kernel output -> (nb, latent, latent)
    return out.reshape(latent_dim, nb, latent_dim).transpose(1, 0, 2)


def init_params(key, latent_dim):
    """Random parameters in the PyTorch module's native layouts."""
    del latent_dim  # pooling has no parameters
    p = {}
    keys = jax.random.split(key, 2 * len(_LAYER_CFG))

    # Stage 1: ConvTranspose1d weight layout (Cin, Cout, K).
    cin, cout, k, _, _ = _LAYER_CFG[0]
    p["w1"] = 0.1 * jax.random.normal(keys[0], (cin, cout, k), jnp.float32)
    p["b1"] = 0.01 * jax.random.normal(keys[1], (cout,), jnp.float32)

    # Stages 2..6: Conv1d weight layout (Cout, Cin, K) + BN affine params.
    for i, (cin, cout, k, _, _) in enumerate(_LAYER_CFG[1:], start=2):
        kw, kb = keys[2 * (i - 1)], keys[2 * (i - 1) + 1]
        p[f"w{i}"] = 0.1 * jax.random.normal(kw, (cout, cin, k), jnp.float32)
        p[f"b{i}"] = 0.01 * jax.random.normal(kb, (cout,), jnp.float32)
        p[f"g{i}"] = jnp.ones((cout,), jnp.float32)
        p[f"be{i}"] = jnp.zeros((cout,), jnp.float32)
    return p


# ----------------------------- main ------------------------------------------

if __name__ == "__main__":
    batch, signal_len, latent_dim = 2, 64, 8
    key = jax.random.PRNGKey(0)
    kx, kp = jax.random.split(key)
    x = jax.random.normal(kx, (batch, 1, signal_len), jnp.float32)  # NCL
    params = init_params(kp, latent_dim)

    encoded = encoder_forward(params, x, latent_dim=latent_dim)
    jax.block_until_ready(encoded)

    assert encoded.shape == (batch, latent_dim, latent_dim)
    assert bool(jnp.all(jnp.isfinite(encoded)))
    print("KERNEL_OK")
</pallas_src>

<mosaic_0001>
module attributes {stable_mosaic.version = 11 : i64} {
  func.func @kernel(%arg0: memref<2x1x64xf32, #tpu.memory_space<vmem>>, %arg1: memref<64x1408xbf16, #tpu.memory_space<vmem>>, %arg2: memref<64x18xf32, #tpu.memory_space<vmem>>, %arg3: memref<18x24xf32, #tpu.memory_space<vmem>>, %arg4: memref<8x16xf32, #tpu.memory_space<vmem>>, %arg5: memref<448x136xf32, #tpu.memory_space<vmem>>, %arg6: memref<1x144xf32, #tpu.memory_space<vmem>>, %arg7: memref<64x148xf32, #tpu.memory_space<vmem>>, %arg8: memref<64x76xf32, #tpu.memory_space<vmem>>, %arg9: memref<32x38xf32, #tpu.memory_space<vmem>>, %arg10: memref<32x38xf32, #tpu.memory_space<vmem>>, %arg11: memref<16x22xf32, #tpu.memory_space<vmem>>) attributes {dimension_semantics = [], scalar_prefetch = 0 : i64, scratch_operands = 7 : i64, tpu.core_type = #tpu.core_type<tc>} {
    %cst = arith.constant 0.000000e+00 : f32
    %0 = vector.broadcast %cst : f32 to vector<1x144xf32>
    %c0 = arith.constant 0 : index
    %c0_0 = arith.constant 0 : index
    %1 = vector.load %arg6[%c0, %c0_0] : memref<1x144xf32, #tpu.memory_space<vmem>>, vector<1x144xf32>
    tpu.vector_store %arg6[%c0, %c0_0], %0 {strides = array<i32>} : memref<1x144xf32, #tpu.memory_space<vmem>>, vector<1x144xf32>,
    %cst_1 = arith.constant 0.000000e+00 : f32
    %2 = vector.broadcast %cst_1 : f32 to vector<64x148xf32>
    %c0_2 = arith.constant 0 : index
    %c0_3 = arith.constant 0 : index
    %3 = vector.load %arg7[%c0_2, %c0_3] : memref<64x148xf32, #tpu.memory_space<vmem>>, vector<64x148xf32>
    tpu.vector_store %arg7[%c0_2, %c0_3], %2 {strides = array<i32>} : memref<64x148xf32, #tpu.memory_space<vmem>>, vector<64x148xf32>,
    %cst_4 = arith.constant 0.000000e+00 : f32
    %4 = vector.broadcast %cst_4 : f32 to vector<64x76xf32>
    %c0_5 = arith.constant 0 : index
    %c0_6 = arith.constant 0 : index
    %5 = vector.load %arg8[%c0_5, %c0_6] : memref<64x76xf32, #tpu.memory_space<vmem>>, vector<64x76xf32>
    tpu.vector_store %arg8[%c0_5, %c0_6], %4 {strides = array<i32>} : memref<64x76xf32, #tpu.memory_space<vmem>>, vector<64x76xf32>,
    %cst_7 = arith.constant 0.000000e+00 : f32
    %6 = vector.broadcast %cst_7 : f32 to vector<32x38xf32>
    %c0_8 = arith.constant 0 : index
    %c0_9 = arith.constant 0 : index
    %7 = vector.load %arg9[%c0_8, %c0_9] : memref<32x38xf32, #tpu.memory_space<vmem>>, vector<32x38xf32>
    tpu.vector_store %arg9[%c0_8, %c0_9], %6 {strides = array<i32>} : memref<32x38xf32, #tpu.memory_space<vmem>>, vector<32x38xf32>,
    %cst_10 = arith.constant 0.000000e+00 : f32
    %8 = vector.broadcast %cst_10 : f32 to vector<32x38xf32>
    %c0_11 = arith.constant 0 : index
    %c0_12 = arith.constant 0 : index
    %9 = vector.load %arg10[%c0_11, %c0_12] : memref<32x38xf32, #tpu.memory_space<vmem>>, vector<32x38xf32>
    tpu.vector_store %arg10[%c0_11, %c0_12], %8 {strides = array<i32>} : memref<32x38xf32, #tpu.memory_space<vmem>>, vector<32x38xf32>,
    %cst_13 = arith.constant 0.000000e+00 : f32
    %10 = vector.broadcast %cst_13 : f32 to vector<16x22xf32>
    %c0_14 = arith.constant 0 : index
    %c0_15 = arith.constant 0 : index
    %11 = vector.load %arg11[%c0_14, %c0_15] : memref<16x22xf32, #tpu.memory_space<vmem>>, vector<16x22xf32>
    tpu.vector_store %arg11[%c0_14, %c0_15], %10 {strides = array<i32>} : memref<16x22xf32, #tpu.memory_space<vmem>>, vector<16x22xf32>,
    %c0_16 = arith.constant 0 : index
    %c0_17 = arith.constant 0 : index
    %c0_18 = arith.constant 0 : index
    %12 = vector.load %arg0[%c0_16, %c0_17, %c0_18] : memref<2x1x64xf32, #tpu.memory_space<vmem>>, vector<1x1x64xf32>
    %13 = vector.shape_cast %12 : vector<1x1x64xf32> to vector<1x64xf32>
    %c0_19 = arith.constant 0 : index
    %c4 = arith.constant 4 : index
    %14 = vector.load %arg6[%c0_19, %c4] : memref<1x144xf32, #tpu.memory_space<vmem>>, vector<1x64xf32>
    tpu.vector_store %arg6[%c0_19, %c4], %13 {strides = array<i32>} : memref<1x144xf32, #tpu.memory_space<vmem>>, vector<1x64xf32>,
    %c1 = arith.constant 1 : index
    %c0_20 = arith.constant 0 : index
    %c0_21 = arith.constant 0 : index
    %15 = vector.load %arg0[%c1, %c0_20, %c0_21] : memref<2x1x64xf32, #tpu.memory_space<vmem>>, vector<1x1x64xf32>
    %16 = vector.shape_cast %15 : vector<1x1x64xf32> to vector<1x64xf32>
    %c0_22 = arith.constant 0 : index
    %c76 = arith.constant 76 : index
    %17 = vector.load %arg6[%c0_22, %c76] : memref<1x144xf32, #tpu.memory_space<vmem>>, vector<1x64xf32>
    tpu.vector_store %arg6[%c0_22, %c76], %16 {strides = array<i32>} : memref<1x144xf32, #tpu.memory_space<vmem>>, vector<1x64xf32>,
    %c0_23 = arith.constant 0 : index
    %c0_24 = arith.constant 0 : index
    %18 = vector.load %arg6[%c0_23, %c0_24] : memref<1x144xf32, #tpu.memory_space<vmem>>, vector<1x68xf32>
    %c0_25 = arith.constant 0 : index
    %c0_26 = arith.constant 0 : index
    %19 = vector.load %arg5[%c0_25, %c0_26] : memref<448x136xf32, #tpu.memory_space<vmem>>, vector<1x68xf32>
    tpu.vector_store %arg5[%c0_25, %c0_26], %18 {strides = array<i32>} : memref<448x136xf32, #tpu.memory_space<vmem>>, vector<1x68xf32>,
    %c0_27 = arith.constant 0 : index
    %c72 = arith.constant 72 : index
    %20 = vector.load %arg6[%c0_27, %c72] : memref<1x144xf32, #tpu.memory_space<vmem>>, vector<1x68xf32>
    %c0_28 = arith.constant 0 : index
    %c68 = arith.constant 68 : index
    %21 = vector.load %arg5[%c0_28, %c68] : memref<448x136xf32, #tpu.memory_space<vmem>>, vector<1x68xf32>
    tpu.vector_store %arg5[%c0_28, %c68], %20 {strides = array<i32>} : memref<448x136xf32, #tpu.memory_space<vmem>>, vector<1x68xf32>,
    %c0_29 = arith.constant 0 : index
    %c1_30 = arith.constant 1 : index
    %22 = vector.load %arg6[%c0_29, %c1_30] : memref<1x144xf32, #tpu.memory_space<vmem>>, vector<1x68xf32>
    %c1_31 = arith.constant 1 : index
    %c0_32 = arith.constant 0 : index
    %23 = vector.load %arg5[%c1_31, %c0_32] : memref<448x136xf32, #tpu.memory_space<vmem>>, vector<1x68xf32>
    tpu.vector_store %arg5[%c1_31, %c0_32], %22 {strides = array<i32>} : memref<448x136xf32, #tpu.memory_space<vmem>>, vector<1x68xf32>,
    %c0_33 = arith.constant 0 : index
    %c73 = arith.constant 73 : index
    %24 = vector.load %arg6[%c0_33, %c73] : memref<1x144xf32, #tpu.memory_space<vmem>>, vector<1x68xf32>
    %c1_34 = arith.constant 1 : index
    %c68_35 = arith.constant 68 : index
    %25 = vector.load %arg5[%c1_34, %c68_35] : memref<448x136xf32, #tpu.memory_space<vmem>>, vector<1x68xf32>
    tpu.vector_store %arg5[%c1_34, %c68_35], %24 {strides = array<i32>} : memref<448x136xf32, #tpu.memory_space<vmem>>, vector<1x68xf32>,
    %c0_36 = arith.constant 0 : index
    %c2 = arith.constant 2 : index
    %26 = vector.load %arg6[%c0_36, %c2] : memref<1x144xf32, #tpu.memory_space<vmem>>, vector<1x68xf32>
    %c2_37 = arith.constant 2 : index
    %c0_38 = arith.constant 0 : index
    %27 = vector.load %arg5[%c2_37, %c0_38] : memref<448x136xf32, #tpu.memory_space<vmem>>, vector<1x68xf32>
    tpu.vector_store %arg5[%c2_37, %c0_38], %26 {strides = array<i32>} : memref<448x136xf32, #tpu.memory_space<vmem>>, vector<1x68xf32>,
    %c0_39 = arith.constant 0 : index
    %c74 = arith.constant 74 : index
    %28 = vector.load %arg6[%c0_39, %c74] : memref<1x144xf32, #tpu.memory_space<vmem>>, vector<1x68xf32>
    %c2_40 = arith.constant 2 : index
    %c68_41 = arith.constant 68 : index
    %29 = vector.load %arg5[%c2_40, %c68_41] : memref<448x136xf32, #tpu.memory_space<vmem>>, vector<1x68xf32>
    tpu.vector_store %arg5[%c2_40, %c68_41], %28 {strides = array<i32>} : memref<448x136xf32, #tpu.memory_space<vmem>>, vector<1x68xf32>,
    %c0_42 = arith.constant 0 : index
    %c3 = arith.constant 3 : index
    %30 = vector.load %arg6[%c0_42, %c3] : memref<1x144xf32, #tpu.memory_space<vmem>>, vector<1x68xf32>
    %c3_43 = arith.constant 3 : index
    %c0_44 = arith.constant 0 : index
    %31 = vector.load %arg5[%c3_43, %c0_44] : memref<448x136xf32, #tpu.memory_space<vmem>>, vector<1x68xf32>
    tpu.vector_store %arg5[%c3_43, %c0_44], %30 {strides = array<i32>} : memref<448x136xf32, #tpu.memory_space<vmem>>, vector<1x68xf32>,
    %c0_45 = arith.constant 0 : index
    %c75 = arith.constant 75 : index
    %32 = vector.load %arg6[%c0_45, %c75] : memref<1x144xf32, #tpu.memory_space<vmem>>, vector<1x68xf32>
    %c3_46 = arith.constant 3 : index
    %c68_47 = arith.constant 68 : index
    %33 = vector.load %arg5[%c3_46, %c68_47] : memref<448x136xf32, #tpu.memory_space<vmem>>, vector<1x68xf32>
    tpu.vector_store %arg5[%c3_46, %c68_47], %32 {strides = array<i32>} : memref<448x136xf32, #tpu.memory_space<vmem>>, vector<1x68xf32>,
    %c0_48 = arith.constant 0 : index
    %c4_49 = arith.constant 4 : index
    %34 = vector.load %arg6[%c0_48, %c4_49] : memref<1x144xf32, #tpu.memory_space<vmem>>, vector<1x68xf32>
    %c4_50 = arith.constant 4 : index
    %c0_51 = arith.constant 0 : index
    %35 = vector.load %arg5[%c4_50, %c0_51] : memref<448x136xf32, #tpu.memory_space<vmem>>, vector<1x68xf32>
    tpu.vector_store %arg5[%c4_50, %c0_51], %34 {strides = array<i32>} : memref<448x136xf32, #tpu.memory_space<vmem>>, vector<1x68xf32>,
    %c0_52 = arith.constant 0 : index
    %c76_53 = arith.constant 76 : index
    %36 = vector.load %arg6[%c0_52, %c76_53] : memref<1x144xf32, #tpu.memory_space<vmem>>, vector<1x68xf32>
    %c4_54 = arith.constant 4 : index
    %c68_55 = arith.constant 68 : index
    %37 = vector.load %arg5[%c4_54, %c68_55] : memref<448x136xf32, #tpu.memory_space<vmem>>, vector<1x68xf32>
    tpu.vector_store %arg5[%c4_54, %c68_55], %36 {strides = array<i32>} : memref<448x136xf32, #tpu.memory_space<vmem>>, vector<1x68xf32>,
    %c0_56 = arith.constant 0 : index
    %c0_57 = arith.constant 0 : index
    %38 = vector.load %arg1[%c0_56, %c0_57] : memref<64x1408xbf16, #tpu.memory_space<vmem>>, vector<64x5xbf16>
    %c0_58 = arith.constant 0 : index
    %c0_59 = arith.constant 0 : index
    %39 = vector.load %arg5[%c0_58, %c0_59] : memref<448x136xf32, #tpu.memory_space<vmem>>, vector<5x136xf32>
    %40 = arith.truncf %39 : vector<5x136xf32> to vector<5x136xbf16>
    %cst_60 = arith.constant dense<0.000000e+00> : vector<64x136xf32>
    %41 = tpu.matmul %38, %40, %cst_60 {dimension_numbers = #tpu.dot_dimension_numbers<[1], [0], [0], [1], [0, 0, 1, 1], [], []>} : vector<64x5xbf16>, vector<5x136xbf16>, vector<64x136xf32> -> vector<64x136xf32>
    %c0_61 = arith.constant 0 : index
    %c0_62 = arith.constant 0 : index
    %42 = vector.load %arg2[%c0_61, %c0_62] : memref<64x18xf32, #tpu.memory_space<vmem>>, vector<64x1xf32>
    %43 = vector.broadcast %42 : vector<64x1xf32> to vector<64x136xf32>
    %44 = arith.addf %41, %43 : vector<64x136xf32>
    %cst_63 = arith.constant 0.000000e+00 : f32
    %45 = vector.broadcast %cst_63 : f32 to vector<64x136xf32>
    %46 = arith.maximumf %44, %45 : vector<64x136xf32>
    %47 = vector.extract_strided_slice %46 {offsets = [0, 0], sizes = [64, 68], strides = [1, 1]} : vector<64x136xf32> to vector<64x68xf32>
    %c0_64 = arith.constant 0 : index
    %c3_65 = arith.constant 3 : index
    %48 = vector.load %arg7[%c0_64, %c3_65] : memref<64x148xf32, #tpu.memory_space<vmem>>, vector<64x68xf32>
    tpu.vector_store %arg7[%c0_64, %c3_65], %47 {strides = array<i32>} : memref<64x148xf32, #tpu.memory_space<vmem>>, vector<64x68xf32>,
    %49 = vector.extract_strided_slice %46 {offsets = [0, 68], sizes = [64, 68], strides = [1, 1]} : vector<64x136xf32> to vector<64x68xf32>
    %c0_66 = arith.constant 0 : index
    %c77 = arith.constant 77 : index
    %50 = vector.load %arg7[%c0_66, %c77] : memref<64x148xf32, #tpu.memory_space<vmem>>, vector<64x68xf32>
    tpu.vector_store %arg7[%c0_66, %c77], %49 {strides = array<i32>} : memref<64x148xf32, #tpu.memory_space<vmem>>, vector<64x68xf32>,
    %c0_67 = arith.constant 0 : index
    %c0_68 = arith.constant 0 : index
    %51 = vector.load %arg7[%c0_67, %c0_68] : memref<64x148xf32, #tpu.memory_space<vmem>>, vector<64x68xf32>
    %c0_69 = arith.constant 0 : index
    %c0_70 = arith.constant 0 : index
    %52 = vector.load %arg5[%c0_69, %c0_70] : memref<448x136xf32, #tpu.memory_space<vmem>>, vector<64x68xf32>
    tpu.vector_store %arg5[%c0_69, %c0_70], %51 {strides = array<i32>} : memref<448x136xf32, #tpu.memory_space<vmem>>, vector<64x68xf32>,
    %c0_71 = arith.constant 0 : index
    %c74_72 = arith.constant 74 : index
    %53 = vector.load %arg7[%c0_71, %c74_72] : memref<64x148xf32, #tpu.memory_space<vmem>>, vector<64x68xf32>
    %c0_73 = arith.constant 0 : index
    %c68_74 = arith.constant 68 : index
    %54 = vector.load %arg5[%c0_73, %c68_74] : memref<448x136xf32, #tpu.memory_space<vmem>>, vector<64x68xf32>
    tpu.vector_store %arg5[%c0_73, %c68_74], %53 {strides = array<i32>} : memref<448x136xf32, #tpu.memory_space<vmem>>, vector<64x68xf32>,
    %c0_75 = arith.constant 0 : index
    %c1_76 = arith.constant 1 : index
    %55 = vector.load %arg7[%c0_75, %c1_76] : memref<64x148xf32, #tpu.memory_space<vmem>>, vector<64x68xf32>
    %c64 = arith.constant 64 : index
    %c0_77 = arith.constant 0 : index
    %56 = vector.load %arg5[%c64, %c0_77] : memref<448x136xf32, #tpu.memory_space<vmem>>, vector<64x68xf32>
    tpu.vector_store %arg5[%c64, %c0_77], %55 {strides = array<i32>} : memref<448x136xf32, #tpu.memory_space<vmem>>, vector<64x68xf32>,
    %c0_78 = arith.constant 0 : index
    %c75_79 = arith.constant 75 : index
    %57 = vector.load %arg7[%c0_78, %c75_79] : memref<64x148xf32, #tpu.memory_space<vmem>>, vector<64x68xf32>
    %c64_80 = arith.constant 64 : index
    %c68_81 = arith.constant 68 : index
    %58 = vector.load %arg5[%c64_80, %c68_81] : memref<448x136xf32, #tpu.memory_space<vmem>>, vector<64x68xf32>
    tpu.vector_store %arg5[%c64_80, %c68_81], %57 {strides = array<i32>} : memref<448x136xf32, #tpu.memory_space<vmem>>, vector<64x68xf32>,
    %c0_82 = arith.constant 0 : index
    %c2_83 = arith.constant 2 : index
    %59 = vector.load %arg7[%c0_82, %c2_83] : memref<64x148xf32, #tpu.memory_space<vmem>>, vector<64x68xf32>
    %c128 = arith.constant 128 : index
    %c0_84 = arith.constant 0 : index
    %60 = vector.load %arg5[%c128, %c0_84] : memref<448x136xf32, #tpu.memory_space<vmem>>, vector<64x68xf32>
    tpu.vector_store %arg5[%c128, %c0_84], %59 {strides = array<i32>} : memref<448x136xf32, #tpu.memory_space<vmem>>, vector<64x68xf32>,
    %c0_85 = arith.constant 0 : index
    %c76_86 = arith.constant 76 : index
    %61 = vector.load %arg7[%c0_85, %c76_86] : memref<64x148xf32, #tpu.memory_space<vmem>>, vector<64x68xf32>
    %c128_87 = arith.constant 128 : index
    %c68_88 = arith.constant 68 : index
    %62 = vector.load %arg5[%c128_87, %c68_88] : memref<448x136xf32, #tpu.memory_space<vmem>>, vector<64x68xf32>
    tpu.vector_store %arg5[%c128_87, %c68_88], %61 {strides = array<i32>} : memref<448x136xf32, #tpu.memory_space<vmem>>, vector<64x68xf32>,
    %c0_89 = arith.constant 0 : index
    %c3_90 = arith.constant 3 : index
    %63 = vector.load %arg7[%c0_89, %c3_90] : memref<64x148xf32, #tpu.memory_space<vmem>>, vector<64x68xf32>
    %c192 = arith.constant 192 : index
    %c0_91 = arith.constant 0 : index
    %64 = vector.load %arg5[%c192, %c0_91] : memref<448x136xf32, #tpu.memory_space<vmem>>, vector<64x68xf32>
    tpu.vector_store %arg5[%c192, %c0_91], %63 {strides = array<i32>} : memref<448x136xf32, #tpu.memory_space<vmem>>, vector<64x68xf32>,
    %c0_92 = arith.constant 0 : index
    %c77_93 = arith.constant 77 : index
    %65 = vector.load %arg7[%c0_92, %c77_93] : memref<64x148xf32, #tpu.memory_space<vmem>>, vector<64x68xf32>
    %c192_94 = arith.constant 192 : index
    %c68_95 = arith.constant 68 : index
    %66 = vector.load %arg5[%c192_94, %c68_95] : memref<448x136xf32, #tpu.memory_space<vmem>>, vector<64x68xf32>
    tpu.vector_store %arg5[%c192_94, %c68_95], %65 {strides = array<i32>} : memref<448x136xf32, #tpu.memory_space<vmem>>, vector<64x68xf32>,
    %c0_96 = arith.constant 0 : index
    %c4_97 = arith.constant 4 : index
    %67 = vector.load %arg7[%c0_96, %c4_97] : memref<64x148xf32, #tpu.memory_space<vmem>>, vector<64x68xf32>
    %c256 = arith.constant 256 : index
    %c0_98 = arith.constant 0 : index
    %68 = vector.load %arg5[%c256, %c0_98] : memref<448x136xf32, #tpu.memory_space<vmem>>, vector<64x68xf32>
    tpu.vector_store %arg5[%c256, %c0_98], %67 {strides = array<i32>} : memref<448x136xf32, #tpu.memory_space<vmem>>, vector<64x68xf32>,
    %c0_99 = arith.constant 0 : index
    %c78 = arith.constant 78 : index
    %69 = vector.load %arg7[%c0_99, %c78] : memref<64x148xf32, #tpu.memory_space<vmem>>, vector<64x68xf32>
    %c256_100 = arith.constant 256 : index
    %c68_101 = arith.constant 68 : index
    %70 = vector.load %arg5[%c256_100, %c68_101] : memref<448x136xf32, #tpu.memory_space<vmem>>, vector<64x68xf32>
    tpu.vector_store %arg5[%c256_100, %c68_101], %69 {strides = array<i32>} : memref<448x136xf32, #tpu.memory_space<vmem>>, vector<64x68xf32>,
    %c0_102 = arith.constant 0 : index
    %c5 = arith.constant 5 : index
    %71 = vector.load %arg7[%c0_102, %c5] : memref<64x148xf32, #tpu.memory_space<vmem>>, vector<64x68xf32>
    %c320 = arith.constant 320 : index
    %c0_103 = arith.constant 0 : index
    %72 = vector.load %arg5[%c320, %c0_103] : memref<448x136xf32, #tpu.memory_space<vmem>>, vector<64x68xf32>
    tpu.vector_store %arg5[%c320, %c0_103], %71 {strides = array<i32>} : memref<448x136xf32, #tpu.memory_space<vmem>>, vector<64x68xf32>,
    %c0_104 = arith.constant 0 : index
    %c79 = arith.constant 79 : index
    %73 = vector.load %arg7[%c0_104, %c79] : memref<64x148xf32, #tpu.memory_space<vmem>>, vector<64x68xf32>
    %c320_105 = arith.constant 320 : index
    %c68_106 = arith.constant 68 : index
    %74 = vector.load %arg5[%c320_105, %c68_106] : memref<448x136xf32, #tpu.memory_space<vmem>>, vector<64x68xf32>
    tpu.vector_store %arg5[%c320_105, %c68_106], %73 {strides = array<i32>} : memref<448x136xf32, #tpu.memory_space<vmem>>, vector<64x68xf32>,
    %c0_107 = arith.constant 0 : index
    %c6 = arith.constant 6 : index
    %75 = vector.load %arg7[%c0_107, %c6] : memref<64x148xf32, #tpu.memory_space<vmem>>, vector<64x68xf32>
    %c384 = arith.constant 384 : index
    %c0_108 = arith.constant 0 : index
    %76 = vector.load %arg5[%c384, %c0_108] : memref<448x136xf32, #tpu.memory_space<vmem>>, vector<64x68xf32>
    tpu.vector_store %arg5[%c384, %c0_108], %75 {strides = array<i32>} : memref<448x136xf32, #tpu.memory_space<vmem>>, vector<64x68xf32>,
    %c0_109 = arith.constant 0 : index
    %c80 = arith.constant 80 : index
    %77 = vector.load %arg7[%c0_109, %c80] : memref<64x148xf32, #tpu.memory_space<vmem>>, vector<64x68xf32>
    %c384_110 = arith.constant 384 : index
    %c68_111 = arith.constant 68 : index
    %78 = vector.load %arg5[%c384_110, %c68_111] : memref<448x136xf32, #tpu.memory_space<vmem>>, vector<64x68xf32>
    tpu.vector_store %arg5[%c384_110, %c68_111], %77 {strides = array<i32>} : memref<448x136xf32, #tpu.memory_space<vmem>>, vector<64x68xf32>,
    %c0_112 = arith.constant 0 : index
    %c128_113 = arith.constant 128 : index
    %79 = vector.load %arg1[%c0_112, %c128_113] : memref<64x1408xbf16, #tpu.memory_space<vmem>>, vector<64x448xbf16>
    %c0_114 = arith.constant 0 : index
    %c0_115 = arith.constant 0 : index
    %80 = vector.load %arg5[%c0_114, %c0_115] : memref<448x136xf32, #tpu.memory_space<vmem>>, vector<448x136xf32>
    %81 = arith.truncf %80 : vector<448x136xf32> to vector<448x136xbf16>
    %cst_116 = arith.constant dense<0.000000e+00> : vector<64x136xf32>
    %82 = tpu.matmul %79, %81, %cst_116 {dimension_numbers = #tpu.dot_dimension_numbers<[1], [0], [0], [1], [0, 0, 1, 1], [], []>} : vector<64x448xbf16>, vector<448x136xbf16>, vector<64x136xf32> -> vector<64x136xf32>
    %83 = tpu.iota {dimensions = array<i32: 0>} : vector<136x68xi32>
    %84 = tpu.iota {dimensions = array<i32: 1>} : vector<136x68xi32>
    %c0_i32 = arith.constant 0 : i32
    %85 = vector.broadcast %c0_i32 : i32 to vector<136x68xi32>
    %86 = arith.subi %84, %85 : vector<136x68xi32>
    %c0_i32_117 = arith.constant 0 : i32
    %87 = vector.broadcast %c0_i32_117 : i32 to vector<136x68xi32>
    %88 = arith.cmpi sge, %86, %87 : vector<136x68xi32>
    %c34_i32 = arith.constant 34 : i32
    %89 = vector.broadcast %c34_i32 : i32 to vector<136x68xi32>
    %90 = arith.cmpi slt, %86, %89 : vector<136x68xi32>
    %91 = arith.andi %88, %90 : vector<136x68xi1>
    %c2_i32 = arith.constant 2 : i32
    %92 = vector.broadcast %c2_i32 : i32 to vector<136x68xi32>
    %93 = arith.muli %92, %86 : vector<136x68xi32>
    %c0_i32_118 = arith.constant 0 : i32
    %94 = vector.broadcast %c0_i32_118 : i32 to vector<136x68xi32>
    %95 = arith.addi %94, %93 : vector<136x68xi32>
    %96 = arith.cmpi eq, %83, %95 : vector<136x68xi32>
    %97 = arith.andi %91, %96 : vector<136x68xi1>
    %c34_i32_119 = arith.constant 34 : i32
    %98 = vector.broadcast %c34_i32_119 : i32 to vector<136x68xi32>
    %99 = arith.subi %84, %98 : vector<136x68xi32>
    %c0_i32_120 = arith.constant 0 : i32
    %100 = vector.broadcast %c0_i32_120 : i32 to vector<136x68xi32>
    %101 = arith.cmpi sge, %99, %100 : vector<136x68xi32>
    %c34_i32_121 = arith.constant 34 : i32
    %102 = vector.broadcast %c34_i32_121 : i32 to vector<136x68xi32>
    %103 = arith.cmpi slt, %99, %102 : vector<136x68xi32>
    %104 = arith.andi %101, %103 : vector<136x68xi1>
    %c2_i32_122 = arith.constant 2 : i32
    %105 = vector.broadcast %c2_i32_122 : i32 to vector<136x68xi32>
    %106 = arith.muli %105, %99 : vector<136x68xi32>
    %c68_i32 = arith.constant 68 : i32
    %107 = vector.broadcast %c68_i32 : i32 to vector<136x68xi32>
    %108 = arith.addi %107, %106 : vector<136x68xi32>
    %109 = arith.cmpi eq, %83, %108 : vector<136x68xi32>
    %110 = arith.andi %104, %109 : vector<136x68xi1>
    %111 = arith.ori %97, %110 : vector<136x68xi1>
    %112 = arith.extui %111 : vector<136x68xi1> to vector<136x68xi32>
    %113 = arith.sitofp %112 : vector<136x68xi32> to vector<136x68xf32>
    %cst_123 = arith.constant dense<0.000000e+00> : vector<64x68xf32>
    %114 = tpu.matmul %82, %113, %cst_123 {dimension_numbers = #tpu.dot_dimension_numbers<[1], [0], [0], [1], [0, 0, 1, 1], [], []>} : vector<64x136xf32>, vector<136x68xf32>, vector<64x68xf32> -> vector<64x68xf32>
    %c0_124 = arith.constant 0 : index
    %c3_125 = arith.constant 3 : index
    %115 = vector.load %arg2[%c0_124, %c3_125] : memref<64x18xf32, #tpu.memory_space<vmem>>, vector<64x1xf32>
    %116 = vector.broadcast %115 : vector<64x1xf32> to vector<64x68xf32>
    %117 = arith.addf %114, %116 : vector<64x68xf32>
    %cst_126 = arith.constant dense<0.000000e+00> : vector<64xf32>
    %118 = vector.multi_reduction <add>, %117, %cst_126 [1] : vector<64x68xf32> to vector<64xf32>
    %119 = vector.shape_cast %118 : vector<64xf32> to vector<64x1xf32>
    %cst_127 = arith.constant 6.800000e+01 : f32
    %120 = vector.broadcast %cst_127 : f32 to vector<64x1xf32>
    %121 = arith.divf %119, %120 : vector<64x1xf32>
    %122 = vector.broadcast %121 : vector<64x1xf32> to vector<64x68xf32>
    %123 = arith.subf %117, %122 : vector<64x68xf32>
    %124 = arith.mulf %123, %123 : vector<64x68xf32>
    %cst_128 = arith.constant dense<0.000000e+00> : vector<64xf32>
    %125 = vector.multi_reduction <add>, %124, %cst_128 [1] : vector<64x68xf32> to vector<64xf32>
    %126 = vector.shape_cast %125 : vector<64xf32> to vector<64x1xf32>
    %cst_129 = arith.constant 6.800000e+01 : f32
    %127 = vector.broadcast %cst_129 : f32 to vector<64x1xf32>
    %128 = arith.divf %126, %127 : vector<64x1xf32>
    %c0_130 = arith.constant 0 : index
    %c4_131 = arith.constant 4 : index
    %129 = vector.load %arg2[%c0_130, %c4_131] : memref<64x18xf32, #tpu.memory_space<vmem>>, vector<64x1xf32>
    %c0_132 = arith.constant 0 : index
    %c5_133 = arith.constant 5 : index
    %130 = vector.load %arg2[%c0_132, %c5_133] : memref<64x18xf32, #tpu.memory_space<vmem>>, vector<64x1xf32>
    %cst_134 = arith.constant 9.99999974E-6 : f32
    %131 = vector.broadcast %cst_134 : f32 to vector<64x1xf32>
    %132 = arith.addf %128, %131 : vector<64x1xf32>
    %133 = math.rsqrt %132 : vector<64x1xf32>
    %134 = arith.mulf %129, %133 : vector<64x1xf32>
    %135 = vector.broadcast %134 : vector<64x1xf32> to vector<64x68xf32>
    %136 = arith.mulf %123, %135 : vector<64x68xf32>
    %137 = vector.broadcast %130 : vector<64x1xf32> to vector<64x68xf32>
    %138 = arith.addf %136, %137 : vector<64x68xf32>
    %cst_135 = arith.constant 0.000000e+00 : f32
    %139 = vector.broadcast %cst_135 : f32 to vector<64x68xf32>
    %140 = arith.maximumf %138, %139 : vector<64x68xf32>
    %141 = vector.extract_strided_slice %140 {offsets = [0, 0], sizes = [64, 34], strides = [1, 1]} : vector<64x68xf32> to vector<64x34xf32>
    %c0_136 = arith.constant 0 : index
    %c2_137 = arith.constant 2 : index
    %142 = vector.load %arg8[%c0_136, %c2_137] : memref<64x76xf32, #tpu.memory_space<vmem>>, vector<64x34xf32>
    tpu.vector_store %arg8[%c0_136, %c2_137], %141 {strides = array<i32>} : memref<64x76xf32, #tpu.memory_space<vmem>>, vector<64x34xf32>,
    %143 = vector.extract_strided_slice %140 {offsets = [0, 34], sizes = [64, 34], strides = [1, 1]} : vector<64x68xf32> to vector<64x34xf32>
    %c0_138 = arith.constant 0 : index
    %c40 = arith.constant 40 : index
    %144 = vector.load %arg8[%c0_138, %c40] : memref<64x76xf32, #tpu.memory_space<vmem>>, vector<64x34xf32>
    tpu.vector_store %arg8[%c0_138, %c40], %143 {strides = array<i32>} : memref<64x76xf32, #tpu.memory_space<vmem>>, vector<64x34xf32>,
    %c0_139 = arith.constant 0 : index
    %c0_140 = arith.constant 0 : index
    %145 = vector.load %arg8[%c0_139, %c0_140] : memref<64x76xf32, #tpu.memory_space<vmem>>, vector<64x34xf32>
    %c0_141 = arith.constant 0 : index
    %c0_142 = arith.constant 0 : index
    %146 = vector.load %arg5[%c0_141, %c0_142] : memref<448x136xf32, #tpu.memory_space<vmem>>, vector<64x34xf32>
    tpu.vector_store %arg5[%c0_141, %c0_142], %145 {strides = array<i32>} : memref<448x136xf32, #tpu.memory_space<vmem>>, vector<64x34xf32>,
    %c0_143 = arith.constant 0 : index
    %c38 = arith.constant 38 : index
    %147 = vector.load %arg8[%c0_143, %c38] : memref<64x76xf32, #tpu.memory_space<vmem>>, vector<64x34xf32>
    %c0_144 = arith.constant 0 : index
    %c34 = arith.constant 34 : index
    %148 = vector.load %arg5[%c0_144, %c34] : memref<448x136xf32, #tpu.memory_space<vmem>>, vector<64x34xf32>
    tpu.vector_store %arg5[%c0_144, %c34], %147 {strides = array<i32>} : memref<448x136xf32, #tpu.memory_space<vmem>>, vector<64x34xf32>,
    %c0_145 = arith.constant 0 : index
    %c1_146 = arith.constant 1 : index
    %149 = vector.load %arg8[%c0_145, %c1_146] : memref<64x76xf32, #tpu.memory_space<vmem>>, vector<64x34xf32>
    %c64_147 = arith.constant 64 : index
    %c0_148 = arith.constant 0 : index
    %150 = vector.load %arg5[%c64_147, %c0_148] : memref<448x136xf32, #tpu.memory_space<vmem>>, vector<64x34xf32>
    tpu.vector_store %arg5[%c64_147, %c0_148], %149 {strides = array<i32>} : memref<448x136xf32, #tpu.memory_space<vmem>>, vector<64x34xf32>,
    %c0_149 = arith.constant 0 : index
    %c39 = arith.constant 39 : index
    %151 = vector.load %arg8[%c0_149, %c39] : memref<64x76xf32, #tpu.memory_space<vmem>>, vector<64x34xf32>
    %c64_150 = arith.constant 64 : index
    %c34_151 = arith.constant 34 : index
    %152 = vector.load %arg5[%c64_150, %c34_151] : memref<448x136xf32, #tpu.memory_space<vmem>>, vector<64x34xf32>
    tpu.vector_store %arg5[%c64_150, %c34_151], %151 {strides = array<i32>} : memref<448x136xf32, #tpu.memory_space<vmem>>, vector<64x34xf32>,
    %c0_152 = arith.constant 0 : index
    %c2_153 = arith.constant 2 : index
    %153 = vector.load %arg8[%c0_152, %c2_153] : memref<64x76xf32, #tpu.memory_space<vmem>>, vector<64x34xf32>
    %c128_154 = arith.constant 128 : index
    %c0_155 = arith.constant 0 : index
    %154 = vector.load %arg5[%c128_154, %c0_155] : memref<448x136xf32, #tpu.memory_space<vmem>>, vector<64x34xf32>
    tpu.vector_store %arg5[%c128_154, %c0_155], %153 {strides = array<i32>} : memref<448x136xf32, #tpu.memory_space<vmem>>, vector<64x34xf32>,
    %c0_156 = arith.constant 0 : index
    %c40_157 = arith.constant 40 : index
    %155 = vector.load %arg8[%c0_156, %c40_157] : memref<64x76xf32, #tpu.memory_space<vmem>>, vector<64x34xf32>
    %c128_158 = arith.constant 128 : index
    %c34_159 = arith.constant 34 : index
    %156 = vector.load %arg5[%c128_158, %c34_159] : memref<448x136xf32, #tpu.memory_space<vmem>>, vector<64x34xf32>
    tpu.vector_store %arg5[%c128_158, %c34_159], %155 {strides = array<i32>} : memref<448x136xf32, #tpu.memory_space<vmem>>, vector<64x34xf32>,
    %c0_160 = arith.constant 0 : index
    %c3_161 = arith.constant 3 : index
    %157 = vector.load %arg8[%c0_160, %c3_161] : memref<64x76xf32, #tpu.memory_space<vmem>>, vector<64x34xf32>
    %c192_162 = arith.constant 192 : index
    %c0_163 = arith.constant 0 : index
    %158 = vector.load %arg5[%c192_162, %c0_163] : memref<448x136xf32, #tpu.memory_space<vmem>>, vector<64x34xf32>
    tpu.vector_store %arg5[%c192_162, %c0_163], %157 {strides = array<i32>} : memref<448x136xf32, #tpu.memory_space<vmem>>, vector<64x34xf32>,
    %c0_164 = arith.constant 0 : index
    %c41 = arith.constant 41 : index
    %159 = vector.load %arg8[%c0_164, %c41] : memref<64x76xf32, #tpu.memory_space<vmem>>, vector<64x34xf32>
    %c192_165 = arith.constant 192 : index
    %c34_166 = arith.constant 34 : index
    %160 = vector.load %arg5[%c192_165, %c34_166] : memref<448x136xf32, #tpu.memory_space<vmem>>, vector<64x34xf32>
    tpu.vector_store %arg5[%c192_165, %c34_166], %159 {strides = array<i32>} : memref<448x136xf32, #tpu.memory_space<vmem>>, vector<64x34xf32>,
    %c0_167 = arith.constant 0 : index
    %c4_168 = arith.constant 4 : index
    %161 = vector.load %arg8[%c0_167, %c4_168] : memref<64x76xf32, #tpu.memory_space<vmem>>, vector<64x34xf32>
    %c256_169 = arith.constant 256 : index
    %c0_170 = arith.constant 0 : index
    %162 = vector.load %arg5[%c256_169, %c0_170] : memref<448x136xf32, #tpu.memory_space<vmem>>, vector<64x34xf32>
    tpu.vector_store %arg5[%c256_169, %c0_170], %161 {strides = array<i32>} : memref<448x136xf32, #tpu.memory_space<vmem>>, vector<64x34xf32>,
    %c0_171 = arith.constant 0 : index
    %c42 = arith.constant 42 : index
    %163 = vector.load %arg8[%c0_171, %c42] : memref<64x76xf32, #tpu.memory_space<vmem>>, vector<64x34xf32>
    %c256_172 = arith.constant 256 : index
    %c34_173 = arith.constant 34 : index
    %164 = vector.load %arg5[%c256_172, %c34_173] : memref<448x136xf32, #tpu.memory_space<vmem>>, vector<64x34xf32>
    tpu.vector_store %arg5[%c256_172, %c34_173], %163 {strides = array<i32>} : memref<448x136xf32, #tpu.memory_space<vmem>>, vector<64x34xf32>,
    %c0_174 = arith.constant 0 : index
    %c640 = arith.constant 640 : index
    %165 = vector.load %arg1[%c0_174, %c640] : memref<64x1408xbf16, #tpu.memory_space<vmem>>, vector<32x320xbf16>
    %c0_175 = arith.constant 0 : index
    %c0_176 = arith.constant 0 : index
    %166 = vector.load %arg5[%c0_175, %c0_176] : memref<448x136xf32, #tpu.memory_space<vmem>>, vector<320x68xf32>
    %167 = arith.truncf %166 : vector<320x68xf32> to vector<320x68xbf16>
    %cst_177 = arith.constant dense<0.000000e+00> : vector<32x68xf32>
    %168 = tpu.matmul %165, %167, %cst_177 {dimension_numbers = #tpu.dot_dimension_numbers<[1], [0], [0], [1], [0, 0, 1, 1], [], []>} : vector<32x320xbf16>, vector<320x68xbf16>, vector<32x68xf32> -> vector<32x68xf32>
    %169 = tpu.iota {dimensions = array<i32: 0>} : vector<68x34xi32>
    %170 = tpu.iota {dimensions = array<i32: 1>} : vector<68x34xi32>
    %c0_i32_178 = arith.constant 0 : i32
    %171 = vector.broadcast %c0_i32_178 : i32 to vector<68x34xi32>
    %172 = arith.subi %170, %171 : vector<68x34xi32>
    %c0_i32_179 = arith.constant 0 : i32
    %173 = vector.broadcast %c0_i32_179 : i32 to vector<68x34xi32>
    %174 = arith.cmpi sge, %172, %173 : vector<68x34xi32>
    %c17_i32 = arith.constant 17 : i32
    %175 = vector.broadcast %c17_i32 : i32 to vector<68x34xi32>
    %176 = arith.cmpi slt, %172, %175 : vector<68x34xi32>
    %177 = arith.andi %174, %176 : vector<68x34xi1>
    %c2_i32_180 = arith.constant 2 : i32
    %178 = vector.broadcast %c2_i32_180 : i32 to vector<68x34xi32>
    %179 = arith.muli %178, %172 : vector<68x34xi32>
    %c0_i32_181 = arith.constant 0 : i32
    %180 = vector.broadcast %c0_i32_181 : i32 to vector<68x34xi32>
    %181 = arith.addi %180, %179 : vector<68x34xi32>
    %182 = arith.cmpi eq, %169, %181 : vector<68x34xi32>
    %183 = arith.andi %177, %182 : vector<68x34xi1>
    %c17_i32_182 = arith.constant 17 : i32
    %184 = vector.broadcast %c17_i32_182 : i32 to vector<68x34xi32>
    %185 = arith.subi %170, %184 : vector<68x34xi32>
    %c0_i32_183 = arith.constant 0 : i32
    %186 = vector.broadcast %c0_i32_183 : i32 to vector<68x34xi32>
    %187 = arith.cmpi sge, %185, %186 : vector<68x34xi32>
    %c17_i32_184 = arith.constant 17 : i32
    %188 = vector.broadcast %c17_i32_184 : i32 to vector<68x34xi32>
    %189 = arith.cmpi slt, %185, %188 : vector<68x34xi32>
    %190 = arith.andi %187, %189 : vector<68x34xi1>
    %c2_i32_185 = arith.constant 2 : i32
    %191 = vector.broadcast %c2_i32_185 : i32 to vector<68x34xi32>
    %192 = arith.muli %191, %185 : vector<68x34xi32>
    %c34_i32_186 = arith.constant 34 : i32
    %193 = vector.broadcast %c34_i32_186 : i32 to vector<68x34xi32>
    %194 = arith.addi %193, %192 : vector<68x34xi32>
    %195 = arith.cmpi eq, %169, %194 : vector<68x34xi32>
    %196 = arith.andi %190, %195 : vector<68x34xi1>
    %197 = arith.ori %183, %196 : vector<68x34xi1>
    %198 = arith.extui %197 : vector<68x34xi1> to vector<68x34xi32>
    %199 = arith.sitofp %198 : vector<68x34xi32> to vector<68x34xf32>
    %cst_187 = arith.constant dense<0.000000e+00> : vector<32x34xf32>
    %200 = tpu.matmul %168, %199, %cst_187 {dimension_numbers = #tpu.dot_dimension_numbers<[1], [0], [0], [1], [0, 0, 1, 1], [], []>} : vector<32x68xf32>, vector<68x34xf32>, vector<32x34xf32> -> vector<32x34xf32>
    %c0_188 = arith.constant 0 : index
    %c6_189 = arith.constant 6 : index
    %201 = vector.load %arg2[%c0_188, %c6_189] : memref<64x18xf32, #tpu.memory_space<vmem>>, vector<32x1xf32>
    %202 = vector.broadcast %201 : vector<32x1xf32> to vector<32x34xf32>
    %203 = arith.addf %200, %202 : vector<32x34xf32>
    %cst_190 = arith.constant dense<0.000000e+00> : vector<32xf32>
    %204 = vector.multi_reduction <add>, %203, %cst_190 [1] : vector<32x34xf32> to vector<32xf32>
    %205 = vector.shape_cast %204 : vector<32xf32> to vector<32x1xf32>
    %cst_191 = arith.constant 3.400000e+01 : f32
    %206 = vector.broadcast %cst_191 : f32 to vector<32x1xf32>
    %207 = arith.divf %205, %206 : vector<32x1xf32>
    %208 = vector.broadcast %207 : vector<32x1xf32> to vector<32x34xf32>
    %209 = arith.subf %203, %208 : vector<32x34xf32>
    %210 = arith.mulf %209, %209 : vector<32x34xf32>
    %cst_192 = arith.constant dense<0.000000e+00> : vector<32xf32>
    %211 = vector.multi_reduction <add>, %210, %cst_192 [1] : vector<32x34xf32> to vector<32xf32>
    %212 = vector.shape_cast %211 : vector<32xf32> to vector<32x1xf32>
    %cst_193 = arith.constant 3.400000e+01 : f32
    %213 = vector.broadcast %cst_193 : f32 to vector<32x1xf32>
    %214 = arith.divf %212, %213 : vector<32x1xf32>
    %c0_194 = arith.constant 0 : index
    %c7 = arith.constant 7 : index
    %215 = vector.load %arg2[%c0_194, %c7] : memref<64x18xf32, #tpu.memory_space<vmem>>, vector<32x1xf32>
    %c0_195 = arith.constant 0 : index
    %c8 = arith.constant 8 : index
    %216 = vector.load %arg2[%c0_195, %c8] : memref<64x18xf32, #tpu.memory_space<vmem>>, vector<32x1xf32>
    %cst_196 = arith.constant 9.99999974E-6 : f32
    %217 = vector.broadcast %cst_196 : f32 to vector<32x1xf32>
    %218 = arith.addf %214, %217 : vector<32x1xf32>
    %219 = math.rsqrt %218 : vector<32x1xf32>
    %220 = arith.mulf %215, %219 : vector<32x1xf32>
    %221 = vector.broadcast %220 : vector<32x1xf32> to vector<32x34xf32>
    %222 = arith.mulf %209, %221 : vector<32x34xf32>
    %223 = vector.broadcast %216 : vector<32x1xf32> to vector<32x34xf32>
    %224 = arith.addf %222, %223 : vector<32x34xf32>
    %cst_197 = arith.constant 0.000000e+00 : f32
    %225 = vector.broadcast %cst_197 : f32 to vector<32x34xf32>
    %226 = arith.maximumf %224, %225 : vector<32x34xf32>
    %227 = vector.extract_strided_slice %226 {offsets = [0, 0], sizes = [32, 17], strides = [1, 1]} : vector<32x34xf32> to vector<32x17xf32>
    %c0_198 = arith.constant 0 : index
    %c1_199 = arith.constant 1 : index
    %228 = vector.load %arg9[%c0_198, %c1_199] : memref<32x38xf32, #tpu.memory_space<vmem>>, vector<32x17xf32>
    tpu.vector_store %arg9[%c0_198, %c1_199], %227 {strides = array<i32>} : memref<32x38xf32, #tpu.memory_space<vmem>>, vector<32x17xf32>,
    %229 = vector.extract_strided_slice %226 {offsets = [0, 17], sizes = [32, 17], strides = [1, 1]} : vector<32x34xf32> to vector<32x17xf32>
    %c0_200 = arith.constant 0 : index
    %c20 = arith.constant 20 : index
    %230 = vector.load %arg9[%c0_200, %c20] : memref<32x38xf32, #tpu.memory_space<vmem>>, vector<32x17xf32>
    tpu.vector_store %arg9[%c0_200, %c20], %229 {strides = array<i32>} : memref<32x38xf32, #tpu.memory_space<vmem>>, vector<32x17xf32>,
    %c0_201 = arith.constant 0 : index
    %c0_202 = arith.constant 0 : index
    %231 = vector.load %arg9[%c0_201, %c0_202] : memref<32x38xf32, #tpu.memory_space<vmem>>, vector<32x17xf32>
    %c0_203 = arith.constant 0 : index
    %c0_204 = arith.constant 0 : index
    %232 = vector.load %arg5[%c0_203, %c0_204] : memref<448x136xf32, #tpu.memory_space<vmem>>, vector<32x17xf32>
    tpu.vector_store %arg5[%c0_203, %c0_204], %231 {strides = array<i32>} : memref<448x136xf32, #tpu.memory_space<vmem>>, vector<32x17xf32>,
    %c0_205 = arith.constant 0 : index
    %c19 = arith.constant 19 : index
    %233 = vector.load %arg9[%c0_205, %c19] : memref<32x38xf32, #tpu.memory_space<vmem>>, vector<32x17xf32>
    %c0_206 = arith.constant 0 : index
    %c17 = arith.constant 17 : index
    %234 = vector.load %arg5[%c0_206, %c17] : memref<448x136xf32, #tpu.memory_space<vmem>>, vector<32x17xf32>
    tpu.vector_store %arg5[%c0_206, %c17], %233 {strides = array<i32>} : memref<448x136xf32, #tpu.memory_space<vmem>>, vector<32x17xf32>,
    %c0_207 = arith.constant 0 : index
    %c1_208 = arith.constant 1 : index
    %235 = vector.load %arg9[%c0_207, %c1_208] : memref<32x38xf32, #tpu.memory_space<vmem>>, vector<32x17xf32>
    %c32 = arith.constant 32 : index
    %c0_209 = arith.constant 0 : index
    %236 = vector.load %arg5[%c32, %c0_209] : memref<448x136xf32, #tpu.memory_space<vmem>>, vector<32x17xf32>
    tpu.vector_store %arg5[%c32, %c0_209], %235 {strides = array<i32>} : memref<448x136xf32, #tpu.memory_space<vmem>>, vector<32x17xf32>,
    %c0_210 = arith.constant 0 : index
    %c20_211 = arith.constant 20 : index
    %237 = vector.load %arg9[%c0_210, %c20_211] : memref<32x38xf32, #tpu.memory_space<vmem>>, vector<32x17xf32>
    %c32_212 = arith.constant 32 : index
    %c17_213 = arith.constant 17 : index
    %238 = vector.load %arg5[%c32_212, %c17_213] : memref<448x136xf32, #tpu.memory_space<vmem>>, vector<32x17xf32>
    tpu.vector_store %arg5[%c32_212, %c17_213], %237 {strides = array<i32>} : memref<448x136xf32, #tpu.memory_space<vmem>>, vector<32x17xf32>,
    %c0_214 = arith.constant 0 : index
    %c2_215 = arith.constant 2 : index
    %239 = vector.load %arg9[%c0_214, %c2_215] : memref<32x38xf32, #tpu.memory_space<vmem>>, vector<32x17xf32>
    %c64_216 = arith.constant 64 : index
    %c0_217 = arith.constant 0 : index
    %240 = vector.load %arg5[%c64_216, %c0_217] : memref<448x136xf32, #tpu.memory_space<vmem>>, vector<32x17xf32>
    tpu.vector_store %arg5[%c64_216, %c0_217], %239 {strides = array<i32>} : memref<448x136xf32, #tpu.memory_space<vmem>>, vector<32x17xf32>,
    %c0_218 = arith.constant 0 : index
    %c21 = arith.constant 21 : index
    %241 = vector.load %arg9[%c0_218, %c21] : memref<32x38xf32, #tpu.memory_space<vmem>>, vector<32x17xf32>
    %c64_219 = arith.constant 64 : index
    %c17_220 = arith.constant 17 : index
    %242 = vector.load %arg5[%c64_219, %c17_220] : memref<448x136xf32, #tpu.memory_space<vmem>>, vector<32x17xf32>
    tpu.vector_store %arg5[%c64_219, %c17_220], %241 {strides = array<i32>} : memref<448x136xf32, #tpu.memory_space<vmem>>, vector<32x17xf32>,
    %c0_221 = arith.constant 0 : index
    %c1024 = arith.constant 1024 : index
    %243 = vector.load %arg1[%c0_221, %c1024] : memref<64x1408xbf16, #tpu.memory_space<vmem>>, vector<32x96xbf16>
    %c0_222 = arith.constant 0 : index
    %c0_223 = arith.constant 0 : index
    %244 = vector.load %arg5[%c0_222, %c0_223] : memref<448x136xf32, #tpu.memory_space<vmem>>, vector<96x34xf32>
    %245 = arith.truncf %244 : vector<96x34xf32> to vector<96x34xbf16>
    %cst_224 = arith.constant dense<0.000000e+00> : vector<32x34xf32>
    %246 = tpu.matmul %243, %245, %cst_224 {dimension_numbers = #tpu.dot_dimension_numbers<[1], [0], [0], [1], [0, 0, 1, 1], [], []>} : vector<32x96xbf16>, vector<96x34xbf16>, vector<32x34xf32> -> vector<32x34xf32>
    %c0_225 = arith.constant 0 : index
    %c9 = arith.constant 9 : index
    %247 = vector.load %arg2[%c0_225, %c9] : memref<64x18xf32, #tpu.memory_space<vmem>>, vector<32x1xf32>
    %248 = vector.broadcast %247 : vector<32x1xf32> to vector<32x34xf32>
    %249 = arith.addf %246, %248 : vector<32x34xf32>
    %cst_226 = arith.constant dense<0.000000e+00> : vector<32xf32>
    %250 = vector.multi_reduction <add>, %249, %cst_226 [1] : vector<32x34xf32> to vector<32xf32>
    %251 = vector.shape_cast %250 : vector<32xf32> to vector<32x1xf32>
    %cst_227 = arith.constant 3.400000e+01 : f32
    %252 = vector.broadcast %cst_227 : f32 to vector<32x1xf32>
    %253 = arith.divf %251, %252 : vector<32x1xf32>
    %254 = vector.broadcast %253 : vector<32x1xf32> to vector<32x34xf32>
    %255 = arith.subf %249, %254 : vector<32x34xf32>
    %256 = arith.mulf %255, %255 : vector<32x34xf32>
    %cst_228 = arith.constant dense<0.000000e+00> : vector<32xf32>
    %257 = vector.multi_reduction <add>, %256, %cst_228 [1] : vector<32x34xf32> to vector<32xf32>
    %258 = vector.shape_cast %257 : vector<32xf32> to vector<32x1xf32>
    %cst_229 = arith.constant 3.400000e+01 : f32
    %259 = vector.broadcast %cst_229 : f32 to vector<32x1xf32>
    %260 = arith.divf %258, %259 : vector<32x1xf32>
    %c0_230 = arith.constant 0 : index
    %c10 = arith.constant 10 : index
    %261 = vector.load %arg2[%c0_230, %c10] : memref<64x18xf32, #tpu.memory_space<vmem>>, vector<32x1xf32>
    %c0_231 = arith.constant 0 : index
    %c11 = arith.constant 11 : index
    %262 = vector.load %arg2[%c0_231, %c11] : memref<64x18xf32, #tpu.memory_space<vmem>>, vector<32x1xf32>
    %cst_232 = arith.constant 9.99999974E-6 : f32
    %263 = vector.broadcast %cst_232 : f32 to vector<32x1xf32>
    %264 = arith.addf %260, %263 : vector<32x1xf32>
    %265 = math.rsqrt %264 : vector<32x1xf32>
    %266 = arith.mulf %261, %265 : vector<32x1xf32>
    %267 = vector.broadcast %266 : vector<32x1xf32> to vector<32x34xf32>
    %268 = arith.mulf %255, %267 : vector<32x34xf32>
    %269 = vector.broadcast %262 : vector<32x1xf32> to vector<32x34xf32>
    %270 = arith.addf %268, %269 : vector<32x34xf32>
    %cst_233 = arith.constant 0.000000e+00 : f32
    %271 = vector.broadcast %cst_233 : f32 to vector<32x34xf32>
    %272 = arith.maximumf %270, %271 : vector<32x34xf32>
    %273 = vector.extract_strided_slice %272 {offsets = [0, 0], sizes = [32, 17], strides = [1, 1]} : vector<32x34xf32> to vector<32x17xf32>
    %c0_234 = arith.constant 0 : index
    %c1_235 = arith.constant 1 : index
    %274 = vector.load %arg10[%c0_234, %c1_235] : memref<32x38xf32, #tpu.memory_space<vmem>>, vector<32x17xf32>
    tpu.vector_store %arg10[%c0_234, %c1_235], %273 {strides = array<i32>} : memref<32x38xf32, #tpu.memory_space<vmem>>, vector<32x17xf32>,
    %275 = vector.extract_strided_slice %272 {offsets = [0, 17], sizes = [32, 17], strides = [1, 1]} : vector<32x34xf32> to vector<32x17xf32>
    %c0_236 = arith.constant 0 : index
    %c20_237 = arith.constant 20 : index
    %276 = vector.load %arg10[%c0_236, %c20_237] : memref<32x38xf32, #tpu.memory_space<vmem>>, vector<32x17xf32>
    tpu.vector_store %arg10[%c0_236, %c20_237], %275 {strides = array<i32>} : memref<32x38xf32, #tpu.memory_space<vmem>>, vector<32x17xf32>,
    %c0_238 = arith.constant 0 : index
    %c0_239 = arith.constant 0 : index
    %277 = vector.load %arg10[%c0_238, %c0_239] : memref<32x38xf32, #tpu.memory_space<vmem>>, vector<32x17xf32>
    %c0_240 = arith.constant 0 : index
    %c0_241 = arith.constant 0 : index
    %278 = vector.load %arg5[%c0_240, %c0_241] : memref<448x136xf32, #tpu.memory_space<vmem>>, vector<32x17xf32>
    tpu.vector_store %arg5[%c0_240, %c0_241], %277 {strides = array<i32>} : memref<448x136xf32, #tpu.memory_space<vmem>>, vector<32x17xf32>,
    %c0_242 = arith.constant 0 : index
    %c19_243 = arith.constant 19 : index
    %279 = vector.load %arg10[%c0_242, %c19_243] : memref<32x38xf32, #tpu.memory_space<vmem>>, vector<32x17xf32>
    %c0_244 = arith.constant 0 : index
    %c17_245 = arith.constant 17 : index
    %280 = vector.load %arg5[%c0_244, %c17_245] : memref<448x136xf32, #tpu.memory_space<vmem>>, vector<32x17xf32>
    tpu.vector_store %arg5[%c0_244, %c17_245], %279 {strides = array<i32>} : memref<448x136xf32, #tpu.memory_space<vmem>>, vector<32x17xf32>,
    %c0_246 = arith.constant 0 : index
    %c1_247 = arith.constant 1 : index
    %281 = vector.load %arg10[%c0_246, %c1_247] : memref<32x38xf32, #tpu.memory_space<vmem>>, vector<32x17xf32>
    %c32_248 = arith.constant 32 : index
    %c0_249 = arith.constant 0 : index
    %282 = vector.load %arg5[%c32_248, %c0_249] : memref<448x136xf32, #tpu.memory_space<vmem>>, vector<32x17xf32>
    tpu.vector_store %arg5[%c32_248, %c0_249], %281 {strides = array<i32>} : memref<448x136xf32, #tpu.memory_space<vmem>>, vector<32x17xf32>,
    %c0_250 = arith.constant 0 : index
    %c20_251 = arith.constant 20 : index
    %283 = vector.load %arg10[%c0_250, %c20_251] : memref<32x38xf32, #tpu.memory_space<vmem>>, vector<32x17xf32>
    %c32_252 = arith.constant 32 : index
    %c17_253 = arith.constant 17 : index
    %284 = vector.load %arg5[%c32_252, %c17_253] : memref<448x136xf32, #tpu.memory_space<vmem>>, vector<32x17xf32>
    tpu.vector_store %arg5[%c32_252, %c17_253], %283 {strides = array<i32>} : memref<448x136xf32, #tpu.memory_space<vmem>>, vector<32x17xf32>,
    %c0_254 = arith.constant 0 : index
    %c2_255 = arith.constant 2 : index
    %285 = vector.load %arg10[%c0_254, %c2_255] : memref<32x38xf32, #tpu.memory_space<vmem>>, vector<32x17xf32>
    %c64_256 = arith.constant 64 : index
    %c0_257 = arith.constant 0 : index
    %286 = vector.load %arg5[%c64_256, %c0_257] : memref<448x136xf32, #tpu.memory_space<vmem>>, vector<32x17xf32>
    tpu.vector_store %arg5[%c64_256, %c0_257], %285 {strides = array<i32>} : memref<448x136xf32, #tpu.memory_space<vmem>>, vector<32x17xf32>,
    %c0_258 = arith.constant 0 : index
    %c21_259 = arith.constant 21 : index
    %287 = vector.load %arg10[%c0_258, %c21_259] : memref<32x38xf32, #tpu.memory_space<vmem>>, vector<32x17xf32>
    %c64_260 = arith.constant 64 : index
    %c17_261 = arith.constant 17 : index
    %288 = vector.load %arg5[%c64_260, %c17_261] : memref<448x136xf32, #tpu.memory_space<vmem>>, vector<32x17xf32>
    tpu.vector_store %arg5[%c64_260, %c17_261], %287 {strides = array<i32>} : memref<448x136xf32, #tpu.memory_space<vmem>>, vector<32x17xf32>,
    %c0_262 = arith.constant 0 : index
    %c1152 = arith.constant 1152 : index
    %289 = vector.load %arg1[%c0_262, %c1152] : memref<64x1408xbf16, #tpu.memory_space<vmem>>, vector<16x96xbf16>
    %c0_263 = arith.constant 0 : index
    %c0_264 = arith.constant 0 : index
    %290 = vector.load %arg5[%c0_263, %c0_264] : memref<448x136xf32, #tpu.memory_space<vmem>>, vector<96x34xf32>
    %291 = arith.truncf %290 : vector<96x34xf32> to vector<96x34xbf16>
    %cst_265 = arith.constant dense<0.000000e+00> : vector<16x34xf32>
    %292 = tpu.matmul %289, %291, %cst_265 {dimension_numbers = #tpu.dot_dimension_numbers<[1], [0], [0], [1], [0, 0, 1, 1], [], []>} : vector<16x96xbf16>, vector<96x34xbf16>, vector<16x34xf32> -> vector<16x34xf32>
    %293 = tpu.iota {dimensions = array<i32: 0>} : vector<34x18xi32>
    %294 = tpu.iota {dimensions = array<i32: 1>} : vector<34x18xi32>
    %c0_i32_266 = arith.constant 0 : i32
    %295 = vector.broadcast %c0_i32_266 : i32 to vector<34x18xi32>
    %296 = arith.subi %294, %295 : vector<34x18xi32>
    %c0_i32_267 = arith.constant 0 : i32
    %297 = vector.broadcast %c0_i32_267 : i32 to vector<34x18xi32>
    %298 = arith.cmpi sge, %296, %297 : vector<34x18xi32>
    %c9_i32 = arith.constant 9 : i32
    %299 = vector.broadcast %c9_i32 : i32 to vector<34x18xi32>
    %300 = arith.cmpi slt, %296, %299 : vector<34x18xi32>
    %301 = arith.andi %298, %300 : vector<34x18xi1>
    %c2_i32_268 = arith.constant 2 : i32
    %302 = vector.broadcast %c2_i32_268 : i32 to vector<34x18xi32>
    %303 = arith.muli %302, %296 : vector<34x18xi32>
    %c0_i32_269 = arith.constant 0 : i32
    %304 = vector.broadcast %c0_i32_269 : i32 to vector<34x18xi32>
    %305 = arith.addi %304, %303 : vector<34x18xi32>
    %306 = arith.cmpi eq, %293, %305 : vector<34x18xi32>
    %307 = arith.andi %301, %306 : vector<34x18xi1>
    %c9_i32_270 = arith.constant 9 : i32
    %308 = vector.broadcast %c9_i32_270 : i32 to vector<34x18xi32>
    %309 = arith.subi %294, %308 : vector<34x18xi32>
    %c0_i32_271 = arith.constant 0 : i32
    %310 = vector.broadcast %c0_i32_271 : i32 to vector<34x18xi32>
    %311 = arith.cmpi sge, %309, %310 : vector<34x18xi32>
    %c9_i32_272 = arith.constant 9 : i32
    %312 = vector.broadcast %c9_i32_272 : i32 to vector<34x18xi32>
    %313 = arith.cmpi slt, %309, %312 : vector<34x18xi32>
    %314 = arith.andi %311, %313 : vector<34x18xi1>
    %c2_i32_273 = arith.constant 2 : i32
    %315 = vector.broadcast %c2_i32_273 : i32 to vector<34x18xi32>
    %316 = arith.muli %315, %309 : vector<34x18xi32>
    %c17_i32_274 = arith.constant 17 : i32
    %317 = vector.broadcast %c17_i32_274 : i32 to vector<34x18xi32>
    %318 = arith.addi %317, %316 : vector<34x18xi32>
    %319 = arith.cmpi eq, %293, %318 : vector<34x18xi32>
    %320 = arith.andi %314, %319 : vector<34x18xi1>
    %321 = arith.ori %307, %320 : vector<34x18xi1>
    %322 = arith.extui %321 : vector<34x18xi1> to vector<34x18xi32>
    %323 = arith.sitofp %322 : vector<34x18xi32> to vector<34x18xf32>
    %cst_275 = arith.constant dense<0.000000e+00> : vector<16x18xf32>
    %324 = tpu.matmul %292, %323, %cst_275 {dimension_numbers = #tpu.dot_dimension_numbers<[1], [0], [0], [1], [0, 0, 1, 1], [], []>} : vector<16x34xf32>, vector<34x18xf32>, vector<16x18xf32> -> vector<16x18xf32>
    %c0_276 = arith.constant 0 : index
    %c12 = arith.constant 12 : index
    %325 = vector.load %arg2[%c0_276, %c12] : memref<64x18xf32, #tpu.memory_space<vmem>>, vector<16x1xf32>
    %326 = vector.broadcast %325 : vector<16x1xf32> to vector<16x18xf32>
    %327 = arith.addf %324, %326 : vector<16x18xf32>
    %cst_277 = arith.constant dense<0.000000e+00> : vector<16xf32>
    %328 = vector.multi_reduction <add>, %327, %cst_277 [1] : vector<16x18xf32> to vector<16xf32>
    %329 = vector.shape_cast %328 : vector<16xf32> to vector<16x1xf32>
    %cst_278 = arith.constant 1.800000e+01 : f32
    %330 = vector.broadcast %cst_278 : f32 to vector<16x1xf32>
    %331 = arith.divf %329, %330 : vector<16x1xf32>
    %332 = vector.broadcast %331 : vector<16x1xf32> to vector<16x18xf32>
    %333 = arith.subf %327, %332 : vector<16x18xf32>
    %334 = arith.mulf %333, %333 : vector<16x18xf32>
    %cst_279 = arith.constant dense<0.000000e+00> : vector<16xf32>
    %335 = vector.multi_reduction <add>, %334, %cst_279 [1] : vector<16x18xf32> to vector<16xf32>
    %336 = vector.shape_cast %335 : vector<16xf32> to vector<16x1xf32>
    %cst_280 = arith.constant 1.800000e+01 : f32
    %337 = vector.broadcast %cst_280 : f32 to vector<16x1xf32>
    %338 = arith.divf %336, %337 : vector<16x1xf32>
    %c0_281 = arith.constant 0 : index
    %c13 = arith.constant 13 : index
    %339 = vector.load %arg2[%c0_281, %c13] : memref<64x18xf32, #tpu.memory_space<vmem>>, vector<16x1xf32>
    %c0_282 = arith.constant 0 : index
    %c14 = arith.constant 14 : index
    %340 = vector.load %arg2[%c0_282, %c14] : memref<64x18xf32, #tpu.memory_space<vmem>>, vector<16x1xf32>
    %cst_283 = arith.constant 9.99999974E-6 : f32
    %341 = vector.broadcast %cst_283 : f32 to vector<16x1xf32>
    %342 = arith.addf %338, %341 : vector<16x1xf32>
    %343 = math.rsqrt %342 : vector<16x1xf32>
    %344 = arith.mulf %339, %343 : vector<16x1xf32>
    %345 = vector.broadcast %344 : vector<16x1xf32> to vector<16x18xf32>
    %346 = arith.mulf %333, %345 : vector<16x18xf32>
    %347 = vector.broadcast %340 : vector<16x1xf32> to vector<16x18xf32>
    %348 = arith.addf %346, %347 : vector<16x18xf32>
    %cst_284 = arith.constant 0.000000e+00 : f32
    %349 = vector.broadcast %cst_284 : f32 to vector<16x18xf32>
    %350 = arith.maximumf %348, %349 : vector<16x18xf32>
    %351 = vector.extract_strided_slice %350 {offsets = [0, 0], sizes = [16, 9], strides = [1, 1]} : vector<16x18xf32> to vector<16x9xf32>
    %c0_285 = arith.constant 0 : index
    %c1_286 = arith.constant 1 : index
    %352 = vector.load %arg11[%c0_285, %c1_286] : memref<16x22xf32, #tpu.memory_space<vmem>>, vector<16x9xf32>
    tpu.vector_store %arg11[%c0_285, %c1_286], %351 {strides = array<i32>} : memref<16x22xf32, #tpu.memory_space<vmem>>, vector<16x9xf32>,
    %353 = vector.extract_strided_slice %350 {offsets = [0, 9], sizes = [16, 9], strides = [1, 1]} : vector<16x18xf32> to vector<16x9xf32>
    %c0_287 = arith.constant 0 : index
    %c12_288 = arith.constant 12 : index
    %354 = vector.load %arg11[%c0_287, %c12_288] : memref<16x22xf32, #tpu.memory_space<vmem>>, vector<16x9xf32>
    tpu.vector_store %arg11[%c0_287, %c12_288], %353 {strides = array<i32>} : memref<16x22xf32, #tpu.memory_space<vmem>>, vector<16x9xf32>,
    %c0_289 = arith.constant 0 : index
    %c0_290 = arith.constant 0 : index
    %355 = vector.load %arg11[%c0_289, %c0_290] : memref<16x22xf32, #tpu.memory_space<vmem>>, vector<16x9xf32>
    %c0_291 = arith.constant 0 : index
    %c0_292 = arith.constant 0 : index
    %356 = vector.load %arg5[%c0_291, %c0_292] : memref<448x136xf32, #tpu.memory_space<vmem>>, vector<16x9xf32>
    tpu.vector_store %arg5[%c0_291, %c0_292], %355 {strides = array<i32>} : memref<448x136xf32, #tpu.memory_space<vmem>>, vector<16x9xf32>,
    %c0_293 = arith.constant 0 : index
    %c11_294 = arith.constant 11 : index
    %357 = vector.load %arg11[%c0_293, %c11_294] : memref<16x22xf32, #tpu.memory_space<vmem>>, vector<16x9xf32>
    %c0_295 = arith.constant 0 : index
    %c9_296 = arith.constant 9 : index
    %358 = vector.load %arg5[%c0_295, %c9_296] : memref<448x136xf32, #tpu.memory_space<vmem>>, vector<16x9xf32>
    tpu.vector_store %arg5[%c0_295, %c9_296], %357 {strides = array<i32>} : memref<448x136xf32, #tpu.memory_space<vmem>>, vector<16x9xf32>,
    %c0_297 = arith.constant 0 : index
    %c1_298 = arith.constant 1 : index
    %359 = vector.load %arg11[%c0_297, %c1_298] : memref<16x22xf32, #tpu.memory_space<vmem>>, vector<16x9xf32>
    %c16 = arith.constant 16 : index
    %c0_299 = arith.constant 0 : index
    %360 = vector.load %arg5[%c16, %c0_299] : memref<448x136xf32, #tpu.memory_space<vmem>>, vector<16x9xf32>
    tpu.vector_store %arg5[%c16, %c0_299], %359 {strides = array<i32>} : memref<448x136xf32, #tpu.memory_space<vmem>>, vector<16x9xf32>,
    %c0_300 = arith.constant 0 : index
    %c12_301 = arith.constant 12 : index
    %361 = vector.load %arg11[%c0_300, %c12_301] : memref<16x22xf32, #tpu.memory_space<vmem>>, vector<16x9xf32>
    %c16_302 = arith.constant 16 : index
    %c9_303 = arith.constant 9 : index
    %362 = vector.load %arg5[%c16_302, %c9_303] : memref<448x136xf32, #tpu.memory_space<vmem>>, vector<16x9xf32>
    tpu.vector_store %arg5[%c16_302, %c9_303], %361 {strides = array<i32>} : memref<448x136xf32, #tpu.memory_space<vmem>>, vector<16x9xf32>,
    %c0_304 = arith.constant 0 : index
    %c2_305 = arith.constant 2 : index
    %363 = vector.load %arg11[%c0_304, %c2_305] : memref<16x22xf32, #tpu.memory_space<vmem>>, vector<16x9xf32>
    %c32_306 = arith.constant 32 : index
    %c0_307 = arith.constant 0 : index
    %364 = vector.load %arg5[%c32_306, %c0_307] : memref<448x136xf32, #tpu.memory_space<vmem>>, vector<16x9xf32>
    tpu.vector_store %arg5[%c32_306, %c0_307], %363 {strides = array<i32>} : memref<448x136xf32, #tpu.memory_space<vmem>>, vector<16x9xf32>,
    %c0_308 = arith.constant 0 : index
    %c13_309 = arith.constant 13 : index
    %365 = vector.load %arg11[%c0_308, %c13_309] : memref<16x22xf32, #tpu.memory_space<vmem>>, vector<16x9xf32>
    %c32_310 = arith.constant 32 : index
    %c9_311 = arith.constant 9 : index
    %366 = vector.load %arg5[%c32_310, %c9_311] : memref<448x136xf32, #tpu.memory_space<vmem>>, vector<16x9xf32>
    tpu.vector_store %arg5[%c32_310, %c9_311], %365 {strides = array<i32>} : memref<448x136xf32, #tpu.memory_space<vmem>>, vector<16x9xf32>,
    %c0_312 = arith.constant 0 : index
    %c1280 = arith.constant 1280 : index
    %367 = vector.load %arg1[%c0_312, %c1280] : memref<64x1408xbf16, #tpu.memory_space<vmem>>, vector<8x48xbf16>
    %c0_313 = arith.constant 0 : index
    %c0_314 = arith.constant 0 : index
    %368 = vector.load %arg5[%c0_313, %c0_314] : memref<448x136xf32, #tpu.memory_space<vmem>>, vector<48x18xf32>
    %369 = arith.truncf %368 : vector<48x18xf32> to vector<48x18xbf16>
    %cst_315 = arith.constant dense<0.000000e+00> : vector<8x18xf32>
    %370 = tpu.matmul %367, %369, %cst_315 {dimension_numbers = #tpu.dot_dimension_numbers<[1], [0], [0], [1], [0, 0, 1, 1], [], []>} : vector<8x48xbf16>, vector<48x18xbf16>, vector<8x18xf32> -> vector<8x18xf32>
    %c0_316 = arith.constant 0 : index
    %c15 = arith.constant 15 : index
    %371 = vector.load %arg2[%c0_316, %c15] : memref<64x18xf32, #tpu.memory_space<vmem>>, vector<8x1xf32>
    %372 = vector.broadcast %371 : vector<8x1xf32> to vector<8x18xf32>
    %373 = arith.addf %370, %372 : vector<8x18xf32>
    %cst_317 = arith.constant dense<0.000000e+00> : vector<8xf32>
    %374 = vector.multi_reduction <add>, %373, %cst_317 [1] : vector<8x18xf32> to vector<8xf32>
    %375 = vector.shape_cast %374 : vector<8xf32> to vector<8x1xf32>
    %cst_318 = arith.constant 1.800000e+01 : f32
    %376 = vector.broadcast %cst_318 : f32 to vector<8x1xf32>
    %377 = arith.divf %375, %376 : vector<8x1xf32>
    %378 = vector.broadcast %377 : vector<8x1xf32> to vector<8x18xf32>
    %379 = arith.subf %373, %378 : vector<8x18xf32>
    %380 = arith.mulf %379, %379 : vector<8x18xf32>
    %cst_319 = arith.constant dense<0.000000e+00> : vector<8xf32>
    %381 = vector.multi_reduction <add>, %380, %cst_319 [1] : vector<8x18xf32> to vector<8xf32>
    %382 = vector.shape_cast %381 : vector<8xf32> to vector<8x1xf32>
    %cst_320 = arith.constant 1.800000e+01 : f32
    %383 = vector.broadcast %cst_320 : f32 to vector<8x1xf32>
    %384 = arith.divf %382, %383 : vector<8x1xf32>
    %c0_321 = arith.constant 0 : index
    %c16_322 = arith.constant 16 : index
    %385 = vector.load %arg2[%c0_321, %c16_322] : memref<64x18xf32, #tpu.memory_space<vmem>>, vector<8x1xf32>
    %c0_323 = arith.constant 0 : index
    %c17_324 = arith.constant 17 : index
    %386 = vector.load %arg2[%c0_323, %c17_324] : memref<64x18xf32, #tpu.memory_space<vmem>>, vector<8x1xf32>
    %cst_325 = arith.constant 9.99999974E-6 : f32
    %387 = vector.broadcast %cst_325 : f32 to vector<8x1xf32>
    %388 = arith.addf %384, %387 : vector<8x1xf32>
    %389 = math.rsqrt %388 : vector<8x1xf32>
    %390 = arith.mulf %385, %389 : vector<8x1xf32>
    %391 = vector.broadcast %390 : vector<8x1xf32> to vector<8x18xf32>
    %392 = arith.mulf %379, %391 : vector<8x18xf32>
    %393 = vector.broadcast %386 : vector<8x1xf32> to vector<8x18xf32>
    %394 = arith.addf %392, %393 : vector<8x18xf32>
    %cst_326 = arith.constant 0.000000e+00 : f32
    %395 = vector.broadcast %cst_326 : f32 to vector<8x18xf32>
    %396 = arith.maximumf %394, %395 : vector<8x18xf32>
    %c0_327 = arith.constant 0 : index
    %c0_328 = arith.constant 0 : index
    %397 = vector.load %arg3[%c0_327, %c0_328] : memref<18x24xf32, #tpu.memory_space<vmem>>, vector<8x8xf32>
    %c0_329 = arith.constant 0 : index
    %c8_330 = arith.constant 8 : index
    %398 = vector.load %arg3[%c0_329, %c8_330] : memref<18x24xf32, #tpu.memory_space<vmem>>, vector<18x16xf32>
    %cst_331 = arith.constant dense<0.000000e+00> : vector<8x16xf32>
    %399 = tpu.matmul %396, %398, %cst_331 {dimension_numbers = #tpu.dot_dimension_numbers<[1], [0], [0], [1], [0, 0, 1, 1], [], []>} : vector<8x18xf32>, vector<18x16xf32>, vector<8x16xf32> -> vector<8x16xf32>
    %cst_332 = arith.constant dense<0.000000e+00> : vector<8x16xf32>
    %400 = tpu.matmul %397, %399, %cst_332 {dimension_numbers = #tpu.dot_dimension_numbers<[1], [0], [0], [1], [0, 0, 1, 1], [], []>} : vector<8x8xf32>, vector<8x16xf32>, vector<8x16xf32> -> vector<8x16xf32>
    %c0_333 = arith.constant 0 : index
    %c0_334 = arith.constant 0 : index
    %401 = vector.load %arg4[%c0_333, %c0_334] : memref<8x16xf32, #tpu.memory_space<vmem>>, vector<8x16xf32>
    tpu.vector_store %arg4[%c0_333, %c0_334], %400 {strides = array<i32>} : memref<8x16xf32, #tpu.memory_space<vmem>>, vector<8x16xf32>,
    return
  }
}

</mosaic_0001>

<llo_original>
// kernel: encoder_forward.1
$region0: #{encoder_forward.1}
  #allocation0 [shape = 'u32[]', space=smem, size = 0x4, offset = 0x4, fixed_abs, tag = 'smem constant byte address 0x4 - core index']
  #allocation1 [shape = 'u32[144,128]{1,0:T(1,128)}', space=vmem, size = 0x12000, scoped, tag = 'internal scratch']
  #allocation2 [shape = 'f32[448,136]{1,0:T(8,128)}', space=vmem, size = 0x70000, scoped, tag = 'scratch operand']
  #allocation3 [shape = 'f32[1,144]{1,0:T(1,128)}', space=vmem, size = 0x400, scoped, tag = 'scratch operand']
  #allocation4 [shape = 'f32[64,148]{1,0:T(8,128)}', space=vmem, size = 0x10000, scoped, tag = 'scratch operand']
  #allocation5 [shape = 'f32[64,76]{1,0:T(8,128)}', space=vmem, size = 0x8000, scoped, tag = 'scratch operand']
  #allocation6 [shape = 'f32[32,38]{1,0:T(8,128)}', space=vmem, size = 0x4000, scoped, tag = 'scratch operand']
  #allocation7 [shape = 'f32[32,38]{1,0:T(8,128)}', space=vmem, size = 0x4000, scoped, tag = 'scratch operand']
  #allocation8 [shape = 'f32[16,22]{1,0:T(8,128)}', space=vmem, size = 0x2000, scoped, tag = 'scratch operand']
  %s0 = inlined_call_operand.vmem [shape: f32[2,1,64], index: 0, kind: input, shape index: {}]
  %s1 = inlined_call_operand.vmem [shape: bf16[64,1408], index: 1, kind: input, shape index: {}]
  %s2 = inlined_call_operand.vmem [shape: f32[64,18], index: 2, kind: input, shape index: {}]
  %s3 = inlined_call_operand.vmem [shape: f32[18,24], index: 3, kind: input, shape index: {}]
  %s4 = inlined_call_operand.vmem [shape: f32[8,16], index: 4, kind: output, shape index: {}]
  %s5 = sld [smem:[#allocation0]]
  $region26: #{encoder_forward.1} parent=0
    _
  %s7 = ssub.s32 1, %s5
  %s8 = scalar_select 0, %s7, %s5
  // Predicated region
  $region2: #{encoder_forward.1} parent=0 // pred_check
    _
  $region3: #{encoder_forward.1} parent=0 // pred_check_branch
    %10 = sbr.rel (0) target = $region5
  $region4: #{encoder_forward.1} parent=0 // pred_region
    _
  $region5: #{encoder_forward.1} parent=0 // pred_fallthru
    _
  // Predicated region
  $region6: #{encoder_forward.1} parent=0 // pred_check
    _
  $region7: #{encoder_forward.1} parent=0 // pred_check_branch
    %12 = sbr.rel (0) target = $region9
  $region8: #{encoder_forward.1} parent=0 // pred_region
    _
  $region9: #{encoder_forward.1} parent=0 // pred_fallthru
    _
  // Predicated region
  $region10: #{encoder_forward.1} parent=0 // pred_check
    _
  $region11: #{encoder_forward.1} parent=0 // pred_check_branch
    %14 = sbr.rel (0) target = $region13
  $region12: #{encoder_forward.1} parent=0 // pred_region
    _
  $region13: #{encoder_forward.1} parent=0 // pred_fallthru
    _
  // Predicated region
  $region14: #{encoder_forward.1} parent=0 // pred_check
    _
  $region15: #{encoder_forward.1} parent=0 // pred_check_branch
    %16 = sbr.rel (0) target = $region17
  $region16: #{encoder_forward.1} parent=0 // pred_region
    _
  $region17: #{encoder_forward.1} parent=0 // pred_fallthru
    _
  %v18 = vlaneseq
  %vm19 = vcmp.ge.s32.totalorder %v18, 0
  %vm20 = vcmp.lt.s32.totalorder %v18, 144
  %vm21 = vmand %vm19, %vm20
  %22 = vst.msk [vmem:[#allocation3] sm:$0x3] %vm21, 0.0
  %23 = vst [vmem:[#allocation4] sm:$0xff] 0.0
  %vm24 = vcmask 162816
  %25 = vst.msk [vmem:[#allocation4 + $0x8] sm:$0xff] %vm24, 0.0
  %26 = vst [vmem:[#allocation4 + $0x10] sm:$0xff] 0.0
  %27 = vst.msk [vmem:[#allocation4 + $0x18] sm:$0xff] %vm24, 0.0
  %28 = vst [vmem:[#allocation4 + $0x20] sm:$0xff] 0.0
  %29 = vst.msk [vmem:[#allocation4 + $0x28] sm:$0xff] %vm24, 0.0
  %30 = vst [vmem:[#allocation4 + $0x30] sm:$0xff] 0.0
  %31 = vst.msk [vmem:[#allocation4 + $0x38] sm:$0xff] %vm24, 0.0
  %32 = vst [vmem:[#allocation4 + $0x40] sm:$0xff] 0.0
  %33 = vst.msk [vmem:[#allocation4 + $0x48] sm:$0xff] %vm24, 0.0
  %34 = vst [vmem:[#allocation4 + $0x50] sm:$0xff] 0.0
  %35 = vst.msk [vmem:[#allocation4 + $0x58] sm:$0xff] %vm24, 0.0
  %36 = vst [vmem:[#allocation4 + $0x60] sm:$0xff] 0.0
  %37 = vst.msk [vmem:[#allocation4 + $0x68] sm:$0xff] %vm24, 0.0
  %38 = vst [vmem:[#allocation4 + $0x70] sm:$0xff] 0.0
  %39 = vst.msk [vmem:[#allocation4 + $0x78] sm:$0xff] %vm24, 0.0
  %vm40 = vcmask 621568
  %41 = vst.msk [vmem:[#allocation5] sm:$0xff] %vm40, 0.0
  %42 = vst.msk [vmem:[#allocation5 + $0x8] sm:$0xff] %vm40, 0.0
  %43 = vst.msk [vmem:[#allocation5 + $0x10] sm:$0xff] %vm40, 0.0
  %44 = vst.msk [vmem:[#allocation5 + $0x18] sm:$0xff] %vm40, 0.0
  %45 = vst.msk [vmem:[#allocation5 + $0x20] sm:$0xff] %vm40, 0.0
  %46 = vst.msk [vmem:[#allocation5 + $0x28] sm:$0xff] %vm40, 0.0
  %47 = vst.msk [vmem:[#allocation5 + $0x30] sm:$0xff] %vm40, 0.0
  %48 = vst.msk [vmem:[#allocation5 + $0x38] sm:$0xff] %vm40, 0.0
  %vm49 = vcmask 310272
  %50 = vst.msk [vmem:[#allocation6] sm:$0xff] %vm49, 0.0
  %51 = vst.msk [vmem:[#allocation6 + $0x8] sm:$0xff] %vm49, 0.0
  %52 = vst.msk [vmem:[#allocation6 + $0x10] sm:$0xff] %vm49, 0.0
  %53 = vst.msk [vmem:[#allocation6 + $0x18] sm:$0xff] %vm49, 0.0
  %54 = vst.msk [vmem:[#allocation7] sm:$0xff] %vm49, 0.0
  %55 = vst.msk [vmem:[#allocation7 + $0x8] sm:$0xff] %vm49, 0.0
  %56 = vst.msk [vmem:[#allocation7 + $0x10] sm:$0xff] %vm49, 0.0
  %57 = vst.msk [vmem:[#allocation7 + $0x18] sm:$0xff] %vm49, 0.0
  %vm58 = vcmask 179200
  %59 = vst.msk [vmem:[#allocation8] sm:$0xff] %vm58, 0.0
  %60 = vst.msk [vmem:[#allocation8 + $0x8] sm:$0xff] %vm58, 0.0
  %v61 = vld [vmem:[%s0] sm:$0x1]
  %63 = vrot.lane.b32.xlu0 %v61, 4
  %v64 = vpop.permute.xlu0 %63
  %vm66 = vcmp.ge.s32.totalorder %v18, 4
  %vm67 = vcmp.lt.s32.totalorder %v18, 68
  %vm68 = vmand %vm66, %vm67
  %69 = vst.msk [vmem:[#allocation3] sm:$0x1] %vm68, %v64
  %s70 = scalar_lea.vmem %s0, 1
  %v71 = vld [vmem:[%s70] sm:$0x1]
  %73 = vrot.lane.b32.xlu0 %v71, 76
  %v74 = vpop.permute.xlu0 %73
  %v75 = vrot.slane %v74, 7
  %v76 = vsel %vm40, %v75, %v74
  %vm78 = vcmp.ge.s32.totalorder %v18, 76
  %vm79 = vcmp.lt.s32.totalorder %v18, 140
  %vm80 = vmand %vm78, %vm79
  %81 = vst.msk [vmem:[#allocation3] sm:$0x3] %vm80, %v76
  %v82 = vld [vmem:[#allocation3] sm:$0x1]
  %vm83 = vcmask 548864
  %84 = vst.msk [vmem:[#allocation2] sm:$0x1] %vm83, %v82
  %v85 = vld [vmem:[#allocation3] sm:$0x3]
  %v87 = vlaneseq
  %v88 = vshrl.u32 %v87, 7
  %v89 = vsub.s32 0, %v88
  %v90 = vrot.slane %v85, %v89
  %v91 = vlaneseq
  %v92 = vshrl.u32 %v91, 7
  %v93 = vsub.s32 1, %v92
  %v94 = vrot.slane %v85, %v93
  %95 = vrot.lane.b32.xlu0 %v90, 124
  %v96 = vpop.permute.xlu0 %95
  %97 = vrot.lane.b32.xlu0 %v94, 124
  %v98 = vpop.permute.xlu0 %97
  %vm99 = vcmask 1014784
  %v100 = vsel %vm99, %v96, %v98
  %vm103 = vcmask 1040928
  %104 = vst.msk [vmem:[#allocation2] sm:$0x1] %vm103, %v100
  %vm105 = vcmask 57344
  %106 = vst.msk [vmem:[#allocation2 + $0x8] sm:$0x1] %vm105, %v98
  %v107 = vld [vmem:[#allocation3] sm:$0x1]
  %v109 = vlaneseq
  %v110 = vshrl.u32 %v109, 7
  %v111 = vsub.s32 0, %v110
  %v112 = vrot.slane %v107, %v111
  %113 = vrot.lane.b32.xlu0 %v112, 127
  %v114 = vpop.permute.xlu0 %113
  %116 = vst.msk [vmem:[#allocation2 + $0x1] sm:$0x1] %vm83, %v114
  %v117 = vld [vmem:[#allocation3] sm:$0x3]
  %v119 = vlaneseq
  %v120 = vshrl.u32 %v119, 7
  %v121 = vsub.s32 0, %v120
  %v122 = vrot.slane %v117, %v121
  %v123 = vlaneseq
  %v124 = vshrl.u32 %v123, 7
  %v125 = vsub.s32 1, %v124
  %v126 = vrot.slane %v117, %v125
  %127 = vrot.lane.b32.xlu0 %v122, 123
  %v128 = vpop.permute.xlu0 %127
  %129 = vrot.lane.b32.xlu0 %v126, 123
  %v130 = vpop.permute.xlu0 %129
  %vm131 = vcmask 1006592
  %v132 = vsel %vm131, %v128, %v130
  %135 = vst.msk [vmem:[#allocation2 + $0x1] sm:$0x1] %vm103, %v132
  %136 = vst.msk [vmem:[#allocation2 + $0x9] sm:$0x1] %vm105, %v130
  %v137 = vld [vmem:[#allocation3] sm:$0x1]
  %v139 = vlaneseq
  %v140 = vshrl.u32 %v139, 7
  %v141 = vsub.s32 0, %v140
  %v142 = vrot.slane %v137, %v141
  %143 = vrot.lane.b32.xlu0 %v142, 126
  %v144 = vpop.permute.xlu0 %143
  %146 = vst.msk [vmem:[#allocation2 + $0x2] sm:$0x1] %vm83, %v144
  %v147 = vld [vmem:[#allocation3] sm:$0x3]
  %v149 = vlaneseq
  %v150 = vshrl.u32 %v149, 7
  %v151 = vsub.s32 0, %v150
  %v152 = vrot.slane %v147, %v151
  %v153 = vlaneseq
  %v154 = vshrl.u32 %v153, 7
  %v155 = vsub.s32 1, %v154
  %v156 = vrot.slane %v147, %v155
  %157 = vrot.lane.b32.xlu0 %v152, 122
  %v158 = vpop.permute.xlu0 %157
  %159 = vrot.lane.b32.xlu0 %v156, 122
  %v160 = vpop.permute.xlu0 %159
  %vm161 = vcmask 998400
  %v162 = vsel %vm161, %v158, %v160
  %165 = vst.msk [vmem:[#allocation2 + $0x2] sm:$0x1] %vm103, %v162
  %166 = vst.msk [vmem:[#allocation2 + $0xa] sm:$0x1] %vm105, %v160
  %v167 = vld [vmem:[#allocation3] sm:$0x1]
  %v169 = vlaneseq
  %v170 = vshrl.u32 %v169, 7
  %v171 = vsub.s32 0, %v170
  %v172 = vrot.slane %v167, %v171
  %173 = vrot.lane.b32.xlu0 %v172, 125
  %v174 = vpop.permute.xlu0 %173
  %176 = vst.msk [vmem:[#allocation2 + $0x3] sm:$0x1] %vm83, %v174
  %v177 = vld [vmem:[#allocation3] sm:$0x3]
  %v179 = vlaneseq
  %v180 = vshrl.u32 %v179, 7
  %v181 = vsub.s32 0, %v180
  %v182 = vrot.slane %v177, %v181
  %v183 = vlaneseq
  %v184 = vshrl.u32 %v183, 7
  %v185 = vsub.s32 1, %v184
  %v186 = vrot.slane %v177, %v185
  %187 = vrot.lane.b32.xlu0 %v182, 121
  %v188 = vpop.permute.xlu0 %187
  %189 = vrot.lane.b32.xlu0 %v186, 121
  %v190 = vpop.permute.xlu0 %189
  %vm191 = vcmask 990208
  %v192 = vsel %vm191, %v188, %v190
  %195 = vst.msk [vmem:[#allocation2 + $0x3] sm:$0x1] %vm103, %v192
  %196 = vst.msk [vmem:[#allocation2 + $0xb] sm:$0x1] %vm105, %v190
  %v197 = vld [vmem:[#allocation3] sm:$0x1]
  %v199 = vlaneseq
  %v200 = vshrl.u32 %v199, 7
  %v201 = vsub.s32 0, %v200
  %v202 = vrot.slane %v197, %v201
  %203 = vrot.lane.b32.xlu0 %v202, 124
  %v204 = vpop.permute.xlu0 %203
  %206 = vst.msk [vmem:[#allocation2 + $0x4] sm:$0x1] %vm83, %v204
  %v207 = vld [vmem:[#allocation3] sm:$0x3]
  %v209 = vlaneseq
  %v210 = vshrl.u32 %v209, 7
  %v211 = vsub.s32 0, %v210
  %v212 = vrot.slane %v207, %v211
  %v213 = vlaneseq
  %v214 = vshrl.u32 %v213, 7
  %v215 = vsub.s32 1, %v214
  %v216 = vrot.slane %v207, %v215
  %217 = vrot.lane.b32.xlu0 %v212, 120
  %v218 = vpop.permute.xlu0 %217
  %219 = vrot.lane.b32.xlu0 %v216, 120
  %v220 = vpop.permute.xlu0 %219
  %vm221 = vcmask 982016
  %v222 = vsel %vm221, %v218, %v220
  %225 = vst.msk [vmem:[#allocation2 + $0x4] sm:$0x1] %vm103, %v222
  %226 = vst.msk [vmem:[#allocation2 + $0xc] sm:$0x1] %vm105, %v220
  %v227 = vld [vmem:[%s1] sm:$0xf]
  %v228 = vld [vmem:[%s1 + $0x2c] sm:$0xf]
  %v229 = vld [vmem:[%s1 + $0x58] sm:$0xf]
  %v230 = vld [vmem:[%s1 + $0x84] sm:$0xf]
  %v231 = vld [vmem:[%s1 + $0xb0] sm:$0xf]
  %v232 = vld [vmem:[%s1 + $0xdc] sm:$0xf]
  %v233 = vld [vmem:[%s1 + $0x108] sm:$0xf]
  %v234 = vld [vmem:[%s1 + $0x134] sm:$0xf]
  %v235 = vld [vmem:[#allocation2] sm:$0x1f]
  %v236 = vld [vmem:[#allocation2 + $0x8] sm:$0x1f]
  %v237 = vpack.c.bf16 %v235, %v235
  %v238 = vpack.c.bf16 %v236, %v236
  %v239 = vld [vmem:[%s2] sm:$0xff]
  %v240 = vld [vmem:[%s2 + $0x8] sm:$0xff]
  %v241 = vld [vmem:[%s2 + $0x10] sm:$0xff]
  %v242 = vld [vmem:[%s2 + $0x18] sm:$0xff]
  %v243 = vld [vmem:[%s2 + $0x20] sm:$0xff]
  %v244 = vld [vmem:[%s2 + $0x28] sm:$0xff]
  %v245 = vld [vmem:[%s2 + $0x30] sm:$0xff]
  %v246 = vld [vmem:[%s2 + $0x38] sm:$0xff]
  %248 = vset.pattern.permute.xlu0 0
  %249 = vperm.xlu0 %248, %v239
  %v250 = vpop.permute.xlu0 %249
  %253 = vset.pattern.permute.xlu0 0
  %254 = vperm.xlu0 %253, %v240
  %v255 = vpop.permute.xlu0 %254
  %258 = vset.pattern.permute.xlu0 0
  %259 = vperm.xlu0 %258, %v241
  %v260 = vpop.permute.xlu0 %259
  %263 = vset.pattern.permute.xlu0 0
  %264 = vperm.xlu0 %263, %v242
  %v265 = vpop.permute.xlu0 %264
  %268 = vset.pattern.permute.xlu0 0
  %269 = vperm.xlu0 %268, %v243
  %v270 = vpop.permute.xlu0 %269
  %273 = vset.pattern.permute.xlu0 0
  %274 = vperm.xlu0 %273, %v244
  %v275 = vpop.permute.xlu0 %274
  %278 = vset.pattern.permute.xlu0 0
  %279 = vperm.xlu0 %278, %v245
  %v280 = vpop.permute.xlu0 %279
  %283 = vset.pattern.permute.xlu0 0
  %284 = vperm.xlu0 %283, %v246
  %v285 = vpop.permute.xlu0 %284
  %v295 = vunpack.c.l.b16 %v227
  %v296 = vunpack.c.l.b16 %v228
  %v297 = vunpack.c.l.b16 %v229
  %v298 = vunpack.c.l.b16 %v230
  %v299 = vunpack.c.l.b16 %v231
  %v300 = vunpack.c.l.b16 %v232
  %v301 = vunpack.c.l.b16 %v233
  %v302 = vunpack.c.l.b16 %v234
  %v303 = vpack.c.b16 %v296, %v295
  %v304 = vpack.c.b16 %v298, %v297
  %v305 = vpack.c.b16 %v300, %v299
  %v306 = vpack.c.b16 %v302, %v301
  %vm307 = vcmask 39936
  %v309 = vsel %vm307, %v303, 0
  %v312 = vsel %vm307, %v304, 0
  %v315 = vsel %vm307, %v305, 0
  %v318 = vsel %vm307, %v306, 0
  %vm320 = vcmask 1041408
  %vm321 = vcmask 1042432
  %v322 = vsel %vm320, 4294967295, 65535
  %v323 = vsel %vm321, %v322, 0
  %v325 = vand.u32 %v237, %v323
  %v328 = vand.u32 %v238, %v323
  %330 = vmatprep.subr.bf16.mxu0 %v328
  %331 = vmatpush1.bf16.msra.mxu0 %v325
  %332 = vmatprep.subr.bf16.mxu0 0
  %333 = vmatpush1.bf16.msra.mxu0 0
  %334 = vmatprep.subr.bf16.mxu0 0
  %335 = vmatpush1.bf16.msra.mxu0 0
  %336 = vmatprep.subr.bf16.mxu0 0
  %337 = vmatpush1.bf16.msra.mxu0 0
  %338 = vmatprep.subr.bf16.mxu0 0
  %339 = vmatpush1.bf16.msra.mxu0 0
  %340 = vmatprep.subr.bf16.mxu0 0
  %341 = vmatpush1.bf16.msra.mxu0 0
  %342 = vmatprep.subr.bf16.mxu0 0
  %343 = vmatpush1.bf16.msra.mxu0 0
  %344 = vmatprep.subr.bf16.mxu0 0
  %345 = vmatpush1.bf16.msra.mxu0 0
  %346 = vmatprep.subr.bf16.mxu0 0
  %347 = vmatpush1.bf16.msra.mxu0 0
  %348 = vmatprep.subr.bf16.mxu0 0
  %349 = vmatpush1.bf16.msra.mxu0 0
  %350 = vmatprep.subr.bf16.mxu0 0
  %351 = vmatpush1.bf16.msra.mxu0 0
  %352 = vmatprep.subr.bf16.mxu0 0
  %353 = vmatpush1.bf16.msra.mxu0 0
  %354 = vmatprep.subr.bf16.mxu0 0
  %355 = vmatpush1.bf16.msra.mxu0 0
  %356 = vmatprep.subr.bf16.mxu0 0
  %357 = vmatpush1.bf16.msra.mxu0 0
  %358 = vmatprep.subr.bf16.mxu0 0
  %359 = vmatpush1.bf16.msra.mxu0 0
  %360 = vmatprep.subr.bf16.mxu0 0
  %361 = vmatpush1.bf16.msra.mxu0 0
  %362 = vmatprep.mubr.bf16.mxu0 0
  %363 = vmatmul.mubr.bf16.gmra.mrb[0].mxu0 %v309
  %v364 = vpop.f32.mrb[0].mxu0
  %v365 = vadd.f32 %v250, %v364
  %v366 = vpop.f32.mrb[0].mxu0
  %v367 = vadd.f32 %v250, %v366
  %v368 = vpop.f32.mrb[0].mxu0
  %v369 = vadd.f32 %v255, %v368
  %v370 = vpop.f32.mrb[0].mxu0
  %v371 = vadd.f32 %v255, %v370
  %372 = vmatprep.mubr.bf16.mxu0 0
  %373 = vmatmul.mubr.bf16.gmra.mrb[0].mxu0 %v312
  %v374 = vpop.f32.mrb[0].mxu0
  %v375 = vadd.f32 %v260, %v374
  %v376 = vpop.f32.mrb[0].mxu0
  %v377 = vadd.f32 %v260, %v376
  %v378 = vpop.f32.mrb[0].mxu0
  %v379 = vadd.f32 %v265, %v378
  %v380 = vpop.f32.mrb[0].mxu0
  %v381 = vadd.f32 %v265, %v380
  %382 = vmatprep.mubr.bf16.mxu0 0
  %383 = vmatmul.mubr.bf16.gmra.mrb[0].mxu0 %v315
  %v384 = vpop.f32.mrb[0].mxu0
  %v385 = vadd.f32 %v270, %v384
  %v386 = vpop.f32.mrb[0].mxu0
  %v387 = vadd.f32 %v270, %v386
  %v388 = vpop.f32.mrb[0].mxu0
  %v389 = vadd.f32 %v275, %v388
  %v390 = vpop.f32.mrb[0].mxu0
  %v391 = vadd.f32 %v275, %v390
  %392 = vmatprep.mubr.bf16.mxu0 0
  %393 = vmatmul.mubr.bf16.gmra.mrb[0].mxu0 %v318
  %v394 = vpop.f32.mrb[0].mxu0
  %v395 = vadd.f32 %v280, %v394
  %v396 = vpop.f32.mrb[0].mxu0
  %v397 = vadd.f32 %v280, %v396
  %v398 = vpop.f32.mrb[0].mxu0
  %v399 = vadd.f32 %v285, %v398
  %v400 = vpop.f32.mrb[0].mxu0
  %v401 = vadd.f32 %v285, %v400
  %402 = vdwg.mxu0
  %v403 = vmax.f32 %v365, 0.0
  %v404 = vmax.f32 %v367, 0.0
  %v405 = vmax.f32 %v369, 0.0
  %v406 = vmax.f32 %v371, 0.0
  %v407 = vmax.f32 %v375, 0.0
  %v408 = vmax.f32 %v377, 0.0
  %v409 = vmax.f32 %v379, 0.0
  %v410 = vmax.f32 %v381, 0.0
  %v411 = vmax.f32 %v385, 0.0
  %v412 = vmax.f32 %v387, 0.0
  %v413 = vmax.f32 %v389, 0.0
  %v414 = vmax.f32 %v391, 0.0
  %v415 = vmax.f32 %v395, 0.0
  %v416 = vmax.f32 %v397, 0.0
  %v417 = vmax.f32 %v399, 0.0
  %v418 = vmax.f32 %v401, 0.0
  %427 = vrot.lane.b32.xlu0 %v403, 3
  %v428 = vpop.permute.xlu0 %427
  %429 = vrot.lane.b32.xlu0 %v405, 3
  %v430 = vpop.permute.xlu0 %429
  %431 = vrot.lane.b32.xlu0 %v407, 3
  %v432 = vpop.permute.xlu0 %431
  %433 = vrot.lane.b32.xlu0 %v409, 3
  %v434 = vpop.permute.xlu0 %433
  %435 = vrot.lane.b32.xlu0 %v411, 3
  %v436 = vpop.permute.xlu0 %435
  %437 = vrot.lane.b32.xlu0 %v413, 3
  %v438 = vpop.permute.xlu0 %437
  %439 = vrot.lane.b32.xlu0 %v415, 3
  %v440 = vpop.permute.xlu0 %439
  %441 = vrot.lane.b32.xlu0 %v417, 3
  %v442 = vpop.permute.xlu0 %441
  %vm451 = vcmask 580632
  %452 = vst.msk [vmem:[#allocation4] sm:$0xff] %vm451, %v428
  %453 = vst.msk [vmem:[#allocation4 + $0x10] sm:$0xff] %vm451, %v430
  %454 = vst.msk [vmem:[#allocation4 + $0x20] sm:$0xff] %vm451, %v432
  %455 = vst.msk [vmem:[#allocation4 + $0x30] sm:$0xff] %vm451, %v434
  %456 = vst.msk [vmem:[#allocation4 + $0x40] sm:$0xff] %vm451, %v436
  %457 = vst.msk [vmem:[#allocation4 + $0x50] sm:$0xff] %vm451, %v438
  %458 = vst.msk [vmem:[#allocation4 + $0x60] sm:$0xff] %vm451, %v440
  %459 = vst.msk [vmem:[#allocation4 + $0x70] sm:$0xff] %vm451, %v442
  %468 = vrot.lane.b32.xlu0 %v403, 9
  %v469 = vpop.permute.xlu0 %468
  %470 = vrot.lane.b32.xlu0 %v404, 9
  %v471 = vpop.permute.xlu0 %470
  %472 = vrot.lane.b32.xlu0 %v405, 9
  %v473 = vpop.permute.xlu0 %472
  %474 = vrot.lane.b32.xlu0 %v406, 9
  %v475 = vpop.permute.xlu0 %474
  %476 = vrot.lane.b32.xlu0 %v407, 9
  %v477 = vpop.permute.xlu0 %476
  %478 = vrot.lane.b32.xlu0 %v408, 9
  %v479 = vpop.permute.xlu0 %478
  %480 = vrot.lane.b32.xlu0 %v409, 9
  %v481 = vpop.permute.xlu0 %480
  %482 = vrot.lane.b32.xlu0 %v410, 9
  %v483 = vpop.permute.xlu0 %482
  %484 = vrot.lane.b32.xlu0 %v411, 9
  %v485 = vpop.permute.xlu0 %484
  %486 = vrot.lane.b32.xlu0 %v412, 9
  %v487 = vpop.permute.xlu0 %486
  %488 = vrot.lane.b32.xlu0 %v413, 9
  %v489 = vpop.permute.xlu0 %488
  %490 = vrot.lane.b32.xlu0 %v414, 9
  %v491 = vpop.permute.xlu0 %490
  %492 = vrot.lane.b32.xlu0 %v415, 9
  %v493 = vpop.permute.xlu0 %492
  %494 = vrot.lane.b32.xlu0 %v416, 9
  %v495 = vpop.permute.xlu0 %494
  %496 = vrot.lane.b32.xlu0 %v417, 9
  %v497 = vpop.permute.xlu0 %496
  %498 = vrot.lane.b32.xlu0 %v418, 9
  %v499 = vpop.permute.xlu0 %498
  %vm500 = vcmask 72704
  %v501 = vsel %vm500, %v469, %v471
  %v502 = vsel %vm500, %v473, %v475
  %v503 = vsel %vm500, %v477, %v479
  %v504 = vsel %vm500, %v481, %v483
  %v505 = vsel %vm500, %v485, %v487
  %v506 = vsel %vm500, %v489, %v491
  %v507 = vsel %vm500, %v493, %v495
  %v508 = vsel %vm500, %v497, %v499
  %vm525 = vcmask 1048168
  %526 = vst.msk [vmem:[#allocation4] sm:$0xff] %vm525, %v469
  %vm527 = vcmask 138240
  %528 = vst.msk [vmem:[#allocation4 + $0x8] sm:$0xff] %vm527, %v501
  %529 = vst.msk [vmem:[#allocation4 + $0x10] sm:$0xff] %vm525, %v473
  %530 = vst.msk [vmem:[#allocation4 + $0x18] sm:$0xff] %vm527, %v502
  %531 = vst.msk [vmem:[#allocation4 + $0x20] sm:$0xff] %vm525, %v477
  %532 = vst.msk [vmem:[#allocation4 + $0x28] sm:$0xff] %vm527, %v503
  %533 = vst.msk [vmem:[#allocation4 + $0x30] sm:$0xff] %vm525, %v481
  %534 = vst.msk [vmem:[#allocation4 + $0x38] sm:$0xff] %vm527, %v504
  %535 = vst.msk [vmem:[#allocation4 + $0x40] sm:$0xff] %vm525, %v485
  %536 = vst.msk [vmem:[#allocation4 + $0x48] sm:$0xff] %vm527, %v505
  %537 = vst.msk [vmem:[#allocation4 + $0x50] sm:$0xff] %vm525, %v489
  %538 = vst.msk [vmem:[#allocation4 + $0x58] sm:$0xff] %vm527, %v506
  %539 = vst.msk [vmem:[#allocation4 + $0x60] sm:$0xff] %vm525, %v493
  %540 = vst.msk [vmem:[#allocation4 + $0x68] sm:$0xff] %vm527, %v507
  %541 = vst.msk [vmem:[#allocation4 + $0x70] sm:$0xff] %vm525, %v497
  %542 = vst.msk [vmem:[#allocation4 + $0x78] sm:$0xff] %vm527, %v508
  %v543 = vld [vmem:[#allocation4] sm:$0xff]
  %v544 = vld [vmem:[#allocation4 + $0x10] sm:$0xff]
  %v545 = vld [vmem:[#allocation4 + $0x20] sm:$0xff]
  %v546 = vld [vmem:[#allocation4 + $0x30] sm:$0xff]
  %v547 = vld [vmem:[#allocation4 + $0x40] sm:$0xff]
  %v548 = vld [vmem:[#allocation4 + $0x50] sm:$0xff]
  %v549 = vld [vmem:[#allocation4 + $0x60] sm:$0xff]
  %v550 = vld [vmem:[#allocation4 + $0x70] sm:$0xff]
  %vm551 = vcmask 556032
  %552 = vst.msk [vmem:[#allocation2] sm:$0xff] %vm551, %v543
  %553 = vst.msk [vmem:[#allocation2 + $0x10] sm:$0xff] %vm551, %v544
  %554 = vst.msk [vmem:[#allocation2 + $0x20] sm:$0xff] %vm551, %v545
  %555 = vst.msk [vmem:[#allocation2 + $0x30] sm:$0xff] %vm551, %v546
  %556 = vst.msk [vmem:[#allocation2 + $0x40] sm:$0xff] %vm551, %v547
  %557 = vst.msk [vmem:[#allocation2 + $0x50] sm:$0xff] %vm551, %v548
  %558 = vst.msk [vmem:[#allocation2 + $0x60] sm:$0xff] %vm551, %v549
  %559 = vst.msk [vmem:[#allocation2 + $0x70] sm:$0xff] %vm551, %v550
  %v560 = vld [vmem:[#allocation4] sm:$0xff]
  %v561 = vld [vmem:[#allocation4 + $0x8] sm:$0xff]
  %v562 = vld [vmem:[#allocation4 + $0x10] sm:$0xff]
  %v563 = vld [vmem:[#allocation4 + $0x18] sm:$0xff]
  %v564 = vld [vmem:[#allocation4 + $0x20] sm:$0xff]
  %v565 = vld [vmem:[#allocation4 + $0x28] sm:$0xff]
  %v566 = vld [vmem:[#allocation4 + $0x30] sm:$0xff]
  %v567 = vld [vmem:[#allocation4 + $0x38] sm:$0xff]
  %v568 = vld [vmem:[#allocation4 + $0x40] sm:$0xff]
  %v569 = vld [vmem:[#allocation4 + $0x48] sm:$0xff]
  %v570 = vld [vmem:[#allocation4 + $0x50] sm:$0xff]
  %v571 = vld [vmem:[#allocation4 + $0x58] sm:$0xff]
  %v572 = vld [vmem:[#allocation4 + $0x60] sm:$0xff]
  %v573 = vld [vmem:[#allocation4 + $0x68] sm:$0xff]
  %v574 = vld [vmem:[#allocation4 + $0x70] sm:$0xff]
  %v575 = vld [vmem:[#allocation4 + $0x78] sm:$0xff]
  %592 = vrot.lane.b32.xlu0 %v560, 122
  %v593 = vpop.permute.xlu0 %592
  %594 = vrot.lane.b32.xlu0 %v561, 122
  %v595 = vpop.permute.xlu0 %594
  %596 = vrot.lane.b32.xlu0 %v562, 122
  %v597 = vpop.permute.xlu0 %596
  %598 = vrot.lane.b32.xlu0 %v563, 122
  %v599 = vpop.permute.xlu0 %598
  %600 = vrot.lane.b32.xlu0 %v564, 122
  %v601 = vpop.permute.xlu0 %600
  %602 = vrot.lane.b32.xlu0 %v565, 122
  %v603 = vpop.permute.xlu0 %602
  %604 = vrot.lane.b32.xlu0 %v566, 122
  %v605 = vpop.permute.xlu0 %604
  %606 = vrot.lane.b32.xlu0 %v567, 122
  %v607 = vpop.permute.xlu0 %606
  %608 = vrot.lane.b32.xlu0 %v568, 122
  %v609 = vpop.permute.xlu0 %608
  %610 = vrot.lane.b32.xlu0 %v569, 122
  %v611 = vpop.permute.xlu0 %610
  %612 = vrot.lane.b32.xlu0 %v570, 122
  %v613 = vpop.permute.xlu0 %612
  %614 = vrot.lane.b32.xlu0 %v571, 122
  %v615 = vpop.permute.xlu0 %614
  %616 = vrot.lane.b32.xlu0 %v572, 122
  %v617 = vpop.permute.xlu0 %616
  %618 = vrot.lane.b32.xlu0 %v573, 122
  %v619 = vpop.permute.xlu0 %618
  %620 = vrot.lane.b32.xlu0 %v574, 122
  %v621 = vpop.permute.xlu0 %620
  %622 = vrot.lane.b32.xlu0 %v575, 122
  %v623 = vpop.permute.xlu0 %622
  %v624 = vsel %vm161, %v593, %v595
  %v625 = vsel %vm161, %v597, %v599
  %v626 = vsel %vm161, %v601, %v603
  %v627 = vsel %vm161, %v605, %v607
  %v628 = vsel %vm161, %v609, %v611
  %v629 = vsel %vm161, %v613, %v615
  %v630 = vsel %vm161, %v617, %v619
  %v631 = vsel %vm161, %v621, %v623
  %vm648 = vcmask 1048096
  %649 = vst.msk [vmem:[#allocation2] sm:$0xff] %vm648, %v624
  %vm650 = vcmask 64512
  %651 = vst.msk [vmem:[#allocation2 + $0x8] sm:$0xff] %vm650, %v595
  %652 = vst.msk [vmem:[#allocation2 + $0x10] sm:$0xff] %vm648, %v625
  %653 = vst.msk [vmem:[#allocation2 + $0x18] sm:$0xff] %vm650, %v599
  %654 = vst.msk [vmem:[#allocation2 + $0x20] sm:$0xff] %vm648, %v626
  %655 = vst.msk [vmem:[#allocation2 + $0x28] sm:$0xff] %vm650, %v603
  %656 = vst.msk [vmem:[#allocation2 + $0x30] sm:$0xff] %vm648, %v627
  %657 = vst.msk [vmem:[#allocation2 + $0x38] sm:$0xff] %vm650, %v607
  %658 = vst.msk [vmem:[#allocation2 + $0x40] sm:$0xff] %vm648, %v628
  %659 = vst.msk [vmem:[#allocation2 + $0x48] sm:$0xff] %vm650, %v611
  %660 = vst.msk [vmem:[#allocation2 + $0x50] sm:$0xff] %vm648, %v629
  %661 = vst.msk [vmem:[#allocation2 + $0x58] sm:$0xff] %vm650, %v615
  %662 = vst.msk [vmem:[#allocation2 + $0x60] sm:$0xff] %vm648, %v630
  %663 = vst.msk [vmem:[#allocation2 + $0x68] sm:$0xff] %vm650, %v619
  %664 = vst.msk [vmem:[#allocation2 + $0x70] sm:$0xff] %vm648, %v631
  %665 = vst.msk [vmem:[#allocation2 + $0x78] sm:$0xff] %vm650, %v623
  %v666 = vld [vmem:[#allocation4] sm:$0xff]
  %v667 = vld [vmem:[#allocation4 + $0x10] sm:$0xff]
  %v668 = vld [vmem:[#allocation4 + $0x20] sm:$0xff]
  %v669 = vld [vmem:[#allocation4 + $0x30] sm:$0xff]
  %v670 = vld [vmem:[#allocation4 + $0x40] sm:$0xff]
  %v671 = vld [vmem:[#allocation4 + $0x50] sm:$0xff]
  %v672 = vld [vmem:[#allocation4 + $0x60] sm:$0xff]
  %v673 = vld [vmem:[#allocation4 + $0x70] sm:$0xff]
  %682 = vrot.lane.b32.xlu0 %v666, 127
  %v683 = vpop.permute.xlu0 %682
  %684 = vrot.lane.b32.xlu0 %v667, 127
  %v685 = vpop.permute.xlu0 %684
  %686 = vrot.lane.b32.xlu0 %v668, 127
  %v687 = vpop.permute.xlu0 %686
  %688 = vrot.lane.b32.xlu0 %v669, 127
  %v689 = vpop.permute.xlu0 %688
  %690 = vrot.lane.b32.xlu0 %v670, 127
  %v691 = vpop.permute.xlu0 %690
  %692 = vrot.lane.b32.xlu0 %v671, 127
  %v693 = vpop.permute.xlu0 %692
  %694 = vrot.lane.b32.xlu0 %v672, 127
  %v695 = vpop.permute.xlu0 %694
  %696 = vrot.lane.b32.xlu0 %v673, 127
  %v697 = vpop.permute.xlu0 %696
  %706 = vst.msk [vmem:[#allocation2 + $0x80] sm:$0xff] %vm551, %v683
  %707 = vst.msk [vmem:[#allocation2 + $0x90] sm:$0xff] %vm551, %v685
  %708 = vst.msk [vmem:[#allocation2 + $0xa0] sm:$0xff] %vm551, %v687
  %709 = vst.msk [vmem:[#allocation2 + $0xb0] sm:$0xff] %vm551, %v689
  %710 = vst.msk [vmem:[#allocation2 + $0xc0] sm:$0xff] %vm551, %v691
  %711 = vst.msk [vmem:[#allocation2 + $0xd0] sm:$0xff] %vm551, %v693
  %712 = vst.msk [vmem:[#allocation2 + $0xe0] sm:$0xff] %vm551, %v695
  %713 = vst.msk [vmem:[#allocation2 + $0xf0] sm:$0xff] %vm551, %v697
  %v714 = vld [vmem:[#allocation4] sm:$0xff]
  %v715 = vld [vmem:[#allocation4 + $0x8] sm:$0xff]
  %v716 = vld [vmem:[#allocation4 + $0x10] sm:$0xff]
  %v717 = vld [vmem:[#allocation4 + $0x18] sm:$0xff]
  %v718 = vld [vmem:[#allocation4 + $0x20] sm:$0xff]
  %v719 = vld [vmem:[#allocation4 + $0x28] sm:$0xff]
  %v720 = vld [vmem:[#allocation4 + $0x30] sm:$0xff]
  %v721 = vld [vmem:[#allocation4 + $0x38] sm:$0xff]
  %v722 = vld [vmem:[#allocation4 + $0x40] sm:$0xff]
  %v723 = vld [vmem:[#allocation4 + $0x48] sm:$0xff]
  %v724 = vld [vmem:[#allocation4 + $0x50] sm:$0xff]
  %v725 = vld [vmem:[#allocation4 + $0x58] sm:$0xff]
  %v726 = vld [vmem:[#allocation4 + $0x60] sm:$0xff]
  %v727 = vld [vmem:[#allocation4 + $0x68] sm:$0xff]
  %v728 = vld [vmem:[#allocation4 + $0x70] sm:$0xff]
  %v729 = vld [vmem:[#allocation4 + $0x78] sm:$0xff]
  %746 = vrot.lane.b32.xlu0 %v714, 121
  %v747 = vpop.permute.xlu0 %746
  %748 = vrot.lane.b32.xlu0 %v715, 121
  %v749 = vpop.permute.xlu0 %748
  %750 = vrot.lane.b32.xlu0 %v716, 121
  %v751 = vpop.permute.xlu0 %750
  %752 = vrot.lane.b32.xlu0 %v717, 121
  %v753 = vpop.permute.xlu0 %752
  %754 = vrot.lane.b32.xlu0 %v718, 121
  %v755 = vpop.permute.xlu0 %754
  %756 = vrot.lane.b32.xlu0 %v719, 121
  %v757 = vpop.permute.xlu0 %756
  %758 = vrot.lane.b32.xlu0 %v720, 121
  %v759 = vpop.permute.xlu0 %758
  %760 = vrot.lane.b32.xlu0 %v721, 121
  %v761 = vpop.permute.xlu0 %760
  %762 = vrot.lane.b32.xlu0 %v722, 121
  %v763 = vpop.permute.xlu0 %762
  %764 = vrot.lane.b32.xlu0 %v723, 121
  %v765 = vpop.permute.xlu0 %764
  %766 = vrot.lane.b32.xlu0 %v724, 121
  %v767 = vpop.permute.xlu0 %766
  %768 = vrot.lane.b32.xlu0 %v725, 121
  %v769 = vpop.permute.xlu0 %768
  %770 = vrot.lane.b32.xlu0 %v726, 121
  %v771 = vpop.permute.xlu0 %770
  %772 = vrot.lane.b32.xlu0 %v727, 121
  %v773 = vpop.permute.xlu0 %772
  %774 = vrot.lane.b32.xlu0 %v728, 121
  %v775 = vpop.permute.xlu0 %774
  %776 = vrot.lane.b32.xlu0 %v729, 121
  %v777 = vpop.permute.xlu0 %776
  %v778 = vsel %vm191, %v747, %v749
  %v779 = vsel %vm191, %v751, %v753
  %v780 = vsel %vm191, %v755, %v757
  %v781 = vsel %vm191, %v759, %v761
  %v782 = vsel %vm191, %v763, %v765
  %v783 = vsel %vm191, %v767, %v769
  %v784 = vsel %vm191, %v771, %v773
  %v785 = vsel %vm191, %v775, %v777
  %802 = vst.msk [vmem:[#allocation2 + $0x80] sm:$0xff] %vm648, %v778
  %803 = vst.msk [vmem:[#allocation2 + $0x88] sm:$0xff] %vm650, %v749
  %804 = vst.msk [vmem:[#allocation2 + $0x90] sm:$0xff] %vm648, %v779
  %805 = vst.msk [vmem:[#allocation2 + $0x98] sm:$0xff] %vm650, %v753
  %806 = vst.msk [vmem:[#allocation2 + $0xa0] sm:$0xff] %vm648, %v780
  %807 = vst.msk [vmem:[#allocation2 + $0xa8] sm:$0xff] %vm650, %v757
  %808 = vst.msk [vmem:[#allocation2 + $0xb0] sm:$0xff] %vm648, %v781
  %809 = vst.msk [vmem:[#allocation2 + $0xb8] sm:$0xff] %vm650, %v761
  %810 = vst.msk [vmem:[#allocation2 + $0xc0] sm:$0xff] %vm648, %v782
  %811 = vst.msk [vmem:[#allocation2 + $0xc8] sm:$0xff] %vm650, %v765
  %812 = vst.msk [vmem:[#allocation2 + $0xd0] sm:$0xff] %vm648, %v783
  %813 = vst.msk [vmem:[#allocation2 + $0xd8] sm:$0xff] %vm650, %v769
  %814 = vst.msk [vmem:[#allocation2 + $0xe0] sm:$0xff] %vm648, %v784
  %815 = vst.msk [vmem:[#allocation2 + $0xe8] sm:$0xff] %vm650, %v773
  %816 = vst.msk [vmem:[#allocation2 + $0xf0] sm:$0xff] %vm648, %v785
  %817 = vst.msk [vmem:[#allocation2 + $0xf8] sm:$0xff] %vm650, %v777
  %v818 = vld [vmem:[#allocation4] sm:$0xff]
  %v819 = vld [vmem:[#allocation4 + $0x10] sm:$0xff]
  %v820 = vld [vmem:[#allocation4 + $0x20] sm:$0xff]
  %v821 = vld [vmem:[#allocation4 + $0x30] sm:$0xff]
  %v822 = vld [vmem:[#allocation4 + $0x40] sm:$0xff]
  %v823 = vld [vmem:[#allocation4 + $0x50] sm:$0xff]
  %v824 = vld [vmem:[#allocation4 + $0x60] sm:$0xff]
  %v825 = vld [vmem:[#allocation4 + $0x70] sm:$0xff]
  %834 = vrot.lane.b32.xlu0 %v818, 126
  %v835 = vpop.permute.xlu0 %834
  %836 = vrot.lane.b32.xlu0 %v819, 126
  %v837 = vpop.permute.xlu0 %836
  %838 = vrot.lane.b32.xlu0 %v820, 126
  %v839 = vpop.permute.xlu0 %838
  %840 = vrot.lane.b32.xlu0 %v821, 126
  %v841 = vpop.permute.xlu0 %840
  %842 = vrot.lane.b32.xlu0 %v822, 126
  %v843 = vpop.permute.xlu0 %842
  %844 = vrot.lane.b32.xlu0 %v823, 126
  %v845 = vpop.permute.xlu0 %844
  %846 = vrot.lane.b32.xlu0 %v824, 126
  %v847 = vpop.permute.xlu0 %846
  %848 = vrot.lane.b32.xlu0 %v825, 126
  %v849 = vpop.permute.xlu0 %848
  %858 = vst.msk [vmem:[#allocation2 + $0x100] sm:$0xff] %vm551, %v835
  %859 = vst.msk [vmem:[#allocation2 + $0x110] sm:$0xff] %vm551, %v837
  %860 = vst.msk [vmem:[#allocation2 + $0x120] sm:$0xff] %vm551, %v839
  %861 = vst.msk [vmem:[#allocation2 + $0x130] sm:$0xff] %vm551, %v841
  %862 = vst.msk [vmem:[#allocation2 + $0x140] sm:$0xff] %vm551, %v843
  %863 = vst.msk [vmem:[#allocation2 + $0x150] sm:$0xff] %vm551, %v845
  %864 = vst.msk [vmem:[#allocation2 + $0x160] sm:$0xff] %vm551, %v847
  %865 = vst.msk [vmem:[#allocation2 + $0x170] sm:$0xff] %vm551, %v849
  %v866 = vld [vmem:[#allocation4] sm:$0xff]
  %v867 = vld [vmem:[#allocation4 + $0x8] sm:$0xff]
  %v868 = vld [vmem:[#allocation4 + $0x10] sm:$0xff]
  %v869 = vld [vmem:[#allocation4 + $0x18] sm:$0xff]
  %v870 = vld [vmem:[#allocation4 + $0x20] sm:$0xff]
  %v871 = vld [vmem:[#allocation4 + $0x28] sm:$0xff]
  %v872 = vld [vmem:[#allocation4 + $0x30] sm:$0xff]
  %v873 = vld [vmem:[#allocation4 + $0x38] sm:$0xff]
  %v874 = vld [vmem:[#allocation4 + $0x40] sm:$0xff]
  %v875 = vld [vmem:[#allocation4 + $0x48] sm:$0xff]
  %v876 = vld [vmem:[#allocation4 + $0x50] sm:$0xff]
  %v877 = vld [vmem:[#allocation4 + $0x58] sm:$0xff]
  %v878 = vld [vmem:[#allocation4 + $0x60] sm:$0xff]
  %v879 = vld [vmem:[#allocation4 + $0x68] sm:$0xff]
  %v880 = vld [vmem:[#allocation4 + $0x70] sm:$0xff]
  %v881 = vld [vmem:[#allocation4 + $0x78] sm:$0xff]
  %898 = vrot.lane.b32.xlu0 %v866, 120
  %v899 = vpop.permute.xlu0 %898
  %900 = vrot.lane.b32.xlu0 %v867, 120
  %v901 = vpop.permute.xlu0 %900
  %902 = vrot.lane.b32.xlu0 %v868, 120
  %v903 = vpop.permute.xlu0 %902
  %904 = vrot.lane.b32.xlu0 %v869, 120
  %v905 = vpop.permute.xlu0 %904
  %906 = vrot.lane.b32.xlu0 %v870, 120
  %v907 = vpop.permute.xlu0 %906
  %908 = vrot.lane.b32.xlu0 %v871, 120
  %v909 = vpop.permute.xlu0 %908
  %910 = vrot.lane.b32.xlu0 %v872, 120
  %v911 = vpop.permute.xlu0 %910
  %912 = vrot.lane.b32.xlu0 %v873, 120
  %v913 = vpop.permute.xlu0 %912
  %914 = vrot.lane.b32.xlu0 %v874, 120
  %v915 = vpop.permute.xlu0 %914
  %916 = vrot.lane.b32.xlu0 %v875, 120
  %v917 = vpop.permute.xlu0 %916
  %918 = vrot.lane.b32.xlu0 %v876, 120
  %v919 = vpop.permute.xlu0 %918
  %920 = vrot.lane.b32.xlu0 %v877, 120
  %v921 = vpop.permute.xlu0 %920
  %922 = vrot.lane.b32.xlu0 %v878, 120
  %v923 = vpop.permute.xlu0 %922
  %924 = vrot.lane.b32.xlu0 %v879, 120
  %v925 = vpop.permute.xlu0 %924
  %926 = vrot.lane.b32.xlu0 %v880, 120
  %v927 = vpop.permute.xlu0 %926
  %928 = vrot.lane.b32.xlu0 %v881, 120
  %v929 = vpop.permute.xlu0 %928
  %v930 = vsel %vm221, %v899, %v901
  %v931 = vsel %vm221, %v903, %v905
  %v932 = vsel %vm221, %v907, %v909
  %v933 = vsel %vm221, %v911, %v913
  %v934 = vsel %vm221, %v915, %v917
  %v935 = vsel %vm221, %v919, %v921
  %v936 = vsel %vm221, %v923, %v925
  %v937 = vsel %vm221, %v927, %v929
  %954 = vst.msk [vmem:[#allocation2 + $0x100] sm:$0xff] %vm648, %v930
  %955 = vst.msk [vmem:[#allocation2 + $0x108] sm:$0xff] %vm650, %v901
  %956 = vst.msk [vmem:[#allocation2 + $0x110] sm:$0xff] %vm648, %v931
  %957 = vst.msk [vmem:[#allocation2 + $0x118] sm:$0xff] %vm650, %v905
  %958 = vst.msk [vmem:[#allocation2 + $0x120] sm:$0xff] %vm648, %v932
  %959 = vst.msk [vmem:[#allocation2 + $0x128] sm:$0xff] %vm650, %v909
  %960 = vst.msk [vmem:[#allocation2 + $0x130] sm:$0xff] %vm648, %v933
  %961 = vst.msk [vmem:[#allocation2 + $0x138] sm:$0xff] %vm650, %v913
  %962 = vst.msk [vmem:[#allocation2 + $0x140] sm:$0xff] %vm648, %v934
  %963 = vst.msk [vmem:[#allocation2 + $0x148] sm:$0xff] %vm650, %v917
  %964 = vst.msk [vmem:[#allocation2 + $0x150] sm:$0xff] %vm648, %v935
  %965 = vst.msk [vmem:[#allocation2 + $0x158] sm:$0xff] %vm650, %v921
  %966 = vst.msk [vmem:[#allocation2 + $0x160] sm:$0xff] %vm648, %v936
  %967 = vst.msk [vmem:[#allocation2 + $0x168] sm:$0xff] %vm650, %v925
  %968 = vst.msk [vmem:[#allocation2 + $0x170] sm:$0xff] %vm648, %v937
  %969 = vst.msk [vmem:[#allocation2 + $0x178] sm:$0xff] %vm650, %v929
  %v970 = vld [vmem:[#allocation4] sm:$0xff]
  %v971 = vld [vmem:[#allocation4 + $0x10] sm:$0xff]
  %v972 = vld [vmem:[#allocation4 + $0x20] sm:$0xff]
  %v973 = vld [vmem:[#allocation4 + $0x30] sm:$0xff]
  %v974 = vld [vmem:[#allocation4 + $0x40] sm:$0xff]
  %v975 = vld [vmem:[#allocation4 + $0x50] sm:$0xff]
  %v976 = vld [vmem:[#allocation4 + $0x60] sm:$0xff]
  %v977 = vld [vmem:[#allocation4 + $0x70] sm:$0xff]
  %986 = vrot.lane.b32.xlu0 %v970, 125
  %v987 = vpop.permute.xlu0 %986
  %988 = vrot.lane.b32.xlu0 %v971, 125
  %v989 = vpop.permute.xlu0 %988
  %990 = vrot.lane.b32.xlu0 %v972, 125
  %v991 = vpop.permute.xlu0 %990
  %992 = vrot.lane.b32.xlu0 %v973, 125
  %v993 = vpop.permute.xlu0 %992
  %994 = vrot.lane.b32.xlu0 %v974, 125
  %v995 = vpop.permute.xlu0 %994
  %996 = vrot.lane.b32.xlu0 %v975, 125
  %v997 = vpop.permute.xlu0 %996
  %998 = vrot.lane.b32.xlu0 %v976, 125
  %v999 = vpop.permute.xlu0 %998
  %1000 = vrot.lane.b32.xlu0 %v977, 125
  %v1001 = vpop.permute.xlu0 %1000
  %1010 = vst.msk [vmem:[#allocation2 + $0x180] sm:$0xff] %vm551, %v987
  %1011 = vst.msk [vmem:[#allocation2 + $0x190] sm:$0xff] %vm551, %v989
  %1012 = vst.msk [vmem:[#allocation2 + $0x1a0] sm:$0xff] %vm551, %v991
  %1013 = vst.msk [vmem:[#allocation2 + $0x1b0] sm:$0xff] %vm551, %v993
  %1014 = vst.msk [vmem:[#allocation2 + $0x1c0] sm:$0xff] %vm551, %v995
  %1015 = vst.msk [vmem:[#allocation2 + $0x1d0] sm:$0xff] %vm551, %v997
  %1016 = vst.msk [vmem:[#allocation2 + $0x1e0] sm:$0xff] %vm551, %v999
  %1017 = vst.msk [vmem:[#allocation2 + $0x1f0] sm:$0xff] %vm551, %v1001
  %v1018 = vld [vmem:[#allocation4] sm:$0xff]
  %v1019 = vld [vmem:[#allocation4 + $0x8] sm:$0xff]
  %v1020 = vld [vmem:[#allocation4 + $0x10] sm:$0xff]
  %v1021 = vld [vmem:[#allocation4 + $0x18] sm:$0xff]
  %v1022 = vld [vmem:[#allocation4 + $0x20] sm:$0xff]
  %v1023 = vld [vmem:[#allocation4 + $0x28] sm:$0xff]
  %v1024 = vld [vmem:[#allocation4 + $0x30] sm:$0xff]
  %v1025 = vld [vmem:[#allocation4 + $0x38] sm:$0xff]
  %v1026 = vld [vmem:[#allocation4 + $0x40] sm:$0xff]
  %v1027 = vld [vmem:[#allocation4 + $0x48] sm:$0xff]
  %v1028 = vld [vmem:[#allocation4 + $0x50] sm:$0xff]
  %v1029 = vld [vmem:[#allocation4 + $0x58] sm:$0xff]
  %v1030 = vld [vmem:[#allocation4 + $0x60] sm:$0xff]
  %v1031 = vld [vmem:[#allocation4 + $0x68] sm:$0xff]
  %v1032 = vld [vmem:[#allocation4 + $0x70] sm:$0xff]
  %v1033 = vld [vmem:[#allocation4 + $0x78] sm:$0xff]
  %1050 = vrot.lane.b32.xlu0 %v1018, 119
  %v1051 = vpop.permute.xlu0 %1050
  %1052 = vrot.lane.b32.xlu0 %v1019, 119
  %v1053 = vpop.permute.xlu0 %1052
  %1054 = vrot.lane.b32.xlu0 %v1020, 119
  %v1055 = vpop.permute.xlu0 %1054
  %1056 = vrot.lane.b32.xlu0 %v1021, 119
  %v1057 = vpop.permute.xlu0 %1056
  %1058 = vrot.lane.b32.xlu0 %v1022, 119
  %v1059 = vpop.permute.xlu0 %1058
  %1060 = vrot.lane.b32.xlu0 %v1023, 119
  %v1061 = vpop.permute.xlu0 %1060
  %1062 = vrot.lane.b32.xlu0 %v1024, 119
  %v1063 = vpop.permute.xlu0 %1062
  %1064 = vrot.lane.b32.xlu0 %v1025, 119
  %v1065 = vpop.permute.xlu0 %1064
  %1066 = vrot.lane.b32.xlu0 %v1026, 119
  %v1067 = vpop.permute.xlu0 %1066
  %1068 = vrot.lane.b32.xlu0 %v1027, 119
  %v1069 = vpop.permute.xlu0 %1068
  %1070 = vrot.lane.b32.xlu0 %v1028, 119
  %v1071 = vpop.permute.xlu0 %1070
  %1072 = vrot.lane.b32.xlu0 %v1029, 119
  %v1073 = vpop.permute.xlu0 %1072
  %1074 = vrot.lane.b32.xlu0 %v1030, 119
  %v1075 = vpop.permute.xlu0 %1074
  %1076 = vrot.lane.b32.xlu0 %v1031, 119
  %v1077 = vpop.permute.xlu0 %1076
  %1078 = vrot.lane.b32.xlu0 %v1032, 119
  %v1079 = vpop.permute.xlu0 %1078
  %1080 = vrot.lane.b32.xlu0 %v1033, 119
  %v1081 = vpop.permute.xlu0 %1080
  %vm1082 = vcmask 973824
  %v1083 = vsel %vm1082, %v1051, %v1053
  %v1084 = vsel %vm1082, %v1055, %v1057
  %v1085 = vsel %vm1082, %v1059, %v1061
  %v1086 = vsel %vm1082, %v1063, %v1065
  %v1087 = vsel %vm1082, %v1067, %v1069
  %v1088 = vsel %vm1082, %v1071, %v1073
  %v1089 = vsel %vm1082, %v1075, %v1077
  %v1090 = vsel %vm1082, %v1079, %v1081
  %1107 = vst.msk [vmem:[#allocation2 + $0x180] sm:$0xff] %vm648, %v1083
  %1108 = vst.msk [vmem:[#allocation2 + $0x188] sm:$0xff] %vm650, %v1053
  %1109 = vst.msk [vmem:[#allocation2 + $0x190] sm:$0xff] %vm648, %v1084
  %1110 = vst.msk [vmem:[#allocation2 + $0x198] sm:$0xff] %vm650, %v1057
  %1111 = vst.msk [vmem:[#allocation2 + $0x1a0] sm:$0xff] %vm648, %v1085
  %1112 = vst.msk [vmem:[#allocation2 + $0x1a8] sm:$0xff] %vm650, %v1061
  %1113 = vst.msk [vmem:[#allocation2 + $0x1b0] sm:$0xff] %vm648, %v1086
  %1114 = vst.msk [vmem:[#allocation2 + $0x1b8] sm:$0xff] %vm650, %v1065
  %1115 = vst.msk [vmem:[#allocation2 + $0x1c0] sm:$0xff] %vm648, %v1087
  %1116 = vst.msk [vmem:[#allocation2 + $0x1c8] sm:$0xff] %vm650, %v1069
  %1117 = vst.msk [vmem:[#allocation2 + $0x1d0] sm:$0xff] %vm648, %v1088
  %1118 = vst.msk [vmem:[#allocation2 + $0x1d8] sm:$0xff] %vm650, %v1073
  %1119 = vst.msk [vmem:[#allocation2 + $0x1e0] sm:$0xff] %vm648, %v1089
  %1120 = vst.msk [vmem:[#allocation2 + $0x1e8] sm:$0xff] %vm650, %v1077
  %1121 = vst.msk [vmem:[#allocation2 + $0x1f0] sm:$0xff] %vm648, %v1090
  %1122 = vst.msk [vmem:[#allocation2 + $0x1f8] sm:$0xff] %vm650, %v1081
  %v1123 = vld [vmem:[#allocation4] sm:$0xff]
  %v1124 = vld [vmem:[#allocation4 + $0x10] sm:$0xff]
  %v1125 = vld [vmem:[#allocation4 + $0x20] sm:$0xff]
  %v1126 = vld [vmem:[#allocation4 + $0x30] sm:$0xff]
  %v1127 = vld [vmem:[#allocation4 + $0x40] sm:$0xff]
  %v1128 = vld [vmem:[#allocation4 + $0x50] sm:$0xff]
  %v1129 = vld [vmem:[#allocation4 + $0x60] sm:$0xff]
  %v1130 = vld [vmem:[#allocation4 + $0x70] sm:$0xff]
  %1139 = vrot.lane.b32.xlu0 %v1123, 124
  %v1140 = vpop.permute.xlu0 %1139
  %1141 = vrot.lane.b32.xlu0 %v1124, 124
  %v1142 = vpop.permute.xlu0 %1141
  %1143 = vrot.lane.b32.xlu0 %v1125, 124
  %v1144 = vpop.permute.xlu0 %1143
  %1145 = vrot.lane.b32.xlu0 %v1126, 124
  %v1146 = vpop.permute.xlu0 %1145
  %1147 = vrot.lane.b32.xlu0 %v1127, 124
  %v1148 = vpop.permute.xlu0 %1147
  %1149 = vrot.lane.b32.xlu0 %v1128, 124
  %v1150 = vpop.permute.xlu0 %1149
  %1151 = vrot.lane.b32.xlu0 %v1129, 124
  %v1152 = vpop.permute.xlu0 %1151
  %1153 = vrot.lane.b32.xlu0 %v1130, 124
  %v1154 = vpop.permute.xlu0 %1153
  %1163 = vst.msk [vmem:[#allocation2 + $0x200] sm:$0xff] %vm551, %v1140
  %1164 = vst.msk [vmem:[#allocation2 + $0x210] sm:$0xff] %vm551, %v1142
  %1165 = vst.msk [vmem:[#allocation2 + $0x220] sm:$0xff] %vm551, %v1144
  %1166 = vst.msk [vmem:[#allocation2 + $0x230] sm:$0xff] %vm551, %v1146
  %1167 = vst.msk [vmem:[#allocation2 + $0x240] sm:$0xff] %vm551, %v1148
  %1168 = vst.msk [vmem:[#allocation2 + $0x250] sm:$0xff] %vm551, %v1150
  %1169 = vst.msk [vmem:[#allocation2 + $0x260] sm:$0xff] %vm551, %v1152
  %1170 = vst.msk [vmem:[#allocation2 + $0x270] sm:$0xff] %vm551, %v1154
  %v1171 = vld [vmem:[#allocation4] sm:$0xff]
  %v1172 = vld [vmem:[#allocation4 + $0x8] sm:$0xff]
  %v1173 = vld [vmem:[#allocation4 + $0x10] sm:$0xff]
  %v1174 = vld [vmem:[#allocation4 + $0x18] sm:$0xff]
  %v1175 = vld [vmem:[#allocation4 + $0x20] sm:$0xff]
  %v1176 = vld [vmem:[#allocation4 + $0x28] sm:$0xff]
  %v1177 = vld [vmem:[#allocation4 + $0x30] sm:$0xff]
  %v1178 = vld [vmem:[#allocation4 + $0x38] sm:$0xff]
  %v1179 = vld [vmem:[#allocation4 + $0x40] sm:$0xff]
  %v1180 = vld [vmem:[#allocation4 + $0x48] sm:$0xff]
  %v1181 = vld [vmem:[#allocation4 + $0x50] sm:$0xff]
  %v1182 = vld [vmem:[#allocation4 + $0x58] sm:$0xff]
  %v1183 = vld [vmem:[#allocation4 + $0x60] sm:$0xff]
  %v1184 = vld [vmem:[#allocation4 + $0x68] sm:$0xff]
  %v1185 = vld [vmem:[#allocation4 + $0x70] sm:$0xff]
  %v1186 = vld [vmem:[#allocation4 + $0x78] sm:$0xff]
  %1203 = vrot.lane.b32.xlu0 %v1171, 118
  %v1204 = vpop.permute.xlu0 %1203
  %1205 = vrot.lane.b32.xlu0 %v1172, 118
  %v1206 = vpop.permute.xlu0 %1205
  %1207 = vrot.lane.b32.xlu0 %v1173, 118
  %v1208 = vpop.permute.xlu0 %1207
  %1209 = vrot.lane.b32.xlu0 %v1174, 118
  %v1210 = vpop.permute.xlu0 %1209
  %1211 = vrot.lane.b32.xlu0 %v1175, 118
  %v1212 = vpop.permute.xlu0 %1211
  %1213 = vrot.lane.b32.xlu0 %v1176, 118
  %v1214 = vpop.permute.xlu0 %1213
  %1215 = vrot.lane.b32.xlu0 %v1177, 118
  %v1216 = vpop.permute.xlu0 %1215
  %1217 = vrot.lane.b32.xlu0 %v1178, 118
  %v1218 = vpop.permute.xlu0 %1217
  %1219 = vrot.lane.b32.xlu0 %v1179, 118
  %v1220 = vpop.permute.xlu0 %1219
  %1221 = vrot.lane.b32.xlu0 %v1180, 118
  %v1222 = vpop.permute.xlu0 %1221
  %1223 = vrot.lane.b32.xlu0 %v1181, 118
  %v1224 = vpop.permute.xlu0 %1223
  %1225 = vrot.lane.b32.xlu0 %v1182, 118
  %v1226 = vpop.permute.xlu0 %1225
  %1227 = vrot.lane.b32.xlu0 %v1183, 118
  %v1228 = vpop.permute.xlu0 %1227
  %1229 = vrot.lane.b32.xlu0 %v1184, 118
  %v1230 = vpop.permute.xlu0 %1229
  %1231 = vrot.lane.b32.xlu0 %v1185, 118
  %v1232 = vpop.permute.xlu0 %1231
  %1233 = vrot.lane.b32.xlu0 %v1186, 118
  %v1234 = vpop.permute.xlu0 %1233
  %vm1235 = vcmask 965632
  %v1236 = vsel %vm1235, %v1204, %v1206
  %v1237 = vsel %vm1235, %v1208, %v1210
  %v1238 = vsel %vm1235, %v1212, %v1214
  %v1239 = vsel %vm1235, %v1216, %v1218
  %v1240 = vsel %vm1235, %v1220, %v1222
  %v1241 = vsel %vm1235, %v1224, %v1226
  %v1242 = vsel %vm1235, %v1228, %v1230
  %v1243 = vsel %vm1235, %v1232, %v1234
  %1260 = vst.msk [vmem:[#allocation2 + $0x200] sm:$0xff] %vm648, %v1236
  %1261 = vst.msk [vmem:[#allocation2 + $0x208] sm:$0xff] %vm650, %v1206
  %1262 = vst.msk [vmem:[#allocation2 + $0x210] sm:$0xff] %vm648, %v1237
  %1263 = vst.msk [vmem:[#allocation2 + $0x218] sm:$0xff] %vm650, %v1210
  %1264 = vst.msk [vmem:[#allocation2 + $0x220] sm:$0xff] %vm648, %v1238
  %1265 = vst.msk [vmem:[#allocation2 + $0x228] sm:$0xff] %vm650, %v1214
  %1266 = vst.msk [vmem:[#allocation2 + $0x230] sm:$0xff] %vm648, %v1239
  %1267 = vst.msk [vmem:[#allocation2 + $0x238] sm:$0xff] %vm650, %v1218
  %1268 = vst.msk [vmem:[#allocation2 + $0x240] sm:$0xff] %vm648, %v1240
  %1269 = vst.msk [vmem:[#allocation2 + $0x248] sm:$0xff] %vm650, %v1222
  %1270 = vst.msk [vmem:[#allocation2 + $0x250] sm:$0xff] %vm648, %v1241
  %1271 = vst.msk [vmem:[#allocation2 + $0x258] sm:$0xff] %vm650, %v1226
  %1272 = vst.msk [vmem:[#allocation2 + $0x260] sm:$0xff] %vm648, %v1242
  %1273 = vst.msk [vmem:[#allocation2 + $0x268] sm:$0xff] %vm650, %v1230
  %1274 = vst.msk [vmem:[#allocation2 + $0x270] sm:$0xff] %vm648, %v1243
  %1275 = vst.msk [vmem:[#allocation2 + $0x278] sm:$0xff] %vm650, %v1234
  %v1276 = vld [vmem:[#allocation4] sm:$0xff]
  %v1277 = vld [vmem:[#allocation4 + $0x10] sm:$0xff]
  %v1278 = vld [vmem:[#allocation4 + $0x20] sm:$0xff]
  %v1279 = vld [vmem:[#allocation4 + $0x30] sm:$0xff]
  %v1280 = vld [vmem:[#allocation4 + $0x40] sm:$0xff]
  %v1281 = vld [vmem:[#allocation4 + $0x50] sm:$0xff]
  %v1282 = vld [vmem:[#allocation4 + $0x60] sm:$0xff]
  %v1283 = vld [vmem:[#allocation4 + $0x70] sm:$0xff]
  %1292 = vrot.lane.b32.xlu0 %v1276, 123
  %v1293 = vpop.permute.xlu0 %1292
  %1294 = vrot.lane.b32.xlu0 %v1277, 123
  %v1295 = vpop.permute.xlu0 %1294
  %1296 = vrot.lane.b32.xlu0 %v1278, 123
  %v1297 = vpop.permute.xlu0 %1296
  %1298 = vrot.lane.b32.xlu0 %v1279, 123
  %v1299 = vpop.permute.xlu0 %1298
  %1300 = vrot.lane.b32.xlu0 %v1280, 123
  %v1301 = vpop.permute.xlu0 %1300
  %1302 = vrot.lane.b32.xlu0 %v1281, 123
  %v1303 = vpop.permute.xlu0 %1302
  %1304 = vrot.lane.b32.xlu0 %v1282, 123
  %v1305 = vpop.permute.xlu0 %1304
  %1306 = vrot.lane.b32.xlu0 %v1283, 123
  %v1307 = vpop.permute.xlu0 %1306
  %1316 = vst.msk [vmem:[#allocation2 + $0x280] sm:$0xff] %vm551, %v1293
  %1317 = vst.msk [vmem:[#allocation2 + $0x290] sm:$0xff] %vm551, %v1295
  %1318 = vst.msk [vmem:[#allocation2 + $0x2a0] sm:$0xff] %vm551, %v1297
  %1319 = vst.msk [vmem:[#allocation2 + $0x2b0] sm:$0xff] %vm551, %v1299
  %1320 = vst.msk [vmem:[#allocation2 + $0x2c0] sm:$0xff] %vm551, %v1301
  %1321 = vst.msk [vmem:[#allocation2 + $0x2d0] sm:$0xff] %vm551, %v1303
  %1322 = vst.msk [vmem:[#allocation2 + $0x2e0] sm:$0xff] %vm551, %v1305
  %1323 = vst.msk [vmem:[#allocation2 + $0x2f0] sm:$0xff] %vm551, %v1307
  %v1324 = vld [vmem:[#allocation4] sm:$0xff]
  %v1325 = vld [vmem:[#allocation4 + $0x8] sm:$0xff]
  %v1326 = vld [vmem:[#allocation4 + $0x10] sm:$0xff]
  %v1327 = vld [vmem:[#allocation4 + $0x18] sm:$0xff]
  %v1328 = vld [vmem:[#allocation4 + $0x20] sm:$0xff]
  %v1329 = vld [vmem:[#allocation4 + $0x28] sm:$0xff]
  %v1330 = vld [vmem:[#allocation4 + $0x30] sm:$0xff]
  %v1331 = vld [vmem:[#allocation4 + $0x38] sm:$0xff]
  %v1332 = vld [vmem:[#allocation4 + $0x40] sm:$0xff]
  %v1333 = vld [vmem:[#allocation4 + $0x48] sm:$0xff]
  %v1334 = vld [vmem:[#allocation4 + $0x50] sm:$0xff]
  %v1335 = vld [vmem:[#allocation4 + $0x58] sm:$0xff]
  %v1336 = vld [vmem:[#allocation4 + $0x60] sm:$0xff]
  %v1337 = vld [vmem:[#allocation4 + $0x68] sm:$0xff]
  %v1338 = vld [vmem:[#allocation4 + $0x70] sm:$0xff]
  %v1339 = vld [vmem:[#allocation4 + $0x78] sm:$0xff]
  %1356 = vrot.lane.b32.xlu0 %v1324, 117
  %v1357 = vpop.permute.xlu0 %1356
  %1358 = vrot.lane.b32.xlu0 %v1325, 117
  %v1359 = vpop.permute.xlu0 %1358
  %1360 = vrot.lane.b32.xlu0 %v1326, 117
  %v1361 = vpop.permute.xlu0 %1360
  %1362 = vrot.lane.b32.xlu0 %v1327, 117
  %v1363 = vpop.permute.xlu0 %1362
  %1364 = vrot.lane.b32.xlu0 %v1328, 117
  %v1365 = vpop.permute.xlu0 %1364
  %1366 = vrot.lane.b32.xlu0 %v1329, 117
  %v1367 = vpop.permute.xlu0 %1366
  %1368 = vrot.lane.b32.xlu0 %v1330, 117
  %v1369 = vpop.permute.xlu0 %1368
  %1370 = vrot.lane.b32.xlu0 %v1331, 117
  %v1371 = vpop.permute.xlu0 %1370
  %1372 = vrot.lane.b32.xlu0 %v1332, 117
  %v1373 = vpop.permute.xlu0 %1372
  %1374 = vrot.lane.b32.xlu0 %v1333, 117
  %v1375 = vpop.permute.xlu0 %1374
  %1376 = vrot.lane.b32.xlu0 %v1334, 117
  %v1377 = vpop.permute.xlu0 %1376
  %1378 = vrot.lane.b32.xlu0 %v1335, 117
  %v1379 = vpop.permute.xlu0 %1378
  %1380 = vrot.lane.b32.xlu0 %v1336, 117
  %v1381 = vpop.permute.xlu0 %1380
  %1382 = vrot.lane.b32.xlu0 %v1337, 117
  %v1383 = vpop.permute.xlu0 %1382
  %1384 = vrot.lane.b32.xlu0 %v1338, 117
  %v1385 = vpop.permute.xlu0 %1384
  %1386 = vrot.lane.b32.xlu0 %v1339, 117
  %v1387 = vpop.permute.xlu0 %1386
  %vm1388 = vcmask 957440
  %v1389 = vsel %vm1388, %v1357, %v1359
  %v1390 = vsel %vm1388, %v1361, %v1363
  %v1391 = vsel %vm1388, %v1365, %v1367
  %v1392 = vsel %vm1388, %v1369, %v1371
  %v1393 = vsel %vm1388, %v1373, %v1375
  %v1394 = vsel %vm1388, %v1377, %v1379
  %v1395 = vsel %vm1388, %v1381, %v1383
  %v1396 = vsel %vm1388, %v1385, %v1387
  %1413 = vst.msk [vmem:[#allocation2 + $0x280] sm:$0xff] %vm648, %v1389
  %1414 = vst.msk [vmem:[#allocation2 + $0x288] sm:$0xff] %vm650, %v1359
  %1415 = vst.msk [vmem:[#allocation2 + $0x290] sm:$0xff] %vm648, %v1390
  %1416 = vst.msk [vmem:[#allocation2 + $0x298] sm:$0xff] %vm650, %v1363
  %1417 = vst.msk [vmem:[#allocation2 + $0x2a0] sm:$0xff] %vm648, %v1391
  %1418 = vst.msk [vmem:[#allocation2 + $0x2a8] sm:$0xff] %vm650, %v1367
  %1419 = vst.msk [vmem:[#allocation2 + $0x2b0] sm:$0xff] %vm648, %v1392
  %1420 = vst.msk [vmem:[#allocation2 + $0x2b8] sm:$0xff] %vm650, %v1371
  %1421 = vst.msk [vmem:[#allocation2 + $0x2c0] sm:$0xff] %vm648, %v1393
  %1422 = vst.msk [vmem:[#allocation2 + $0x2c8] sm:$0xff] %vm650, %v1375
  %1423 = vst.msk [vmem:[#allocation2 + $0x2d0] sm:$0xff] %vm648, %v1394
  %1424 = vst.msk [vmem:[#allocation2 + $0x2d8] sm:$0xff] %vm650, %v1379
  %1425 = vst.msk [vmem:[#allocation2 + $0x2e0] sm:$0xff] %vm648, %v1395
  %1426 = vst.msk [vmem:[#allocation2 + $0x2e8] sm:$0xff] %vm650, %v1383
  %1427 = vst.msk [vmem:[#allocation2 + $0x2f0] sm:$0xff] %vm648, %v1396
  %1428 = vst.msk [vmem:[#allocation2 + $0x2f8] sm:$0xff] %vm650, %v1387
  %v1429 = vld [vmem:[#allocation4] sm:$0xff]
  %v1430 = vld [vmem:[#allocation4 + $0x10] sm:$0xff]
  %v1431 = vld [vmem:[#allocation4 + $0x20] sm:$0xff]
  %v1432 = vld [vmem:[#allocation4 + $0x30] sm:$0xff]
  %v1433 = vld [vmem:[#allocation4 + $0x40] sm:$0xff]
  %v1434 = vld [vmem:[#allocation4 + $0x50] sm:$0xff]
  %v1435 = vld [vmem:[#allocation4 + $0x60] sm:$0xff]
  %v1436 = vld [vmem:[#allocation4 + $0x70] sm:$0xff]
  %1445 = vrot.lane.b32.xlu0 %v1429, 122
  %v1446 = vpop.permute.xlu0 %1445
  %1447 = vrot.lane.b32.xlu0 %v1430, 122
  %v1448 = vpop.permute.xlu0 %1447
  %1449 = vrot.lane.b32.xlu0 %v1431, 122
  %v1450 = vpop.permute.xlu0 %1449
  %1451 = vrot.lane.b32.xlu0 %v1432, 122
  %v1452 = vpop.permute.xlu0 %1451
  %1453 = vrot.lane.b32.xlu0 %v1433, 122
  %v1454 = vpop.permute.xlu0 %1453
  %1455 = vrot.lane.b32.xlu0 %v1434, 122
  %v1456 = vpop.permute.xlu0 %1455
  %1457 = vrot.lane.b32.xlu0 %v1435, 122
  %v1458 = vpop.permute.xlu0 %1457
  %1459 = vrot.lane.b32.xlu0 %v1436, 122
  %v1460 = vpop.permute.xlu0 %1459
  %1469 = vst.msk [vmem:[#allocation2 + $0x300] sm:$0xff] %vm551, %v1446
  %1470 = vst.msk [vmem:[#allocation2 + $0x310] sm:$0xff] %vm551, %v1448
  %1471 = vst.msk [vmem:[#allocation2 + $0x320] sm:$0xff] %vm551, %v1450
  %1472 = vst.msk [vmem:[#allocation2 + $0x330] sm:$0xff] %vm551, %v1452
  %1473 = vst.msk [vmem:[#allocation2 + $0x340] sm:$0xff] %vm551, %v1454
  %1474 = vst.msk [vmem:[#allocation2 + $0x350] sm:$0xff] %vm551, %v1456
  %1475 = vst.msk [vmem:[#allocation2 + $0x360] sm:$0xff] %vm551, %v1458
  %1476 = vst.msk [vmem:[#allocation2 + $0x370] sm:$0xff] %vm551, %v1460
  %v1477 = vld [vmem:[#allocation4] sm:$0xff]
  %v1478 = vld [vmem:[#allocation4 + $0x8] sm:$0xff]
  %v1479 = vld [vmem:[#allocation4 + $0x10] sm:$0xff]
  %v1480 = vld [vmem:[#allocation4 + $0x18] sm:$0xff]
  %v1481 = vld [vmem:[#allocation4 + $0x20] sm:$0xff]
  %v1482 = vld [vmem:[#allocation4 + $0x28] sm:$0xff]
  %v1483 = vld [vmem:[#allocation4 + $0x30] sm:$0xff]
  %v1484 = vld [vmem:[#allocation4 + $0x38] sm:$0xff]
  %v1485 = vld [vmem:[#allocation4 + $0x40] sm:$0xff]
  %v1486 = vld [vmem:[#allocation4 + $0x48] sm:$0xff]
  %v1487 = vld [vmem:[#allocation4 + $0x50] sm:$0xff]
  %v1488 = vld [vmem:[#allocation4 + $0x58] sm:$0xff]
  %v1489 = vld [vmem:[#allocation4 + $0x60] sm:$0xff]
  %v1490 = vld [vmem:[#allocation4 + $0x68] sm:$0xff]
  %v1491 = vld [vmem:[#allocation4 + $0x70] sm:$0xff]
  %v1492 = vld [vmem:[#allocation4 + $0x78] sm:$0xff]
  %1509 = vrot.lane.b32.xlu0 %v1477, 116
  %v1510 = vpop.permute.xlu0 %1509
  %1511 = vrot.lane.b32.xlu0 %v1478, 116
  %v1512 = vpop.permute.xlu0 %1511
  %1513 = vrot.lane.b32.xlu0 %v1479, 116
  %v1514 = vpop.permute.xlu0 %1513
  %1515 = vrot.lane.b32.xlu0 %v1480, 116
  %v1516 = vpop.permute.xlu0 %1515
  %1517 = vrot.lane.b32.xlu0 %v1481, 116
  %v1518 = vpop.permute.xlu0 %1517
  %1519 = vrot.lane.b32.xlu0 %v1482, 116
  %v1520 = vpop.permute.xlu0 %1519
  %1521 = vrot.lane.b32.xlu0 %v1483, 116
  %v1522 = vpop.permute.xlu0 %1521
  %1523 = vrot.lane.b32.xlu0 %v1484, 116
  %v1524 = vpop.permute.xlu0 %1523
  %1525 = vrot.lane.b32.xlu0 %v1485, 116
  %v1526 = vpop.permute.xlu0 %1525
  %1527 = vrot.lane.b32.xlu0 %v1486, 116
  %v1528 = vpop.permute.xlu0 %1527
  %1529 = vrot.lane.b32.xlu0 %v1487, 116
  %v1530 = vpop.permute.xlu0 %1529
  %1531 = vrot.lane.b32.xlu0 %v1488, 116
  %v1532 = vpop.permute.xlu0 %1531
  %1533 = vrot.lane.b32.xlu0 %v1489, 116
  %v1534 = vpop.permute.xlu0 %1533
  %1535 = vrot.lane.b32.xlu0 %v1490, 116
  %v1536 = vpop.permute.xlu0 %1535
  %1537 = vrot.lane.b32.xlu0 %v1491, 116
  %v1538 = vpop.permute.xlu0 %1537
  %1539 = vrot.lane.b32.xlu0 %v1492, 116
  %v1540 = vpop.permute.xlu0 %1539
  %vm1541 = vcmask 949248
  %v1542 = vsel %vm1541, %v1510, %v1512
  %v1543 = vsel %vm1541, %v1514, %v1516
  %v1544 = vsel %vm1541, %v1518, %v1520
  %v1545 = vsel %vm1541, %v1522, %v1524
  %v1546 = vsel %vm1541, %v1526, %v1528
  %v1547 = vsel %vm1541, %v1530, %v1532
  %v1548 = vsel %vm1541, %v1534, %v1536
  %v1549 = vsel %vm1541, %v1538, %v1540
  %1566 = vst.msk [vmem:[#allocation2 + $0x300] sm:$0xff] %vm648, %v1542
  %1567 = vst.msk [vmem:[#allocation2 + $0x308] sm:$0xff] %vm650, %v1512
  %1568 = vst.msk [vmem:[#allocation2 + $0x310] sm:$0xff] %vm648, %v1543
  %1569 = vst.msk [vmem:[#allocation2 + $0x318] sm:$0xff] %vm650, %v1516
  %1570 = vst.msk [vmem:[#allocation2 + $0x320] sm:$0xff] %vm648, %v1544
  %1571 = vst.msk [vmem:[#allocation2 + $0x328] sm:$0xff] %vm650, %v1520
  %1572 = vst.msk [vmem:[#allocation2 + $0x330] sm:$0xff] %vm648, %v1545
  %1573 = vst.msk [vmem:[#allocation2 + $0x338] sm:$0xff] %vm650, %v1524
  %1574 = vst.msk [vmem:[#allocation2 + $0x340] sm:$0xff] %vm648, %v1546
  %1575 = vst.msk [vmem:[#allocation2 + $0x348] sm:$0xff] %vm650, %v1528
  %1576 = vst.msk [vmem:[#allocation2 + $0x350] sm:$0xff] %vm648, %v1547
  %1577 = vst.msk [vmem:[#allocation2 + $0x358] sm:$0xff] %vm650, %v1532
  %1578 = vst.msk [vmem:[#allocation2 + $0x360] sm:$0xff] %vm648, %v1548
  %1579 = vst.msk [vmem:[#allocation2 + $0x368] sm:$0xff] %vm650, %v1536
  %1580 = vst.msk [vmem:[#allocation2 + $0x370] sm:$0xff] %vm648, %v1549
  %1581 = vst.msk [vmem:[#allocation2 + $0x378] sm:$0xff] %vm650, %v1540
  %v1582 = vld [vmem:[%s1 + $0x4] sm:$0xff]
  %v1583 = vld [vmem:[%s1 + $0xc] sm:$0xff]
  %v1584 = vld [vmem:[%s1 + $0x30] sm:$0xff]
  %v1585 = vld [vmem:[%s1 + $0x38] sm:$0xff]
  %v1586 = vld [vmem:[%s1 + $0x5c] sm:$0xff]
  %v1587 = vld [vmem:[%s1 + $0x64] sm:$0xff]
  %v1588 = vld [vmem:[%s1 + $0x88] sm:$0xff]
  %v1589 = vld [vmem:[%s1 + $0x90] sm:$0xff]
  %v1590 = vld [vmem:[%s1 + $0xb4] sm:$0xff]
  %v1591 = vld [vmem:[%s1 + $0xbc] sm:$0xff]
  %v1592 = vld [vmem:[%s1 + $0xe0] sm:$0xff]
  %v1593 = vld [vmem:[%s1 + $0xe8] sm:$0xff]
  %v1594 = vld [vmem:[%s1 + $0x10c] sm:$0xff]
  %v1595 = vld [vmem:[%s1 + $0x114] sm:$0xff]
  %v1596 = vld [vmem:[%s1 + $0x138] sm:$0xff]
  %v1597 = vld [vmem:[%s1 + $0x140] sm:$0xff]
  %v1598 = vld [vmem:[#allocation2] sm:$0xff]
  %v1599 = vld [vmem:[#allocation2 + $0x8] sm:$0xff]
  %v1600 = vld [vmem:[#allocation2 + $0x10] sm:$0xff]
  %v1601 = vld [vmem:[#allocation2 + $0x18] sm:$0xff]
  %v1602 = vld [vmem:[#allocation2 + $0x20] sm:$0xff]
  %v1603 = vld [vmem:[#allocation2 + $0x28] sm:$0xff]
  %v1604 = vld [vmem:[#allocation2 + $0x30] sm:$0xff]
  %v1605 = vld [vmem:[#allocation2 + $0x38] sm:$0xff]
  %v1606 = vld [vmem:[#allocation2 + $0x40] sm:$0xff]
  %v1607 = vld [vmem:[#allocation2 + $0x48] sm:$0xff]
  %v1608 = vld [vmem:[#allocation2 + $0x50] sm:$0xff]
  %v1609 = vld [vmem:[#allocation2 + $0x58] sm:$0xff]
  %v1610 = vld [vmem:[#allocation2 + $0x60] sm:$0xff]
  %v1611 = vld [vmem:[#allocation2 + $0x68] sm:$0xff]
  %v1612 = vld [vmem:[#allocation2 + $0x70] sm:$0xff]
  %v1613 = vld [vmem:[#allocation2 + $0x78] sm:$0xff]
  %v1614 = vld [vmem:[#allocation2 + $0x80] sm:$0xff]
  %v1615 = vld [vmem:[#allocation2 + $0x88] sm:$0xff]
  %v1616 = vld [vmem:[#allocation2 + $0x90] sm:$0xff]
  %v1617 = vld [vmem:[#allocation2 + $0x98] sm:$0xff]
  %v1618 = vld [vmem:[#allocation2 + $0xa0] sm:$0xff]
  %v1619 = vld [vmem:[#allocation2 + $0xa8] sm:$0xff]
  %v1620 = vld [vmem:[#allocation2 + $0xb0] sm:$0xff]
  %v1621 = vld [vmem:[#allocation2 + $0xb8] sm:$0xff]
  %v1622 = vld [vmem:[#allocation2 + $0xc0] sm:$0xff]
  %v1623 = vld [vmem:[#allocation2 + $0xc8] sm:$0xff]
  %v1624 = vld [vmem:[#allocation2 + $0xd0] sm:$0xff]
  %v1625 = vld [vmem:[#allocation2 + $0xd8] sm:$0xff]
  %v1626 = vld [vmem:[#allocation2 + $0xe0] sm:$0xff]
  %v1627 = vld [vmem:[#allocation2 + $0xe8] sm:$0xff]
  %v1628 = vld [vmem:[#allocation2 + $0xf0] sm:$0xff]
  %v1629 = vld [vmem:[#allocation2 + $0xf8] sm:$0xff]
  %v1630 = vld [vmem:[#allocation2 + $0x100] sm:$0xff]
  %v1631 = vld [vmem:[#allocation2 + $0x108] sm:$0xff]
  %v1632 = vld [vmem:[#allocation2 + $0x110] sm:$0xff]
  %v1633 = vld [vmem:[#allocation2 + $0x118] sm:$0xff]
  %v1634 = vld [vmem:[#allocation2 + $0x120] sm:$0xff]
  %v1635 = vld [vmem:[#allocation2 + $0x128] sm:$0xff]
  %v1636 = vld [vmem:[#allocation2 + $0x130] sm:$0xff]
  %v1637 = vld [vmem:[#allocation2 + $0x138] sm:$0xff]
  %v1638 = vld [vmem:[#allocation2 + $0x140] sm:$0xff]
  %v1639 = vld [vmem:[#allocation2 + $0x148] sm:$0xff]
  %v1640 = vld [vmem:[#allocation2 + $0x150] sm:$0xff]
  %v1641 = vld [vmem:[#allocation2 + $0x158] sm:$0xff]
  %v1642 = vld [vmem:[#allocation2 + $0x160] sm:$0xff]
  %v1643 = vld [vmem:[#allocation2 + $0x168] sm:$0xff]
  %v1644 = vld [vmem:[#allocation2 + $0x170] sm:$0xff]
  %v1645 = vld [vmem:[#allocation2 + $0x178] sm:$0xff]
  %v1646 = vld [vmem:[#allocation2 + $0x180] sm:$0xff]
  %v1647 = vld [vmem:[#allocation2 + $0x188] sm:$0xff]
  %v1648 = vld [vmem:[#allocation2 + $0x190] sm:$0xff]
  %v1649 = vld [vmem:[#allocation2 + $0x198] sm:$0xff]
  %v1650 = vld [vmem:[#allocation2 + $0x1a0] sm:$0xff]
  %v1651 = vld [vmem:[#allocation2 + $0x1a8] sm:$0xff]
  %v1652 = vld [vmem:[#allocation2 + $0x1b0] sm:$0xff]
  %v1653 = vld [vmem:[#allocation2 + $0x1b8] sm:$0xff]
  %v1654 = vld [vmem:[#allocation2 + $0x1c0] sm:$0xff]
  %v1655 = vld [vmem:[#allocation2 + $0x1c8] sm:$0xff]
  %v1656 = vld [vmem:[#allocation2 + $0x1d0] sm:$0xff]
  %v1657 = vld [vmem:[#allocation2 + $0x1d8] sm:$0xff]
  %v1658 = vld [vmem:[#allocation2 + $0x1e0] sm:$0xff]
  %v1659 = vld [vmem:[#allocation2 + $0x1e8] sm:$0xff]
  %v1660 = vld [vmem:[#allocation2 + $0x1f0] sm:$0xff]
  %v1661 = vld [vmem:[#allocation2 + $0x1f8] sm:$0xff]
  %v1662 = vld [vmem:[#allocation2 + $0x200] sm:$0xff]
  %v1663 = vld [vmem:[#allocation2 + $0x208] sm:$0xff]
  %v1664 = vld [vmem:[#allocation2 + $0x210] sm:$0xff]
  %v1665 = vld [vmem:[#allocation2 + $0x218] sm:$0xff]
  %v1666 = vld [vmem:[#allocation2 + $0x220] sm:$0xff]
  %v1667 = vld [vmem:[#allocation2 + $0x228] sm:$0xff]
  %v1668 = vld [vmem:[#allocation2 + $0x230] sm:$0xff]
  %v1669 = vld [vmem:[#allocation2 + $0x238] sm:$0xff]
  %v1670 = vld [vmem:[#allocation2 + $0x240] sm:$0xff]
  %v1671 = vld [vmem:[#allocation2 + $0x248] sm:$0xff]
  %v1672 = vld [vmem:[#allocation2 + $0x250] sm:$0xff]
  %v1673 = vld [vmem:[#allocation2 + $0x258] sm:$0xff]
  %v1674 = vld [vmem:[#allocation2 + $0x260] sm:$0xff]
  %v1675 = vld [vmem:[#allocation2 + $0x268] sm:$0xff]
  %v1676 = vld [vmem:[#allocation2 + $0x270] sm:$0xff]
  %v1677 = vld [vmem:[#allocation2 + $0x278] sm:$0xff]
  %v1678 = vld [vmem:[#allocation2 + $0x280] sm:$0xff]
  %v1679 = vld [vmem:[#allocation2 + $0x288] sm:$0xff]
  %v1680 = vld [vmem:[#allocation2 + $0x290] sm:$0xff]
  %v1681 = vld [vmem:[#allocation2 + $0x298] sm:$0xff]
  %v1682 = vld [vmem:[#allocation2 + $0x2a0] sm:$0xff]
  %v1683 = vld [vmem:[#allocation2 + $0x2a8] sm:$0xff]
  %v1684 = vld [vmem:[#allocation2 + $0x2b0] sm:$0xff]
  %v1685 = vld [vmem:[#allocation2 + $0x2b8] sm:$0xff]
  %v1686 = vld [vmem:[#allocation2 + $0x2c0] sm:$0xff]
  %v1687 = vld [vmem:[#allocation2 + $0x2c8] sm:$0xff]
  %v1688 = vld [vmem:[#allocation2 + $0x2d0] sm:$0xff]
  %v1689 = vld [vmem:[#allocation2 + $0x2d8] sm:$0xff]
  %v1690 = vld [vmem:[#allocation2 + $0x2e0] sm:$0xff]
  %v1691 = vld [vmem:[#allocation2 + $0x2e8] sm:$0xff]
  %v1692 = vld [vmem:[#allocation2 + $0x2f0] sm:$0xff]
  %v1693 = vld [vmem:[#allocation2 + $0x2f8] sm:$0xff]
  %v1694 = vld [vmem:[#allocation2 + $0x300] sm:$0xff]
  %v1695 = vld [vmem:[#allocation2 + $0x308] sm:$0xff]
  %v1696 = vld [vmem:[#allocation2 + $0x310] sm:$0xff]
  %v1697 = vld [vmem:[#allocation2 + $0x318] sm:$0xff]
  %v1698 = vld [vmem:[#allocation2 + $0x320] sm:$0xff]
  %v1699 = vld [vmem:[#allocation2 + $0x328] sm:$0xff]
  %v1700 = vld [vmem:[#allocation2 + $0x330] sm:$0xff]
  %v1701 = vld [vmem:[#allocation2 + $0x338] sm:$0xff]
  %v1702 = vld [vmem:[#allocation2 + $0x340] sm:$0xff]
  %v1703 = vld [vmem:[#allocation2 + $0x348] sm:$0xff]
  %v1704 = vld [vmem:[#allocation2 + $0x350] sm:$0xff]
  %v1705 = vld [vmem:[#allocation2 + $0x358] sm:$0xff]
  %v1706 = vld [vmem:[#allocation2 + $0x360] sm:$0xff]
  %v1707 = vld [vmem:[#allocation2 + $0x368] sm:$0xff]
  %v1708 = vld [vmem:[#allocation2 + $0x370] sm:$0xff]
  %v1709 = vld [vmem:[#allocation2 + $0x378] sm:$0xff]
  %v1710 = vpack.c.bf16 %v1600, %v1598
  %v1711 = vpack.c.bf16 %v1601, %v1599
  %v1712 = vpack.c.bf16 %v1604, %v1602
  %v1713 = vpack.c.bf16 %v1605, %v1603
  %v1714 = vpack.c.bf16 %v1608, %v1606
  %v1715 = vpack.c.bf16 %v1609, %v1607
  %v1716 = vpack.c.bf16 %v1612, %v1610
  %v1717 = vpack.c.bf16 %v1613, %v1611
  %v1718 = vpack.c.bf16 %v1616, %v1614
  %v1719 = vpack.c.bf16 %v1617, %v1615
  %v1720 = vpack.c.bf16 %v1620, %v1618
  %v1721 = vpack.c.bf16 %v1621, %v1619
  %v1722 = vpack.c.bf16 %v1624, %v1622
  %v1723 = vpack.c.bf16 %v1625, %v1623
  %v1724 = vpack.c.bf16 %v1628, %v1626
  %v1725 = vpack.c.bf16 %v1629, %v1627
  %v1726 = vpack.c.bf16 %v1632, %v1630
  %v1727 = vpack.c.bf16 %v1633, %v1631
  %v1728 = vpack.c.bf16 %v1636, %v1634
  %v1729 = vpack.c.bf16 %v1637, %v1635
  %v1730 = vpack.c.bf16 %v1640, %v1638
  %v1731 = vpack.c.bf16 %v1641, %v1639
  %v1732 = vpack.c.bf16 %v1644, %v1642
  %v1733 = vpack.c.bf16 %v1645, %v1643
  %v1734 = vpack.c.bf16 %v1648, %v1646
  %v1735 = vpack.c.bf16 %v1649, %v1647
  %v1736 = vpack.c.bf16 %v1652, %v1650
  %v1737 = vpack.c.bf16 %v1653, %v1651
  %v1738 = vpack.c.bf16 %v1656, %v1654
  %v1739 = vpack.c.bf16 %v1657, %v1655
  %v1740 = vpack.c.bf16 %v1660, %v1658
  %v1741 = vpack.c.bf16 %v1661, %v1659
  %v1742 = vpack.c.bf16 %v1664, %v1662
  %v1743 = vpack.c.bf16 %v1665, %v1663
  %v1744 = vpack.c.bf16 %v1668, %v1666
  %v1745 = vpack.c.bf16 %v1669, %v1667
  %v1746 = vpack.c.bf16 %v1672, %v1670
  %v1747 = vpack.c.bf16 %v1673, %v1671
  %v1748 = vpack.c.bf16 %v1676, %v1674
  %v1749 = vpack.c.bf16 %v1677, %v1675
  %v1750 = vpack.c.bf16 %v1680, %v1678
  %v1751 = vpack.c.bf16 %v1681, %v1679
  %v1752 = vpack.c.bf16 %v1684, %v1682
  %v1753 = vpack.c.bf16 %v1685, %v1683
  %v1754 = vpack.c.bf16 %v1688, %v1686
  %v1755 = vpack.c.bf16 %v1689, %v1687
  %v1756 = vpack.c.bf16 %v1692, %v1690
  %v1757 = vpack.c.bf16 %v1693, %v1691
  %v1758 = vpack.c.bf16 %v1696, %v1694
  %v1759 = vpack.c.bf16 %v1697, %v1695
  %v1760 = vpack.c.bf16 %v1700, %v1698
  %v1761 = vpack.c.bf16 %v1701, %v1699
  %v1762 = vpack.c.bf16 %v1704, %v1702
  %v1763 = vpack.c.bf16 %v1705, %v1703
  %v1764 = vpack.c.bf16 %v1708, %v1706
  %v1765 = vpack.c.bf16 %v1709, %v1707
  %v1782 = vunpack.c.l.b16 %v1582
  %v1783 = vunpack.c.h.b16 %v1582
  %v1784 = vunpack.c.l.b16 %v1583
  %v1785 = vunpack.c.h.b16 %v1583
  %v1786 = vunpack.c.l.b16 %v1584
  %v1787 = vunpack.c.h.b16 %v1584
  %v1788 = vunpack.c.l.b16 %v1585
  %v1789 = vunpack.c.h.b16 %v1585
  %v1790 = vunpack.c.l.b16 %v1586
  %v1791 = vunpack.c.h.b16 %v1586
  %v1792 = vunpack.c.l.b16 %v1587
  %v1793 = vunpack.c.h.b16 %v1587
  %v1794 = vunpack.c.l.b16 %v1588
  %v1795 = vunpack.c.h.b16 %v1588
  %v1796 = vunpack.c.l.b16 %v1589
  %v1797 = vunpack.c.h.b16 %v1589
  %v1798 = vunpack.c.l.b16 %v1590
  %v1799 = vunpack.c.h.b16 %v1590
  %v1800 = vunpack.c.l.b16 %v1591
  %v1801 = vunpack.c.h.b16 %v1591
  %v1802 = vunpack.c.l.b16 %v1592
  %v1803 = vunpack.c.h.b16 %v1592
  %v1804 = vunpack.c.l.b16 %v1593
  %v1805 = vunpack.c.h.b16 %v1593
  %v1806 = vunpack.c.l.b16 %v1594
  %v1807 = vunpack.c.h.b16 %v1594
  %v1808 = vunpack.c.l.b16 %v1595
  %v1809 = vunpack.c.h.b16 %v1595
  %v1810 = vunpack.c.l.b16 %v1596
  %v1811 = vunpack.c.h.b16 %v1596
  %v1812 = vunpack.c.l.b16 %v1597
  %v1813 = vunpack.c.h.b16 %v1597
  %v1814 = vpack.c.b16 %v1786, %v1782
  %v1815 = vpack.c.b16 %v1787, %v1783
  %v1816 = vpack.c.b16 %v1788, %v1784
  %v1817 = vpack.c.b16 %v1789, %v1785
  %v1818 = vpack.c.b16 %v1794, %v1790
  %v1819 = vpack.c.b16 %v1795, %v1791
  %v1820 = vpack.c.b16 %v1796, %v1792
  %v1821 = vpack.c.b16 %v1797, %v1793
  %v1822 = vpack.c.b16 %v1802, %v1798
  %v1823 = vpack.c.b16 %v1803, %v1799
  %v1824 = vpack.c.b16 %v1804, %v1800
  %v1825 = vpack.c.b16 %v1805, %v1801
  %v1826 = vpack.c.b16 %v1810, %v1806
  %v1827 = vpack.c.b16 %v1811, %v1807
  %v1828 = vpack.c.b16 %v1812, %v1808
  %v1829 = vpack.c.b16 %v1813, %v1809
  %vm1842 = vcmask 523264
  %v1844 = vsel %vm1842, %v1817, 0
  %v1847 = vsel %vm1842, %v1821, 0
  %v1850 = vsel %vm1842, %v1825, 0
  %v1853 = vsel %vm1842, %v1829, 0
  %1855 = vmatprep.subr.bf16.mxu0 %v1711
  %1856 = vmatpush1.bf16.msra.mxu0 %v1710
  %1857 = vmatprep.subr.bf16.mxu0 %v1713
  %1858 = vmatpush1.bf16.msra.mxu0 %v1712
  %1859 = vmatprep.subr.bf16.mxu0 %v1715
  %1860 = vmatpush1.bf16.msra.mxu0 %v1714
  %1861 = vmatprep.subr.bf16.mxu0 %v1717
  %1862 = vmatpush1.bf16.msra.mxu0 %v1716
  %1863 = vmatprep.subr.bf16.mxu0 %v1719
  %1864 = vmatpush1.bf16.msra.mxu0 %v1718
  %1865 = vmatprep.subr.bf16.mxu0 %v1721
  %1866 = vmatpush1.bf16.msra.mxu0 %v1720
  %1867 = vmatprep.subr.bf16.mxu0 %v1723
  %1868 = vmatpush1.bf16.msra.mxu0 %v1722
  %1869 = vmatprep.subr.bf16.mxu0 %v1725
  %1870 = vmatpush1.bf16.msra.mxu0 %v1724
  %1871 = vmatprep.subr.bf16.mxu0 %v1727
  %1872 = vmatpush1.bf16.msra.mxu0 %v1726
  %1873 = vmatprep.subr.bf16.mxu0 %v1729
  %1874 = vmatpush1.bf16.msra.mxu0 %v1728
  %1875 = vmatprep.subr.bf16.mxu0 %v1731
  %1876 = vmatpush1.bf16.msra.mxu0 %v1730
  %1877 = vmatprep.subr.bf16.mxu0 %v1733
  %1878 = vmatpush1.bf16.msra.mxu0 %v1732
  %1879 = vmatprep.subr.bf16.mxu0 %v1735
  %1880 = vmatpush1.bf16.msra.mxu0 %v1734
  %1881 = vmatprep.subr.bf16.mxu0 %v1737
  %1882 = vmatpush1.bf16.msra.mxu0 %v1736
  %1883 = vmatprep.subr.bf16.mxu0 %v1739
  %1884 = vmatpush1.bf16.msra.mxu0 %v1738
  %1885 = vmatprep.subr.bf16.mxu0 %v1741
  %1886 = vmatpush1.bf16.msra.mxu0 %v1740
  %1887 = vmatprep.mubr.bf16.mxu0 %v1815
  %1888 = vmatmul.mubr.bf16.gmra.mrb[0].mxu0 %v1814
  %v1889 = vpop.f32.mrb[0].mxu0
  %v1890 = vadd.f32 0.0, %v1889
  %v1891 = vpop.f32.mrb[0].mxu0
  %v1892 = vadd.f32 0.0, %v1891
  %v1893 = vpop.f32.mrb[0].mxu0
  %v1894 = vadd.f32 0.0, %v1893
  %v1895 = vpop.f32.mrb[0].mxu0
  %v1896 = vadd.f32 0.0, %v1895
  %1897 = vmatprep.mubr.bf16.mxu0 %v1819
  %1898 = vmatmul.mubr.bf16.gmra.mrb[0].mxu0 %v1818
  %v1899 = vpop.f32.mrb[0].mxu0
  %v1900 = vadd.f32 0.0, %v1899
  %v1901 = vpop.f32.mrb[0].mxu0
  %v1902 = vadd.f32 0.0, %v1901
  %v1903 = vpop.f32.mrb[0].mxu0
  %v1904 = vadd.f32 0.0, %v1903
  %v1905 = vpop.f32.mrb[0].mxu0
  %v1906 = vadd.f32 0.0, %v1905
  %1907 = vmatprep.mubr.bf16.mxu0 %v1823
  %1908 = vmatmul.mubr.bf16.gmra.mrb[0].mxu0 %v1822
  %v1909 = vpop.f32.mrb[0].mxu0
  %v1910 = vadd.f32 0.0, %v1909
  %v1911 = vpop.f32.mrb[0].mxu0
  %v1912 = vadd.f32 0.0, %v1911
  %v1913 = vpop.f32.mrb[0].mxu0
  %v1914 = vadd.f32 0.0, %v1913
  %v1915 = vpop.f32.mrb[0].mxu0
  %v1916 = vadd.f32 0.0, %v1915
  %1917 = vmatprep.mubr.bf16.mxu0 %v1827
  %1918 = vmatmul.mubr.bf16.gmra.mrb[0].mxu0 %v1826
  %v1919 = vpop.f32.mrb[0].mxu0
  %v1920 = vadd.f32 0.0, %v1919
  %v1921 = vpop.f32.mrb[0].mxu0
  %v1922 = vadd.f32 0.0, %v1921
  %v1923 = vpop.f32.mrb[0].mxu0
  %v1924 = vadd.f32 0.0, %v1923
  %v1925 = vpop.f32.mrb[0].mxu0
  %v1926 = vadd.f32 0.0, %v1925
  %1927 = vdwg.mxu0
  %1928 = vmatprep.subr.bf16.mxu0 %v1743
  %1929 = vmatpush1.bf16.msra.mxu0 %v1742
  %1930 = vmatprep.subr.bf16.mxu0 %v1745
  %1931 = vmatpush1.bf16.msra.mxu0 %v1744
  %1932 = vmatprep.subr.bf16.mxu0 %v1747
  %1933 = vmatpush1.bf16.msra.mxu0 %v1746
  %1934 = vmatprep.subr.bf16.mxu0 %v1749
  %1935 = vmatpush1.bf16.msra.mxu0 %v1748
  %1936 = vmatprep.subr.bf16.mxu0 %v1751
  %1937 = vmatpush1.bf16.msra.mxu0 %v1750
  %1938 = vmatprep.subr.bf16.mxu0 %v1753
  %1939 = vmatpush1.bf16.msra.mxu0 %v1752
  %1940 = vmatprep.subr.bf16.mxu0 %v1755
  %1941 = vmatpush1.bf16.msra.mxu0 %v1754
  %1942 = vmatprep.subr.bf16.mxu0 %v1757
  %1943 = vmatpush1.bf16.msra.mxu0 %v1756
  %1944 = vmatprep.subr.bf16.mxu0 %v1759
  %1945 = vmatpush1.bf16.msra.mxu0 %v1758
  %1946 = vmatprep.subr.bf16.mxu0 %v1761
  %1947 = vmatpush1.bf16.msra.mxu0 %v1760
  %1948 = vmatprep.subr.bf16.mxu0 %v1763
  %1949 = vmatpush1.bf16.msra.mxu0 %v1762
  %1950 = vmatprep.subr.bf16.mxu0 %v1765
  %1951 = vmatpush1.bf16.msra.mxu0 %v1764
  %1952 = vmatprep.subr.bf16.mxu0 0
  %1953 = vmatpush1.bf16.msra.mxu0 0
  %1954 = vmatprep.subr.bf16.mxu0 0
  %1955 = vmatpush1.bf16.msra.mxu0 0
  %1956 = vmatprep.subr.bf16.mxu0 0
  %1957 = vmatpush1.bf16.msra.mxu0 0
  %1958 = vmatprep.subr.bf16.mxu0 0
  %1959 = vmatpush1.bf16.msra.mxu0 0
  %1960 = vmatprep.mubr.bf16.mxu0 %v1844
  %1961 = vmatmul.mubr.bf16.gmra.mrb[0].mxu0 %v1816
  %v1962 = vpop.f32.mrb[0].mxu0
  %v1963 = vadd.f32 %v1890, %v1962
  %v1964 = vpop.f32.mrb[0].mxu0
  %v1965 = vadd.f32 %v1892, %v1964
  %v1966 = vpop.f32.mrb[0].mxu0
  %v1967 = vadd.f32 %v1894, %v1966
  %v1968 = vpop.f32.mrb[0].mxu0
  %v1969 = vadd.f32 %v1896, %v1968
  %1970 = vmatprep.mubr.bf16.mxu0 %v1847
  %1971 = vmatmul.mubr.bf16.gmra.mrb[0].mxu0 %v1820
  %v1972 = vpop.f32.mrb[0].mxu0
  %v1973 = vadd.f32 %v1900, %v1972
  %v1974 = vpop.f32.mrb[0].mxu0
  %v1975 = vadd.f32 %v1902, %v1974
  %v1976 = vpop.f32.mrb[0].mxu0
  %v1977 = vadd.f32 %v1904, %v1976
  %v1978 = vpop.f32.mrb[0].mxu0
  %v1979 = vadd.f32 %v1906, %v1978
  %1980 = vmatprep.mubr.bf16.mxu0 %v1850
  %1981 = vmatmul.mubr.bf16.gmra.mrb[0].mxu0 %v1824
  %v1982 = vpop.f32.mrb[0].mxu0
  %v1983 = vadd.f32 %v1910, %v1982
  %v1984 = vpop.f32.mrb[0].mxu0
  %v1985 = vadd.f32 %v1912, %v1984
  %v1986 = vpop.f32.mrb[0].mxu0
  %v1987 = vadd.f32 %v1914, %v1986
  %v1988 = vpop.f32.mrb[0].mxu0
  %v1989 = vadd.f32 %v1916, %v1988
  %1990 = vmatprep.mubr.bf16.mxu0 %v1853
  %1991 = vmatmul.mubr.bf16.gmra.mrb[0].mxu0 %v1828
  %v1992 = vpop.f32.mrb[0].mxu0
  %v1993 = vadd.f32 %v1920, %v1992
  %v1994 = vpop.f32.mrb[0].mxu0
  %v1995 = vadd.f32 %v1922, %v1994
  %v1996 = vpop.f32.mrb[0].mxu0
  %v1997 = vadd.f32 %v1924, %v1996
  %v1998 = vpop.f32.mrb[0].mxu0
  %v1999 = vadd.f32 %v1926, %v1998
  %2000 = vdwg.mxu0
  %v2001 = vlaneseq
  %v2002 = vshrl.u32 %v2001, 7
  %v2003 = vadd.s32 %v2002, 8
  %v2004 = vadd.s32 %v2002, 16
  %v2005 = vadd.s32 %v2002, 24
  %v2006 = vadd.s32 %v2002, 32
  %v2007 = vadd.s32 %v2002, 40
  %v2008 = vadd.s32 %v2002, 48
  %v2009 = vadd.s32 %v2002, 56
  %v2010 = vadd.s32 %v2002, 64
  %v2011 = vadd.s32 %v2002, 72
  %v2012 = vadd.s32 %v2002, 80
  %v2013 = vadd.s32 %v2002, 88
  %v2014 = vadd.s32 %v2002, 96
  %v2015 = vadd.s32 %v2002, 104
  %v2016 = vadd.s32 %v2002, 112
  %v2017 = vadd.s32 %v2002, 120
  %v2018 = vadd.s32 %v2002, 128
  %v2019 = vlaneseq
  %v2020 = vand.u32 %v2019, 127
  %vm2021 = vcmp.ge.s32.totalorder %v2020, 0
  %vm2022 = vcmp.lt.s32.totalorder %v2020, 34
  %vm2023 = vmand %vm2021, %vm2022
  %v2024 = vmul.u32 %v2020, 2
  %vm2025 = vcmp.eq.s32.totalorder %v2002, %v2024
  %vm2026 = vcmp.eq.s32.totalorder %v2003, %v2024
  %vm2027 = vcmp.eq.s32.totalorder %v2004, %v2024
  %vm2028 = vcmp.eq.s32.totalorder %v2005, %v2024
  %vm2029 = vcmp.eq.s32.totalorder %v2006, %v2024
  %vm2030 = vcmp.eq.s32.totalorder %v2007, %v2024
  %vm2031 = vcmp.eq.s32.totalorder %v2008, %v2024
  %vm2032 = vcmp.eq.s32.totalorder %v2009, %v2024
  %vm2033 = vcmp.eq.s32.totalorder %v2010, %v2024
  %vm2034 = vcmp.eq.s32.totalorder %v2011, %v2024
  %vm2035 = vcmp.eq.s32.totalorder %v2012, %v2024
  %vm2036 = vcmp.eq.s32.totalorder %v2013, %v2024
  %vm2037 = vcmp.eq.s32.totalorder %v2014, %v2024
  %vm2038 = vcmp.eq.s32.totalorder %v2015, %v2024
  %vm2039 = vcmp.eq.s32.totalorder %v2016, %v2024
  %vm2040 = vcmp.eq.s32.totalorder %v2017, %v2024
  %vm2041 = vcmp.eq.s32.totalorder %v2018, %v2024
  %vm2042 = vmand %vm2023, %vm2025
  %vm2043 = vmand %vm2023, %vm2026
  %vm2044 = vmand %vm2023, %vm2027
  %vm2045 = vmand %vm2023, %vm2028
  %vm2046 = vmand %vm2023, %vm2029
  %vm2047 = vmand %vm2023, %vm2030
  %vm2048 = vmand %vm2023, %vm2031
  %vm2049 = vmand %vm2023, %vm2032
  %vm2050 = vmand %vm2023, %vm2033
  %vm2051 = vmand %vm2023, %vm2034
  %vm2052 = vmand %vm2023, %vm2035
  %vm2053 = vmand %vm2023, %vm2036
  %vm2054 = vmand %vm2023, %vm2037
  %vm2055 = vmand %vm2023, %vm2038
  %vm2056 = vmand %vm2023, %vm2039
  %vm2057 = vmand %vm2023, %vm2040
  %vm2058 = vmand %vm2023, %vm2041
  %v2059 = vsub.s32 %v2020, 34
  %vm2060 = vcmp.ge.s32.totalorder %v2059, 0
  %vm2061 = vcmp.lt.s32.totalorder %v2059, 34
  %vm2062 = vmand %vm2060, %vm2061
  %v2063 = vmul.u32 %v2059, 2
  %v2064 = vadd.s32 %v2063, 68
  %vm2065 = vcmp.eq.s32.totalorder %v2002, %v2064
  %vm2066 = vcmp.eq.s32.totalorder %v2003, %v2064
  %vm2067 = vcmp.eq.s32.totalorder %v2004, %v2064
  %vm2068 = vcmp.eq.s32.totalorder %v2005, %v2064
  %vm2069 = vcmp.eq.s32.totalorder %v2006, %v2064
  %vm2070 = vcmp.eq.s32.totalorder %v2007, %v2064
  %vm2071 = vcmp.eq.s32.totalorder %v2008, %v2064
  %vm2072 = vcmp.eq.s32.totalorder %v2009, %v2064
  %vm2073 = vcmp.eq.s32.totalorder %v2010, %v2064
  %vm2074 = vcmp.eq.s32.totalorder %v2011, %v2064
  %vm2075 = vcmp.eq.s32.totalorder %v2012, %v2064
  %vm2076 = vcmp.eq.s32.totalorder %v2013, %v2064
  %vm2077 = vcmp.eq.s32.totalorder %v2014, %v2064
  %vm2078 = vcmp.eq.s32.totalorder %v2015, %v2064
  %vm2079 = vcmp.eq.s32.totalorder %v2016, %v2064
  %vm2080 = vcmp.eq.s32.totalorder %v2017, %v2064
  %vm2081 = vcmp.eq.s32.totalorder %v2018, %v2064
  %vm2082 = vmand %vm2062, %vm2065
  %vm2083 = vmand %vm2062, %vm2066
  %vm2084 = vmand %vm2062, %vm2067
  %vm2085 = vmand %vm2062, %vm2068
  %vm2086 = vmand %vm2062, %vm2069
  %vm2087 = vmand %vm2062, %vm2070
  %vm2088 = vmand %vm2062, %vm2071
  %vm2089 = vmand %vm2062, %vm2072
  %vm2090 = vmand %vm2062, %vm2073
  %vm2091 = vmand %vm2062, %vm2074
  %vm2092 = vmand %vm2062, %vm2075
  %vm2093 = vmand %vm2062, %vm2076
  %vm2094 = vmand %vm2062, %vm2077
  %vm2095 = vmand %vm2062, %vm2078
  %vm2096 = vmand %vm2062, %vm2079
  %vm2097 = vmand %vm2062, %vm2080
  %vm2098 = vmand %vm2062, %vm2081
  %vm2099 = vmor %vm2042, %vm2082
  %vm2100 = vmor %vm2043, %vm2083
  %vm2101 = vmor %vm2044, %vm2084
  %vm2102 = vmor %vm2045, %vm2085
  %vm2103 = vmor %vm2046, %vm2086
  %vm2104 = vmor %vm2047, %vm2087
  %vm2105 = vmor %vm2048, %vm2088
  %vm2106 = vmor %vm2049, %vm2089
  %vm2107 = vmor %vm2050, %vm2090
  %vm2108 = vmor %vm2051, %vm2091
  %vm2109 = vmor %vm2052, %vm2092
  %vm2110 = vmor %vm2053, %vm2093
  %vm2111 = vmor %vm2054, %vm2094
  %vm2112 = vmor %vm2055, %vm2095
  %vm2113 = vmor %vm2056, %vm2096
  %vm2114 = vmor %vm2057, %vm2097
  %vm2115 = vmor %vm2058, %vm2098
  %v2116 = vsel %vm2099, 1, 0
  %v2117 = vsel %vm2100, 1, 0
  %v2118 = vsel %vm2101, 1, 0
  %v2119 = vsel %vm2102, 1, 0
  %v2120 = vsel %vm2103, 1, 0
  %v2121 = vsel %vm2104, 1, 0
  %v2122 = vsel %vm2105, 1, 0
  %v2123 = vsel %vm2106, 1, 0
  %v2124 = vsel %vm2107, 1, 0
  %v2125 = vsel %vm2108, 1, 0
  %v2126 = vsel %vm2109, 1, 0
  %v2127 = vsel %vm2110, 1, 0
  %v2128 = vsel %vm2111, 1, 0
  %v2129 = vsel %vm2112, 1, 0
  %v2130 = vsel %vm2113, 1, 0
  %v2131 = vsel %vm2114, 1, 0
  %v2132 = vsel %vm2115, 1, 0
  %v2133 = vcvt.s32.f32 %v2116
  %v2134 = vcvt.s32.f32 %v2117
  %v2135 = vcvt.s32.f32 %v2118
  %v2136 = vcvt.s32.f32 %v2119
  %v2137 = vcvt.s32.f32 %v2120
  %v2138 = vcvt.s32.f32 %v2121
  %v2139 = vcvt.s32.f32 %v2122
  %v2140 = vcvt.s32.f32 %v2123
  %v2141 = vcvt.s32.f32 %v2124
  %v2142 = vcvt.s32.f32 %v2125
  %v2143 = vcvt.s32.f32 %v2126
  %v2144 = vcvt.s32.f32 %v2127
  %v2145 = vcvt.s32.f32 %v2128
  %v2146 = vcvt.s32.f32 %v2129
  %v2147 = vcvt.s32.f32 %v2130
  %v2148 = vcvt.s32.f32 %v2131
  %v2149 = vcvt.s32.f32 %v2132
  %v2150 = vld [vmem:[%s2] sm:$0xff]
  %v2151 = vld [vmem:[%s2 + $0x8] sm:$0xff]
  %v2152 = vld [vmem:[%s2 + $0x10] sm:$0xff]
  %v2153 = vld [vmem:[%s2 + $0x18] sm:$0xff]
  %v2154 = vld [vmem:[%s2 + $0x20] sm:$0xff]
  %v2155 = vld [vmem:[%s2 + $0x28] sm:$0xff]
  %v2156 = vld [vmem:[%s2 + $0x30] sm:$0xff]
  %v2157 = vld [vmem:[%s2 + $0x38] sm:$0xff]
  %2159 = vset.pattern.permute.xlu0 3
  %2160 = vperm.xlu0 %2159, %v2150
  %v2161 = vpop.permute.xlu0 %2160
  %2164 = vset.pattern.permute.xlu0 3
  %2165 = vperm.xlu0 %2164, %v2151
  %v2166 = vpop.permute.xlu0 %2165
  %2169 = vset.pattern.permute.xlu0 3
  %2170 = vperm.xlu0 %2169, %v2152
  %v2171 = vpop.permute.xlu0 %2170
  %2174 = vset.pattern.permute.xlu0 3
  %2175 = vperm.xlu0 %2174, %v2153
  %v2176 = vpop.permute.xlu0 %2175
  %2179 = vset.pattern.permute.xlu0 3
  %2180 = vperm.xlu0 %2179, %v2154
  %v2181 = vpop.permute.xlu0 %2180
  %2184 = vset.pattern.permute.xlu0 3
  %2185 = vperm.xlu0 %2184, %v2155
  %v2186 = vpop.permute.xlu0 %2185
  %2189 = vset.pattern.permute.xlu0 3
  %2190 = vperm.xlu0 %2189, %v2156
  %v2191 = vpop.permute.xlu0 %2190
  %2194 = vset.pattern.permute.xlu0 3
  %2195 = vperm.xlu0 %2194, %v2157
  %v2196 = vpop.permute.xlu0 %2195
  %v2199 = vsel %vm650, %v1965, 0
  %v2202 = vsel %vm650, %v1969, 0
  %v2205 = vsel %vm650, %v1975, 0
  %v2208 = vsel %vm650, %v1979, 0
  %v2211 = vsel %vm650, %v1985, 0
  %v2214 = vsel %vm650, %v1989, 0
  %v2217 = vsel %vm650, %v1995, 0
  %v2220 = vsel %vm650, %v1999, 0
  %2222 = vmatprep.subr.mxu0 0.0
  %2223 = vmatpush1.msra.mxu0 %v2133
  %2224 = vmatprep.subr.mxu0 0.0
  %2225 = vmatpush1.msra.mxu0 %v2134
  %2226 = vmatprep.subr.mxu0 0.0
  %2227 = vmatpush1.msra.mxu0 %v2135
  %2228 = vmatprep.subr.mxu0 0.0
  %2229 = vmatpush1.msra.mxu0 %v2136
  %2230 = vmatprep.subr.mxu0 0.0
  %2231 = vmatpush1.msra.mxu0 %v2137
  %2232 = vmatprep.subr.mxu0 0.0
  %2233 = vmatpush1.msra.mxu0 %v2138
  %2234 = vmatprep.subr.mxu0 0.0
  %2235 = vmatpush1.msra.mxu0 %v2139
  %2236 = vmatprep.subr.mxu0 0.0
  %2237 = vmatpush1.msra.mxu0 %v2140
  %2238 = vmatprep.subr.mxu0 0.0
  %2239 = vmatpush1.msra.mxu0 %v2141
  %2240 = vmatprep.subr.mxu0 0.0
  %2241 = vmatpush1.msra.mxu0 %v2142
  %2242 = vmatprep.subr.mxu0 0.0
  %2243 = vmatpush1.msra.mxu0 %v2143
  %2244 = vmatprep.subr.mxu0 0.0
  %2245 = vmatpush1.msra.mxu0 %v2144
  %2246 = vmatprep.subr.mxu0 0.0
  %2247 = vmatpush1.msra.mxu0 %v2145
  %2248 = vmatprep.subr.mxu0 0.0
  %2249 = vmatpush1.msra.mxu0 %v2146
  %2250 = vmatprep.subr.mxu0 0.0
  %2251 = vmatpush1.msra.mxu0 %v2147
  %2252 = vmatprep.subr.mxu0 0.0
  %2253 = vmatpush1.msra.mxu0 %v2148
  %2254 = vmatprep.subr.mxu0 0.0
  %2255 = vmatpush1.msra.mxu0 %v2149
  %2256 = vmatprep.subr.mxu0 0.0
  %2257 = vmatpush1.msra.mxu0 0.0
  %2258 = vmatprep.subr.mxu0 0.0
  %2259 = vmatpush1.msra.mxu0 0.0
  %2260 = vmatprep.subr.mxu0 0.0
  %2261 = vmatpush1.msra.mxu0 0.0
  %2262 = vmatprep.subr.mxu0 0.0
  %2263 = vmatpush1.msra.mxu0 0.0
  %2264 = vmatprep.subr.mxu0 0.0
  %2265 = vmatpush1.msra.mxu0 0.0
  %2266 = vmatprep.subr.mxu0 0.0
  %2267 = vmatpush1.msra.mxu0 0.0
  %2268 = vmatprep.subr.mxu0 0.0
  %2269 = vmatpush1.msra.mxu0 0.0
  %2270 = vmatprep.subr.mxu0 0.0
  %2271 = vmatpush1.msra.mxu0 0.0
  %2272 = vmatprep.subr.mxu0 0.0
  %2273 = vmatpush1.msra.mxu0 0.0
  %2274 = vmatprep.subr.mxu0 0.0
  %2275 = vmatpush1.msra.mxu0 0.0
  %2276 = vmatprep.subr.mxu0 0.0
  %2277 = vmatpush1.msra.mxu0 0.0
  %2278 = vmatprep.subr.mxu0 0.0
  %2279 = vmatpush1.msra.mxu0 0.0
  %2280 = vmatprep.subr.mxu0 0.0
  %2281 = vmatpush1.msra.mxu0 0.0
  %2282 = vmatprep.subr.mxu0 0.0
  %2283 = vmatpush1.msra.mxu0 0.0
  %2284 = vmatprep.subr.mxu0 0.0
  %2285 = vmatpush1.msra.mxu0 0.0
  %2286 = vmatprep.mubr.f32.mxu0 %v2199
  %2287 = vmatmul.mubr.f32.gmra.mrb[0].mxu0 %v1963
  %v2288 = vpop.f32.mrb[0].mxu0
  %v2289 = vadd.f32 %v2161, %v2288
  %v2290 = vpop.f32.mrb[0].mxu0
  %2291 = vmatprep.mubr.f32.mxu0 %v2202
  %2292 = vmatmul.mubr.f32.gmra.mrb[0].mxu0 %v1967
  %v2293 = vpop.f32.mrb[0].mxu0
  %v2294 = vadd.f32 %v2166, %v2293
  %v2295 = vpop.f32.mrb[0].mxu0
  %2296 = vmatprep.mubr.f32.mxu0 %v2205
  %2297 = vmatmul.mubr.f32.gmra.mrb[0].mxu0 %v1973
  %v2298 = vpop.f32.mrb[0].mxu0
  %v2299 = vadd.f32 %v2171, %v2298
  %v2300 = vpop.f32.mrb[0].mxu0
  %2301 = vmatprep.mubr.f32.mxu0 %v2208
  %2302 = vmatmul.mubr.f32.gmra.mrb[0].mxu0 %v1977
  %v2303 = vpop.f32.mrb[0].mxu0
  %v2304 = vadd.f32 %v2176, %v2303
  %v2305 = vpop.f32.mrb[0].mxu0
  %2306 = vmatprep.mubr.f32.mxu0 %v2211
  %2307 = vmatmul.mubr.f32.gmra.mrb[0].mxu0 %v1983
  %v2308 = vpop.f32.mrb[0].mxu0
  %v2309 = vadd.f32 %v2181, %v2308
  %v2310 = vpop.f32.mrb[0].mxu0
  %2311 = vmatprep.mubr.f32.mxu0 %v2214
  %2312 = vmatmul.mubr.f32.gmra.mrb[0].mxu0 %v1987
  %v2313 = vpop.f32.mrb[0].mxu0
  %v2314 = vadd.f32 %v2186, %v2313
  %v2315 = vpop.f32.mrb[0].mxu0
  %2316 = vmatprep.mubr.f32.mxu0 %v2217
  %2317 = vmatmul.mubr.f32.gmra.mrb[0].mxu0 %v1993
  %v2318 = vpop.f32.mrb[0].mxu0
  %v2319 = vadd.f32 %v2191, %v2318
  %v2320 = vpop.f32.mrb[0].mxu0
  %2321 = vmatprep.mubr.f32.mxu0 %v2220
  %2322 = vmatmul.mubr.f32.gmra.mrb[0].mxu0 %v1997
  %v2323 = vpop.f32.mrb[0].mxu0
  %v2324 = vadd.f32 %v2196, %v2323
  %v2325 = vpop.f32.mrb[0].mxu0
  %2326 = vdwg.mxu0
  %v2327 = vsel %vm551, %v2289, 0.0
  %2328 = vadd.xlane.f32.xlu0 %v2327
  %v2329 = vpop.xlane.xlu0 %2328
  %v2330 = vsel %vm551, %v2294, 0.0
  %2331 = vadd.xlane.f32.xlu0 %v2330
  %v2332 = vpop.xlane.xlu0 %2331
  %v2333 = vsel %vm551, %v2299, 0.0
  %2334 = vadd.xlane.f32.xlu0 %v2333
  %v2335 = vpop.xlane.xlu0 %2334
  %v2336 = vsel %vm551, %v2304, 0.0
  %2337 = vadd.xlane.f32.xlu0 %v2336
  %v2338 = vpop.xlane.xlu0 %2337
  %v2339 = vsel %vm551, %v2309, 0.0
  %2340 = vadd.xlane.f32.xlu0 %v2339
  %v2341 = vpop.xlane.xlu0 %2340
  %v2342 = vsel %vm551, %v2314, 0.0
  %2343 = vadd.xlane.f32.xlu0 %v2342
  %v2344 = vpop.xlane.xlu0 %2343
  %v2345 = vsel %vm551, %v2319, 0.0
  %2346 = vadd.xlane.f32.xlu0 %v2345
  %v2347 = vpop.xlane.xlu0 %2346
  %v2348 = vsel %vm551, %v2324, 0.0
  %2349 = vadd.xlane.f32.xlu0 %v2348
  %v2350 = vpop.xlane.xlu0 %2349
  %v2351 = vrcp.pop 68.0
  %v2352 = vmul.f32 %v2329, %v2351
  %v2353 = vmul.f32 %v2332, %v2351
  %v2354 = vmul.f32 %v2335, %v2351
  %v2355 = vmul.f32 %v2338, %v2351
  %v2356 = vmul.f32 %v2341, %v2351
  %v2357 = vmul.f32 %v2344, %v2351
  %v2358 = vmul.f32 %v2347, %v2351
  %v2359 = vmul.f32 %v2350, %v2351
  %v2360 = vsub.f32 %v2289, %v2352
  %v2361 = vsub.f32 %v2294, %v2353
  %v2362 = vsub.f32 %v2299, %v2354
  %v2363 = vsub.f32 %v2304, %v2355
  %v2364 = vsub.f32 %v2309, %v2356
  %v2365 = vsub.f32 %v2314, %v2357
  %v2366 = vsub.f32 %v2319, %v2358
  %v2367 = vsub.f32 %v2324, %v2359
  %v2368 = vmul.f32 %v2360, %v2360
  %v2369 = vmul.f32 %v2361, %v2361
  %v2370 = vmul.f32 %v2362, %v2362
  %v2371 = vmul.f32 %v2363, %v2363
  %v2372 = vmul.f32 %v2364, %v2364
  %v2373 = vmul.f32 %v2365, %v2365
  %v2374 = vmul.f32 %v2366, %v2366
  %v2375 = vmul.f32 %v2367, %v2367
  %v2376 = vsel %vm551, %v2368, 0.0
  %2377 = vadd.xlane.f32.xlu0 %v2376
  %v2378 = vpop.xlane.xlu0 %2377
  %v2379 = vsel %vm551, %v2369, 0.0
  %2380 = vadd.xlane.f32.xlu0 %v2379
  %v2381 = vpop.xlane.xlu0 %2380
  %v2382 = vsel %vm551, %v2370, 0.0
  %2383 = vadd.xlane.f32.xlu0 %v2382
  %v2384 = vpop.xlane.xlu0 %2383
  %v2385 = vsel %vm551, %v2371, 0.0
  %2386 = vadd.xlane.f32.xlu0 %v2385
  %v2387 = vpop.xlane.xlu0 %2386
  %v2388 = vsel %vm551, %v2372, 0.0
  %2389 = vadd.xlane.f32.xlu0 %v2388
  %v2390 = vpop.xlane.xlu0 %2389
  %v2391 = vsel %vm551, %v2373, 0.0
  %2392 = vadd.xlane.f32.xlu0 %v2391
  %v2393 = vpop.xlane.xlu0 %2392
  %v2394 = vsel %vm551, %v2374, 0.0
  %2395 = vadd.xlane.f32.xlu0 %v2394
  %v2396 = vpop.xlane.xlu0 %2395
  %v2397 = vsel %vm551, %v2375, 0.0
  %2398 = vadd.xlane.f32.xlu0 %v2397
  %v2399 = vpop.xlane.xlu0 %2398
  %v2400 = vmul.f32 %v2378, %v2351
  %v2401 = vmul.f32 %v2381, %v2351
  %v2402 = vmul.f32 %v2384, %v2351
  %v2403 = vmul.f32 %v2387, %v2351
  %v2404 = vmul.f32 %v2390, %v2351
  %v2405 = vmul.f32 %v2393, %v2351
  %v2406 = vmul.f32 %v2396, %v2351
  %v2407 = vmul.f32 %v2399, %v2351
  %v2408 = vadd.f32 %v2400, 1e-05
  %v2409 = vadd.f32 %v2401, 1e-05
  %v2410 = vadd.f32 %v2402, 1e-05
  %v2411 = vadd.f32 %v2403, 1e-05
  %v2412 = vadd.f32 %v2404, 1e-05
  %v2413 = vadd.f32 %v2405, 1e-05
  %v2414 = vadd.f32 %v2406, 1e-05
  %v2415 = vadd.f32 %v2407, 1e-05
  %v2416 = vrsqrt.pop %v2408
  %v2417 = vrsqrt.pop %v2409
  %v2418 = vrsqrt.pop %v2410
  %v2419 = vrsqrt.pop %v2411
  %v2420 = vrsqrt.pop %v2412
  %v2421 = vrsqrt.pop %v2413
  %v2422 = vrsqrt.pop %v2414
  %v2423 = vrsqrt.pop %v2415
  %v2424 = vmul.f32 %v2150, %v2416
  %v2425 = vmul.f32 %v2151, %v2417
  %v2426 = vmul.f32 %v2152, %v2418
  %v2427 = vmul.f32 %v2153, %v2419
  %v2428 = vmul.f32 %v2154, %v2420
  %v2429 = vmul.f32 %v2155, %v2421
  %v2430 = vmul.f32 %v2156, %v2422
  %v2431 = vmul.f32 %v2157, %v2423
  %2433 = vset.pattern.permute.xlu0 4
  %2434 = vperm.xlu0 %2433, %v2424
  %v2435 = vpop.permute.xlu0 %2434
  %2438 = vset.pattern.permute.xlu0 4
  %2439 = vperm.xlu0 %2438, %v2425
  %v2440 = vpop.permute.xlu0 %2439
  %2443 = vset.pattern.permute.xlu0 4
  %2444 = vperm.xlu0 %2443, %v2426
  %v2445 = vpop.permute.xlu0 %2444
  %2448 = vset.pattern.permute.xlu0 4
  %2449 = vperm.xlu0 %2448, %v2427
  %v2450 = vpop.permute.xlu0 %2449
  %2453 = vset.pattern.permute.xlu0 4
  %2454 = vperm.xlu0 %2453, %v2428
  %v2455 = vpop.permute.xlu0 %2454
  %2458 = vset.pattern.permute.xlu0 4
  %2459 = vperm.xlu0 %2458, %v2429
  %v2460 = vpop.permute.xlu0 %2459
  %2463 = vset.pattern.permute.xlu0 4
  %2464 = vperm.xlu0 %2463, %v2430
  %v2465 = vpop.permute.xlu0 %2464
  %2468 = vset.pattern.permute.xlu0 4
  %2469 = vperm.xlu0 %2468, %v2431
  %v2470 = vpop.permute.xlu0 %2469
  %v2472 = vmul.f32 %v2360, %v2435
  %v2473 = vmul.f32 %v2361, %v2440
  %v2474 = vmul.f32 %v2362, %v2445
  %v2475 = vmul.f32 %v2363, %v2450
  %v2476 = vmul.f32 %v2364, %v2455
  %v2477 = vmul.f32 %v2365, %v2460
  %v2478 = vmul.f32 %v2366, %v2465
  %v2479 = vmul.f32 %v2367, %v2470
  %2480 = vset.pattern.permute.xlu0 5
  %2481 = vperm.xlu0 %2480, %v2150
  %v2482 = vpop.permute.xlu0 %2481
  %2484 = vset.pattern.permute.xlu0 5
  %2485 = vperm.xlu0 %2484, %v2151
  %v2486 = vpop.permute.xlu0 %2485
  %2488 = vset.pattern.permute.xlu0 5
  %2489 = vperm.xlu0 %2488, %v2152
  %v2490 = vpop.permute.xlu0 %2489
  %2492 = vset.pattern.permute.xlu0 5
  %2493 = vperm.xlu0 %2492, %v2153
  %v2494 = vpop.permute.xlu0 %2493
  %2496 = vset.pattern.permute.xlu0 5
  %2497 = vperm.xlu0 %2496, %v2154
  %v2498 = vpop.permute.xlu0 %2497
  %2500 = vset.pattern.permute.xlu0 5
  %2501 = vperm.xlu0 %2500, %v2155
  %v2502 = vpop.permute.xlu0 %2501
  %2504 = vset.pattern.permute.xlu0 5
  %2505 = vperm.xlu0 %2504, %v2156
  %v2506 = vpop.permute.xlu0 %2505
  %2508 = vset.pattern.permute.xlu0 5
  %2509 = vperm.xlu0 %2508, %v2157
  %v2510 = vpop.permute.xlu0 %2509
  %v2512 = vadd.f32 %v2472, %v2482
  %v2513 = vadd.f32 %v2473, %v2486
  %v2514 = vadd.f32 %v2474, %v2490
  %v2515 = vadd.f32 %v2475, %v2494
  %v2516 = vadd.f32 %v2476, %v2498
  %v2517 = vadd.f32 %v2477, %v2502
  %v2518 = vadd.f32 %v2478, %v2506
  %v2519 = vadd.f32 %v2479, %v2510
  %v2520 = vmax.f32 %v2512, 0.0
  %v2521 = vmax.f32 %v2513, 0.0
  %v2522 = vmax.f32 %v2514, 0.0
  %v2523 = vmax.f32 %v2515, 0.0
  %v2524 = vmax.f32 %v2516, 0.0
  %v2525 = vmax.f32 %v2517, 0.0
  %v2526 = vmax.f32 %v2518, 0.0
  %v2527 = vmax.f32 %v2519, 0.0
  %2536 = vrot.lane.b32.xlu0 %v2520, 2
  %v2537 = vpop.permute.xlu0 %2536
  %2538 = vrot.lane.b32.xlu0 %v2521, 2
  %v2539 = vpop.permute.xlu0 %2538
  %2540 = vrot.lane.b32.xlu0 %v2522, 2
  %v2541 = vpop.permute.xlu0 %2540
  %2542 = vrot.lane.b32.xlu0 %v2523, 2
  %v2543 = vpop.permute.xlu0 %2542
  %2544 = vrot.lane.b32.xlu0 %v2524, 2
  %v2545 = vpop.permute.xlu0 %2544
  %2546 = vrot.lane.b32.xlu0 %v2525, 2
  %v2547 = vpop.permute.xlu0 %2546
  %2548 = vrot.lane.b32.xlu0 %v2526, 2
  %v2549 = vpop.permute.xlu0 %2548
  %2550 = vrot.lane.b32.xlu0 %v2527, 2
  %v2551 = vpop.permute.xlu0 %2550
  %vm2560 = vcmask 293904
  %2561 = vst.msk [vmem:[#allocation5] sm:$0xff] %vm2560, %v2537
  %2562 = vst.msk [vmem:[#allocation5 + $0x8] sm:$0xff] %vm2560, %v2539
  %2563 = vst.msk [vmem:[#allocation5 + $0x10] sm:$0xff] %vm2560, %v2541
  %2564 = vst.msk [vmem:[#allocation5 + $0x18] sm:$0xff] %vm2560, %v2543
  %2565 = vst.msk [vmem:[#allocation5 + $0x20] sm:$0xff] %vm2560, %v2545
  %2566 = vst.msk [vmem:[#allocation5 + $0x28] sm:$0xff] %vm2560, %v2547
  %2567 = vst.msk [vmem:[#allocation5 + $0x30] sm:$0xff] %vm2560, %v2549
  %2568 = vst.msk [vmem:[#allocation5 + $0x38] sm:$0xff] %vm2560, %v2551
  %2569 = vrot.lane.b32.xlu0 %v2520, 6
  %v2570 = vpop.permute.xlu0 %2569
  %2571 = vrot.lane.b32.xlu0 %v2521, 6
  %v2572 = vpop.permute.xlu0 %2571
  %2573 = vrot.lane.b32.xlu0 %v2522, 6
  %v2574 = vpop.permute.xlu0 %2573
  %2575 = vrot.lane.b32.xlu0 %v2523, 6
  %v2576 = vpop.permute.xlu0 %2575
  %2577 = vrot.lane.b32.xlu0 %v2524, 6
  %v2578 = vpop.permute.xlu0 %2577
  %2579 = vrot.lane.b32.xlu0 %v2525, 6
  %v2580 = vpop.permute.xlu0 %2579
  %2581 = vrot.lane.b32.xlu0 %v2526, 6
  %v2582 = vpop.permute.xlu0 %2581
  %2583 = vrot.lane.b32.xlu0 %v2527, 6
  %v2584 = vpop.permute.xlu0 %2583
  %vm2593 = vcmask 605504
  %2594 = vst.msk [vmem:[#allocation5] sm:$0xff] %vm2593, %v2570
  %2595 = vst.msk [vmem:[#allocation5 + $0x8] sm:$0xff] %vm2593, %v2572
  %2596 = vst.msk [vmem:[#allocation5 + $0x10] sm:$0xff] %vm2593, %v2574
  %2597 = vst.msk [vmem:[#allocation5 + $0x18] sm:$0xff] %vm2593, %v2576
  %2598 = vst.msk [vmem:[#allocation5 + $0x20] sm:$0xff] %vm2593, %v2578
  %2599 = vst.msk [vmem:[#allocation5 + $0x28] sm:$0xff] %vm2593, %v2580
  %2600 = vst.msk [vmem:[#allocation5 + $0x30] sm:$0xff] %vm2593, %v2582
  %2601 = vst.msk [vmem:[#allocation5 + $0x38] sm:$0xff] %vm2593, %v2584
  %v2602 = vld [vmem:[#allocation5] sm:$0xff]
  %v2603 = vld [vmem:[#allocation5 + $0x8] sm:$0xff]
  %v2604 = vld [vmem:[#allocation5 + $0x10] sm:$0xff]
  %v2605 = vld [vmem:[#allocation5 + $0x18] sm:$0xff]
  %v2606 = vld [vmem:[#allocation5 + $0x20] sm:$0xff]
  %v2607 = vld [vmem:[#allocation5 + $0x28] sm:$0xff]
  %v2608 = vld [vmem:[#allocation5 + $0x30] sm:$0xff]
  %v2609 = vld [vmem:[#allocation5 + $0x38] sm:$0xff]
  %vm2610 = vcmask 277504
  %2611 = vst.msk [vmem:[#allocation2] sm:$0xff] %vm2610, %v2602
  %2612 = vst.msk [vmem:[#allocation2 + $0x10] sm:$0xff] %vm2610, %v2603
  %2613 = vst.msk [vmem:[#allocation2 + $0x20] sm:$0xff] %vm2610, %v2604
  %2614 = vst.msk [vmem:[#allocation2 + $0x30] sm:$0xff] %vm2610, %v2605
  %2615 = vst.msk [vmem:[#allocation2 + $0x40] sm:$0xff] %vm2610, %v2606
  %2616 = vst.msk [vmem:[#allocation2 + $0x50] sm:$0xff] %vm2610, %v2607
  %2617 = vst.msk [vmem:[#allocation2 + $0x60] sm:$0xff] %vm2610, %v2608
  %2618 = vst.msk [vmem:[#allocation2 + $0x70] sm:$0xff] %vm2610, %v2609
  %v2619 = vld [vmem:[#allocation5] sm:$0xff]
  %v2620 = vld [vmem:[#allocation5 + $0x8] sm:$0xff]
  %v2621 = vld [vmem:[#allocation5 + $0x10] sm:$0xff]
  %v2622 = vld [vmem:[#allocation5 + $0x18] sm:$0xff]
  %v2623 = vld [vmem:[#allocation5 + $0x20] sm:$0xff]
  %v2624 = vld [vmem:[#allocation5 + $0x28] sm:$0xff]
  %v2625 = vld [vmem:[#allocation5 + $0x30] sm:$0xff]
  %v2626 = vld [vmem:[#allocation5 + $0x38] sm:$0xff]
  %2635 = vrot.lane.b32.xlu0 %v2619, 124
  %v2636 = vpop.permute.xlu0 %2635
  %2637 = vrot.lane.b32.xlu0 %v2620, 124
  %v2638 = vpop.permute.xlu0 %2637
  %2639 = vrot.lane.b32.xlu0 %v2621, 124
  %v2640 = vpop.permute.xlu0 %2639
  %2641 = vrot.lane.b32.xlu0 %v2622, 124
  %v2642 = vpop.permute.xlu0 %2641
  %2643 = vrot.lane.b32.xlu0 %v2623, 124
  %v2644 = vpop.permute.xlu0 %2643
  %2645 = vrot.lane.b32.xlu0 %v2624, 124
  %v2646 = vpop.permute.xlu0 %2645
  %2647 = vrot.lane.b32.xlu0 %v2625, 124
  %v2648 = vpop.permute.xlu0 %2647
  %2649 = vrot.lane.b32.xlu0 %v2626, 124
  %v2650 = vpop.permute.xlu0 %2649
  %vm2659 = vcmask 556304
  %2660 = vst.msk [vmem:[#allocation2] sm:$0xff] %vm2659, %v2636
  %2661 = vst.msk [vmem:[#allocation2 + $0x10] sm:$0xff] %vm2659, %v2638
  %2662 = vst.msk [vmem:[#allocation2 + $0x20] sm:$0xff] %vm2659, %v2640
  %2663 = vst.msk [vmem:[#allocation2 + $0x30] sm:$0xff] %vm2659, %v2642
  %2664 = vst.msk [vmem:[#allocation2 + $0x40] sm:$0xff] %vm2659, %v2644
  %2665 = vst.msk [vmem:[#allocation2 + $0x50] sm:$0xff] %vm2659, %v2646
  %2666 = vst.msk [vmem:[#allocation2 + $0x60] sm:$0xff] %vm2659, %v2648
  %2667 = vst.msk [vmem:[#allocation2 + $0x70] sm:$0xff] %vm2659, %v2650
  %v2668 = vld [vmem:[#allocation5] sm:$0xff]
  %v2669 = vld [vmem:[#allocation5 + $0x8] sm:$0xff]
  %v2670 = vld [vmem:[#allocation5 + $0x10] sm:$0xff]
  %v2671 = vld [vmem:[#allocation5 + $0x18] sm:$0xff]
  %v2672 = vld [vmem:[#allocation5 + $0x20] sm:$0xff]
  %v2673 = vld [vmem:[#allocation5 + $0x28] sm:$0xff]
  %v2674 = vld [vmem:[#allocation5 + $0x30] sm:$0xff]
  %v2675 = vld [vmem:[#allocation5 + $0x38] sm:$0xff]
  %2684 = vrot.lane.b32.xlu0 %v2668, 127
  %v2685 = vpop.permute.xlu0 %2684
  %2686 = vrot.lane.b32.xlu0 %v2669, 127
  %v2687 = vpop.permute.xlu0 %2686
  %2688 = vrot.lane.b32.xlu0 %v2670, 127
  %v2689 = vpop.permute.xlu0 %2688
  %2690 = vrot.lane.b32.xlu0 %v2671, 127
  %v2691 = vpop.permute.xlu0 %2690
  %2692 = vrot.lane.b32.xlu0 %v2672, 127
  %v2693 = vpop.permute.xlu0 %2692
  %2694 = vrot.lane.b32.xlu0 %v2673, 127
  %v2695 = vpop.permute.xlu0 %2694
  %2696 = vrot.lane.b32.xlu0 %v2674, 127
  %v2697 = vpop.permute.xlu0 %2696
  %2698 = vrot.lane.b32.xlu0 %v2675, 127
  %v2699 = vpop.permute.xlu0 %2698
  %2708 = vst.msk [vmem:[#allocation2 + $0x80] sm:$0xff] %vm2610, %v2685
  %2709 = vst.msk [vmem:[#allocation2 + $0x90] sm:$0xff] %vm2610, %v2687
  %2710 = vst.msk [vmem:[#allocation2 + $0xa0] sm:$0xff] %vm2610, %v2689
  %2711 = vst.msk [vmem:[#allocation2 + $0xb0] sm:$0xff] %vm2610, %v2691
  %2712 = vst.msk [vmem:[#allocation2 + $0xc0] sm:$0xff] %vm2610, %v2693
  %2713 = vst.msk [vmem:[#allocation2 + $0xd0] sm:$0xff] %vm2610, %v2695
  %2714 = vst.msk [vmem:[#allocation2 + $0xe0] sm:$0xff] %vm2610, %v2697
  %2715 = vst.msk [vmem:[#allocation2 + $0xf0] sm:$0xff] %vm2610, %v2699
  %v2716 = vld [vmem:[#allocation5] sm:$0xff]
  %v2717 = vld [vmem:[#allocation5 + $0x8] sm:$0xff]
  %v2718 = vld [vmem:[#allocation5 + $0x10] sm:$0xff]
  %v2719 = vld [vmem:[#allocation5 + $0x18] sm:$0xff]
  %v2720 = vld [vmem:[#allocation5 + $0x20] sm:$0xff]
  %v2721 = vld [vmem:[#allocation5 + $0x28] sm:$0xff]
  %v2722 = vld [vmem:[#allocation5 + $0x30] sm:$0xff]
  %v2723 = vld [vmem:[#allocation5 + $0x38] sm:$0xff]
  %2732 = vrot.lane.b32.xlu0 %v2716, 123
  %v2733 = vpop.permute.xlu0 %2732
  %2734 = vrot.lane.b32.xlu0 %v2717, 123
  %v2735 = vpop.permute.xlu0 %2734
  %2736 = vrot.lane.b32.xlu0 %v2718, 123
  %v2737 = vpop.permute.xlu0 %2736
  %2738 = vrot.lane.b32.xlu0 %v2719, 123
  %v2739 = vpop.permute.xlu0 %2738
  %2740 = vrot.lane.b32.xlu0 %v2720, 123
  %v2741 = vpop.permute.xlu0 %2740
  %2742 = vrot.lane.b32.xlu0 %v2721, 123
  %v2743 = vpop.permute.xlu0 %2742
  %2744 = vrot.lane.b32.xlu0 %v2722, 123
  %v2745 = vpop.permute.xlu0 %2744
  %2746 = vrot.lane.b32.xlu0 %v2723, 123
  %v2747 = vpop.permute.xlu0 %2746
  %2756 = vst.msk [vmem:[#allocation2 + $0x80] sm:$0xff] %vm2659, %v2733
  %2757 = vst.msk [vmem:[#allocation2 + $0x90] sm:$0xff] %vm2659, %v2735
  %2758 = vst.msk [vmem:[#allocation2 + $0xa0] sm:$0xff] %vm2659, %v2737
  %2759 = vst.msk [vmem:[#allocation2 + $0xb0] sm:$0xff] %vm2659, %v2739
  %2760 = vst.msk [vmem:[#allocation2 + $0xc0] sm:$0xff] %vm2659, %v2741
  %2761 = vst.msk [vmem:[#allocation2 + $0xd0] sm:$0xff] %vm2659, %v2743
  %2762 = vst.msk [vmem:[#allocation2 + $0xe0] sm:$0xff] %vm2659, %v2745
  %2763 = vst.msk [vmem:[#allocation2 + $0xf0] sm:$0xff] %vm2659, %v2747
  %v2764 = vld [vmem:[#allocation5] sm:$0xff]
  %v2765 = vld [vmem:[#allocation5 + $0x8] sm:$0xff]
  %v2766 = vld [vmem:[#allocation5 + $0x10] sm:$0xff]
  %v2767 = vld [vmem:[#allocation5 + $0x18] sm:$0xff]
  %v2768 = vld [vmem:[#allocation5 + $0x20] sm:$0xff]
  %v2769 = vld [vmem:[#allocation5 + $0x28] sm:$0xff]
  %v2770 = vld [vmem:[#allocation5 + $0x30] sm:$0xff]
  %v2771 = vld [vmem:[#allocation5 + $0x38] sm:$0xff]
  %2780 = vrot.lane.b32.xlu0 %v2764, 126
  %v2781 = vpop.permute.xlu0 %2780
  %2782 = vrot.lane.b32.xlu0 %v2765, 126
  %v2783 = vpop.permute.xlu0 %2782
  %2784 = vrot.lane.b32.xlu0 %v2766, 126
  %v2785 = vpop.permute.xlu0 %2784
  %2786 = vrot.lane.b32.xlu0 %v2767, 126
  %v2787 = vpop.permute.xlu0 %2786
  %2788 = vrot.lane.b32.xlu0 %v2768, 126
  %v2789 = vpop.permute.xlu0 %2788
  %2790 = vrot.lane.b32.xlu0 %v2769, 126
  %v2791 = vpop.permute.xlu0 %2790
  %2792 = vrot.lane.b32.xlu0 %v2770, 126
  %v2793 = vpop.permute.xlu0 %2792
  %2794 = vrot.lane.b32.xlu0 %v2771, 126
  %v2795 = vpop.permute.xlu0 %2794
  %2804 = vst.msk [vmem:[#allocation2 + $0x100] sm:$0xff] %vm2610, %v2781
  %2805 = vst.msk [vmem:[#allocation2 + $0x110] sm:$0xff] %vm2610, %v2783
  %2806 = vst.msk [vmem:[#allocation2 + $0x120] sm:$0xff] %vm2610, %v2785
  %2807 = vst.msk [vmem:[#allocation2 + $0x130] sm:$0xff] %vm2610, %v2787
  %2808 = vst.msk [vmem:[#allocation2 + $0x140] sm:$0xff] %vm2610, %v2789
  %2809 = vst.msk [vmem:[#allocation2 + $0x150] sm:$0xff] %vm2610, %v2791
  %2810 = vst.msk [vmem:[#allocation2 + $0x160] sm:$0xff] %vm2610, %v2793
  %2811 = vst.msk [vmem:[#allocation2 + $0x170] sm:$0xff] %vm2610, %v2795
  %v2812 = vld [vmem:[#allocation5] sm:$0xff]
  %v2813 = vld [vmem:[#allocation5 + $0x8] sm:$0xff]
  %v2814 = vld [vmem:[#allocation5 + $0x10] sm:$0xff]
  %v2815 = vld [vmem:[#allocation5 + $0x18] sm:$0xff]
  %v2816 = vld [vmem:[#allocation5 + $0x20] sm:$0xff]
  %v2817 = vld [vmem:[#allocation5 + $0x28] sm:$0xff]
  %v2818 = vld [vmem:[#allocation5 + $0x30] sm:$0xff]
  %v2819 = vld [vmem:[#allocation5 + $0x38] sm:$0xff]
  %2828 = vrot.lane.b32.xlu0 %v2812, 122
  %v2829 = vpop.permute.xlu0 %2828
  %2830 = vrot.lane.b32.xlu0 %v2813, 122
  %v2831 = vpop.permute.xlu0 %2830
  %2832 = vrot.lane.b32.xlu0 %v2814, 122
  %v2833 = vpop.permute.xlu0 %2832
  %2834 = vrot.lane.b32.xlu0 %v2815, 122
  %v2835 = vpop.permute.xlu0 %2834
  %2836 = vrot.lane.b32.xlu0 %v2816, 122
  %v2837 = vpop.permute.xlu0 %2836
  %2838 = vrot.lane.b32.xlu0 %v2817, 122
  %v2839 = vpop.permute.xlu0 %2838
  %2840 = vrot.lane.b32.xlu0 %v2818, 122
  %v2841 = vpop.permute.xlu0 %2840
  %2842 = vrot.lane.b32.xlu0 %v2819, 122
  %v2843 = vpop.permute.xlu0 %2842
  %2852 = vst.msk [vmem:[#allocation2 + $0x100] sm:$0xff] %vm2659, %v2829
  %2853 = vst.msk [vmem:[#allocation2 + $0x110] sm:$0xff] %vm2659, %v2831
  %2854 = vst.msk [vmem:[#allocation2 + $0x120] sm:$0xff] %vm2659, %v2833
  %2855 = vst.msk [vmem:[#allocation2 + $0x130] sm:$0xff] %vm2659, %v2835
  %2856 = vst.msk [vmem:[#allocation2 + $0x140] sm:$0xff] %vm2659, %v2837
  %2857 = vst.msk [vmem:[#allocation2 + $0x150] sm:$0xff] %vm2659, %v2839
  %2858 = vst.msk [vmem:[#allocation2 + $0x160] sm:$0xff] %vm2659, %v2841
  %2859 = vst.msk [vmem:[#allocation2 + $0x170] sm:$0xff] %vm2659, %v2843
  %v2860 = vld [vmem:[#allocation5] sm:$0xff]
  %v2861 = vld [vmem:[#allocation5 + $0x8] sm:$0xff]
  %v2862 = vld [vmem:[#allocation5 + $0x10] sm:$0xff]
  %v2863 = vld [vmem:[#allocation5 + $0x18] sm:$0xff]
  %v2864 = vld [vmem:[#allocation5 + $0x20] sm:$0xff]
  %v2865 = vld [vmem:[#allocation5 + $0x28] sm:$0xff]
  %v2866 = vld [vmem:[#allocation5 + $0x30] sm:$0xff]
  %v2867 = vld [vmem:[#allocation5 + $0x38] sm:$0xff]
  %2876 = vrot.lane.b32.xlu0 %v2860, 125
  %v2877 = vpop.permute.xlu0 %2876
  %2878 = vrot.lane.b32.xlu0 %v2861, 125
  %v2879 = vpop.permute.xlu0 %2878
  %2880 = vrot.lane.b32.xlu0 %v2862, 125
  %v2881 = vpop.permute.xlu0 %2880
  %2882 = vrot.lane.b32.xlu0 %v2863, 125
  %v2883 = vpop.permute.xlu0 %2882
  %2884 = vrot.lane.b32.xlu0 %v2864, 125
  %v2885 = vpop.permute.xlu0 %2884
  %2886 = vrot.lane.b32.xlu0 %v2865, 125
  %v2887 = vpop.permute.xlu0 %2886
  %2888 = vrot.lane.b32.xlu0 %v2866, 125
  %v2889 = vpop.permute.xlu0 %2888
  %2890 = vrot.lane.b32.xlu0 %v2867, 125
  %v2891 = vpop.permute.xlu0 %2890
  %2900 = vst.msk [vmem:[#allocation2 + $0x180] sm:$0xff] %vm2610, %v2877
  %2901 = vst.msk [vmem:[#allocation2 + $0x190] sm:$0xff] %vm2610, %v2879
  %2902 = vst.msk [vmem:[#allocation2 + $0x1a0] sm:$0xff] %vm2610, %v2881
  %2903 = vst.msk [vmem:[#allocation2 + $0x1b0] sm:$0xff] %vm2610, %v2883
  %2904 = vst.msk [vmem:[#allocation2 + $0x1c0] sm:$0xff] %vm2610, %v2885
  %2905 = vst.msk [vmem:[#allocation2 + $0x1d0] sm:$0xff] %vm2610, %v2887
  %2906 = vst.msk [vmem:[#allocation2 + $0x1e0] sm:$0xff] %vm2610, %v2889
  %2907 = vst.msk [vmem:[#allocation2 + $0x1f0] sm:$0xff] %vm2610, %v2891
  %v2908 = vld [vmem:[#allocation5] sm:$0xff]
  %v2909 = vld [vmem:[#allocation5 + $0x8] sm:$0xff]
  %v2910 = vld [vmem:[#allocation5 + $0x10] sm:$0xff]
  %v2911 = vld [vmem:[#allocation5 + $0x18] sm:$0xff]
  %v2912 = vld [vmem:[#allocation5 + $0x20] sm:$0xff]
  %v2913 = vld [vmem:[#allocation5 + $0x28] sm:$0xff]
  %v2914 = vld [vmem:[#allocation5 + $0x30] sm:$0xff]
  %v2915 = vld [vmem:[#allocation5 + $0x38] sm:$0xff]
  %2924 = vrot.lane.b32.xlu0 %v2908, 121
  %v2925 = vpop.permute.xlu0 %2924
  %2926 = vrot.lane.b32.xlu0 %v2909, 121
  %v2927 = vpop.permute.xlu0 %2926
  %2928 = vrot.lane.b32.xlu0 %v2910, 121
  %v2929 = vpop.permute.xlu0 %2928
  %2930 = vrot.lane.b32.xlu0 %v2911, 121
  %v2931 = vpop.permute.xlu0 %2930
  %2932 = vrot.lane.b32.xlu0 %v2912, 121
  %v2933 = vpop.permute.xlu0 %2932
  %2934 = vrot.lane.b32.xlu0 %v2913, 121
  %v2935 = vpop.permute.xlu0 %2934
  %2936 = vrot.lane.b32.xlu0 %v2914, 121
  %v2937 = vpop.permute.xlu0 %2936
  %2938 = vrot.lane.b32.xlu0 %v2915, 121
  %v2939 = vpop.permute.xlu0 %2938
  %2948 = vst.msk [vmem:[#allocation2 + $0x180] sm:$0xff] %vm2659, %v2925
  %2949 = vst.msk [vmem:[#allocation2 + $0x190] sm:$0xff] %vm2659, %v2927
  %2950 = vst.msk [vmem:[#allocation2 + $0x1a0] sm:$0xff] %vm2659, %v2929
  %2951 = vst.msk [vmem:[#allocation2 + $0x1b0] sm:$0xff] %vm2659, %v2931
  %2952 = vst.msk [vmem:[#allocation2 + $0x1c0] sm:$0xff] %vm2659, %v2933
  %2953 = vst.msk [vmem:[#allocation2 + $0x1d0] sm:$0xff] %vm2659, %v2935
  %2954 = vst.msk [vmem:[#allocation2 + $0x1e0] sm:$0xff] %vm2659, %v2937
  %2955 = vst.msk [vmem:[#allocation2 + $0x1f0] sm:$0xff] %vm2659, %v2939
  %v2956 = vld [vmem:[#allocation5] sm:$0xff]
  %v2957 = vld [vmem:[#allocation5 + $0x8] sm:$0xff]
  %v2958 = vld [vmem:[#allocation5 + $0x10] sm:$0xff]
  %v2959 = vld [vmem:[#allocation5 + $0x18] sm:$0xff]
  %v2960 = vld [vmem:[#allocation5 + $0x20] sm:$0xff]
  %v2961 = vld [vmem:[#allocation5 + $0x28] sm:$0xff]
  %v2962 = vld [vmem:[#allocation5 + $0x30] sm:$0xff]
  %v2963 = vld [vmem:[#allocation5 + $0x38] sm:$0xff]
  %2972 = vrot.lane.b32.xlu0 %v2956, 124
  %v2973 = vpop.permute.xlu0 %2972
  %2974 = vrot.lane.b32.xlu0 %v2957, 124
  %v2975 = vpop.permute.xlu0 %2974
  %2976 = vrot.lane.b32.xlu0 %v2958, 124
  %v2977 = vpop.permute.xlu0 %2976
  %2978 = vrot.lane.b32.xlu0 %v2959, 124
  %v2979 = vpop.permute.xlu0 %2978
  %2980 = vrot.lane.b32.xlu0 %v2960, 124
  %v2981 = vpop.permute.xlu0 %2980
  %2982 = vrot.lane.b32.xlu0 %v2961, 124
  %v2983 = vpop.permute.xlu0 %2982
  %2984 = vrot.lane.b32.xlu0 %v2962, 124
  %v2985 = vpop.permute.xlu0 %2984
  %2986 = vrot.lane.b32.xlu0 %v2963, 124
  %v2987 = vpop.permute.xlu0 %2986
  %2996 = vst.msk [vmem:[#allocation2 + $0x200] sm:$0xff] %vm2610, %v2973
  %2997 = vst.msk [vmem:[#allocation2 + $0x210] sm:$0xff] %vm2610, %v2975
  %2998 = vst.msk [vmem:[#allocation2 + $0x220] sm:$0xff] %vm2610, %v2977
  %2999 = vst.msk [vmem:[#allocation2 + $0x230] sm:$0xff] %vm2610, %v2979
  %3000 = vst.msk [vmem:[#allocation2 + $0x240] sm:$0xff] %vm2610, %v2981
  %3001 = vst.msk [vmem:[#allocation2 + $0x250] sm:$0xff] %vm2610, %v2983
  %3002 = vst.msk [vmem:[#allocation2 + $0x260] sm:$0xff] %vm2610, %v2985
  %3003 = vst.msk [vmem:[#allocation2 + $0x270] sm:$0xff] %vm2610, %v2987
  %v3004 = vld [vmem:[#allocation5] sm:$0xff]
  %v3005 = vld [vmem:[#allocation5 + $0x8] sm:$0xff]
  %v3006 = vld [vmem:[#allocation5 + $0x10] sm:$0xff]
  %v3007 = vld [vmem:[#allocation5 + $0x18] sm:$0xff]
  %v3008 = vld [vmem:[#allocation5 + $0x20] sm:$0xff]
  %v3009 = vld [vmem:[#allocation5 + $0x28] sm:$0xff]
  %v3010 = vld [vmem:[#allocation5 + $0x30] sm:$0xff]
  %v3011 = vld [vmem:[#allocation5 + $0x38] sm:$0xff]
  %3020 = vrot.lane.b32.xlu0 %v3004, 120
  %v3021 = vpop.permute.xlu0 %3020
  %3022 = vrot.lane.b32.xlu0 %v3005, 120
  %v3023 = vpop.permute.xlu0 %3022
  %3024 = vrot.lane.b32.xlu0 %v3006, 120
  %v3025 = vpop.permute.xlu0 %3024
  %3026 = vrot.lane.b32.xlu0 %v3007, 120
  %v3027 = vpop.permute.xlu0 %3026
  %3028 = vrot.lane.b32.xlu0 %v3008, 120
  %v3029 = vpop.permute.xlu0 %3028
  %3030 = vrot.lane.b32.xlu0 %v3009, 120
  %v3031 = vpop.permute.xlu0 %3030
  %3032 = vrot.lane.b32.xlu0 %v3010, 120
  %v3033 = vpop.permute.xlu0 %3032
  %3034 = vrot.lane.b32.xlu0 %v3011, 120
  %v3035 = vpop.permute.xlu0 %3034
  %3044 = vst.msk [vmem:[#allocation2 + $0x200] sm:$0xff] %vm2659, %v3021
  %3045 = vst.msk [vmem:[#allocation2 + $0x210] sm:$0xff] %vm2659, %v3023
  %3046 = vst.msk [vmem:[#allocation2 + $0x220] sm:$0xff] %vm2659, %v3025
  %3047 = vst.msk [vmem:[#allocation2 + $0x230] sm:$0xff] %vm2659, %v3027
  %3048 = vst.msk [vmem:[#allocation2 + $0x240] sm:$0xff] %vm2659, %v3029
  %3049 = vst.msk [vmem:[#allocation2 + $0x250] sm:$0xff] %vm2659, %v3031
  %3050 = vst.msk [vmem:[#allocation2 + $0x260] sm:$0xff] %vm2659, %v3033
  %3051 = vst.msk [vmem:[#allocation2 + $0x270] sm:$0xff] %vm2659, %v3035
  %v3052 = vld [vmem:[%s1 + $0x14] sm:$0xff]
  %v3053 = vld [vmem:[%s1 + $0x1c] sm:$0xf]
  %v3054 = vld [vmem:[%s1 + $0x40] sm:$0xff]
  %v3055 = vld [vmem:[%s1 + $0x48] sm:$0xf]
  %v3056 = vld [vmem:[%s1 + $0x6c] sm:$0xff]
  %v3057 = vld [vmem:[%s1 + $0x74] sm:$0xf]
  %v3058 = vld [vmem:[%s1 + $0x98] sm:$0xff]
  %v3059 = vld [vmem:[%s1 + $0xa0] sm:$0xf]
  %v3060 = vld [vmem:[#allocation2] sm:$0xff]
  %v3061 = vld [vmem:[#allocation2 + $0x10] sm:$0xff]
  %v3062 = vld [vmem:[#allocation2 + $0x20] sm:$0xff]
  %v3063 = vld [vmem:[#allocation2 + $0x30] sm:$0xff]
  %v3064 = vld [vmem:[#allocation2 + $0x40] sm:$0xff]
  %v3065 = vld [vmem:[#allocation2 + $0x50] sm:$0xff]
  %v3066 = vld [vmem:[#allocation2 + $0x60] sm:$0xff]
  %v3067 = vld [vmem:[#allocation2 + $0x70] sm:$0xff]
  %v3068 = vld [vmem:[#allocation2 + $0x80] sm:$0xff]
  %v3069 = vld [vmem:[#allocation2 + $0x90] sm:$0xff]
  %v3070 = vld [vmem:[#allocation2 + $0xa0] sm:$0xff]
  %v3071 = vld [vmem:[#allocation2 + $0xb0] sm:$0xff]
  %v3072 = vld [vmem:[#allocation2 + $0xc0] sm:$0xff]
  %v3073 = vld [vmem:[#allocation2 + $0xd0] sm:$0xff]
  %v3074 = vld [vmem:[#allocation2 + $0xe0] sm:$0xff]
  %v3075 = vld [vmem:[#allocation2 + $0xf0] sm:$0xff]
  %v3076 = vld [vmem:[#allocation2 + $0x100] sm:$0xff]
  %v3077 = vld [vmem:[#allocation2 + $0x110] sm:$0xff]
  %v3078 = vld [vmem:[#allocation2 + $0x120] sm:$0xff]
  %v3079 = vld [vmem:[#allocation2 + $0x130] sm:$0xff]
  %v3080 = vld [vmem:[#allocation2 + $0x140] sm:$0xff]
  %v3081 = vld [vmem:[#allocation2 + $0x150] sm:$0xff]
  %v3082 = vld [vmem:[#allocation2 + $0x160] sm:$0xff]
  %v3083 = vld [vmem:[#allocation2 + $0x170] sm:$0xff]
  %v3084 = vld [vmem:[#allocation2 + $0x180] sm:$0xff]
  %v3085 = vld [vmem:[#allocation2 + $0x190] sm:$0xff]
  %v3086 = vld [vmem:[#allocation2 + $0x1a0] sm:$0xff]
  %v3087 = vld [vmem:[#allocation2 + $0x1b0] sm:$0xff]
  %v3088 = vld [vmem:[#allocation2 + $0x1c0] sm:$0xff]
  %v3089 = vld [vmem:[#allocation2 + $0x1d0] sm:$0xff]
  %v3090 = vld [vmem:[#allocation2 + $0x1e0] sm:$0xff]
  %v3091 = vld [vmem:[#allocation2 + $0x1f0] sm:$0xff]
  %v3092 = vld [vmem:[#allocation2 + $0x200] sm:$0xff]
  %v3093 = vld [vmem:[#allocation2 + $0x210] sm:$0xff]
  %v3094 = vld [vmem:[#allocation2 + $0x220] sm:$0xff]
  %v3095 = vld [vmem:[#allocation2 + $0x230] sm:$0xff]
  %v3096 = vld [vmem:[#allocation2 + $0x240] sm:$0xff]
  %v3097 = vld [vmem:[#allocation2 + $0x250] sm:$0xff]
  %v3098 = vld [vmem:[#allocation2 + $0x260] sm:$0xff]
  %v3099 = vld [vmem:[#allocation2 + $0x270] sm:$0xff]
  %v3100 = vpack.c.bf16 %v3061, %v3060
  %v3101 = vpack.c.bf16 %v3063, %v3062
  %v3102 = vpack.c.bf16 %v3065, %v3064
  %v3103 = vpack.c.bf16 %v3067, %v3066
  %v3104 = vpack.c.bf16 %v3069, %v3068
  %v3105 = vpack.c.bf16 %v3071, %v3070
  %v3106 = vpack.c.bf16 %v3073, %v3072
  %v3107 = vpack.c.bf16 %v3075, %v3074
  %v3108 = vpack.c.bf16 %v3077, %v3076
  %v3109 = vpack.c.bf16 %v3079, %v3078
  %v3110 = vpack.c.bf16 %v3081, %v3080
  %v3111 = vpack.c.bf16 %v3083, %v3082
  %v3112 = vpack.c.bf16 %v3085, %v3084
  %v3113 = vpack.c.bf16 %v3087, %v3086
  %v3114 = vpack.c.bf16 %v3089, %v3088
  %v3115 = vpack.c.bf16 %v3091, %v3090
  %v3116 = vpack.c.bf16 %v3093, %v3092
  %v3117 = vpack.c.bf16 %v3095, %v3094
  %v3118 = vpack.c.bf16 %v3097, %v3096
  %v3119 = vpack.c.bf16 %v3099, %v3098
  %v3128 = vunpack.c.l.b16 %v3052
  %v3129 = vunpack.c.h.b16 %v3052
  %v3130 = vunpack.c.l.b16 %v3053
  %v3131 = vunpack.c.l.b16 %v3054
  %v3132 = vunpack.c.h.b16 %v3054
  %v3133 = vunpack.c.l.b16 %v3055
  %v3134 = vunpack.c.l.b16 %v3056
  %v3135 = vunpack.c.h.b16 %v3056
  %v3136 = vunpack.c.l.b16 %v3057
  %v3137 = vunpack.c.l.b16 %v3058
  %v3138 = vunpack.c.h.b16 %v3058
  %v3139 = vunpack.c.l.b16 %v3059
  %v3140 = vpack.c.b16 %v3131, %v3128
  %v3141 = vpack.c.b16 %v3132, %v3129
  %v3142 = vpack.c.b16 %v3133, %v3130
  %v3143 = vpack.c.b16 %v3137, %v3134
  %v3144 = vpack.c.b16 %v3138, %v3135
  %v3145 = vpack.c.b16 %v3139, %v3136
  %v3151 = vsel %vm1842, %v3142, 0
  %v3154 = vsel %vm1842, %v3145, 0
  %3156 = vmatprep.subr.bf16.mxu0 0
  %3157 = vmatpush1.bf16.msra.mxu0 %v3100
  %3158 = vmatprep.subr.bf16.mxu0 0
  %3159 = vmatpush1.bf16.msra.mxu0 %v3101
  %3160 = vmatprep.subr.bf16.mxu0 0
  %3161 = vmatpush1.bf16.msra.mxu0 %v3102
  %3162 = vmatprep.subr.bf16.mxu0 0
  %3163 = vmatpush1.bf16.msra.mxu0 %v3103
  %3164 = vmatprep.subr.bf16.mxu0 0
  %3165 = vmatpush1.bf16.msra.mxu0 %v3104
  %3166 = vmatprep.subr.bf16.mxu0 0
  %3167 = vmatpush1.bf16.msra.mxu0 %v3105
  %3168 = vmatprep.subr.bf16.mxu0 0
  %3169 = vmatpush1.bf16.msra.mxu0 %v3106
  %3170 = vmatprep.subr.bf16.mxu0 0
  %3171 = vmatpush1.bf16.msra.mxu0 %v3107
  %3172 = vmatprep.subr.bf16.mxu0 0
  %3173 = vmatpush1.bf16.msra.mxu0 %v3108
  %3174 = vmatprep.subr.bf16.mxu0 0
  %3175 = vmatpush1.bf16.msra.mxu0 %v3109
  %3176 = vmatprep.subr.bf16.mxu0 0
  %3177 = vmatpush1.bf16.msra.mxu0 %v3110
  %3178 = vmatprep.subr.bf16.mxu0 0
  %3179 = vmatpush1.bf16.msra.mxu0 %v3111
  %3180 = vmatprep.subr.bf16.mxu0 0
  %3181 = vmatpush1.bf16.msra.mxu0 %v3112
  %3182 = vmatprep.subr.bf16.mxu0 0
  %3183 = vmatpush1.bf16.msra.mxu0 %v3113
  %3184 = vmatprep.subr.bf16.mxu0 0
  %3185 = vmatpush1.bf16.msra.mxu0 %v3114
  %3186 = vmatprep.subr.bf16.mxu0 0
  %3187 = vmatpush1.bf16.msra.mxu0 %v3115
  %3188 = vmatprep.mubr.bf16.mxu0 %v3141
  %3189 = vmatmul.mubr.bf16.gmra.mrb[0].mxu0 %v3140
  %v3190 = vpop.f32.mrb[0].mxu0
  %v3191 = vadd.f32 0.0, %v3190
  %v3192 = vpop.f32.mrb[0].mxu0
  %v3193 = vpop.f32.mrb[0].mxu0
  %v3194 = vadd.f32 0.0, %v3193
  %v3195 = vpop.f32.mrb[0].mxu0
  %3196 = vmatprep.mubr.bf16.mxu0 %v3144
  %3197 = vmatmul.mubr.bf16.gmra.mrb[0].mxu0 %v3143
  %v3198 = vpop.f32.mrb[0].mxu0
  %v3199 = vadd.f32 0.0, %v3198
  %v3200 = vpop.f32.mrb[0].mxu0
  %v3201 = vpop.f32.mrb[0].mxu0
  %v3202 = vadd.f32 0.0, %v3201
  %v3203 = vpop.f32.mrb[0].mxu0
  %3204 = vdwg.mxu0
  %3205 = vmatprep.subr.bf16.mxu0 0
  %3206 = vmatpush1.bf16.msra.mxu0 %v3116
  %3207 = vmatprep.subr.bf16.mxu0 0
  %3208 = vmatpush1.bf16.msra.mxu0 %v3117
  %3209 = vmatprep.subr.bf16.mxu0 0
  %3210 = vmatpush1.bf16.msra.mxu0 %v3118
  %3211 = vmatprep.subr.bf16.mxu0 0
  %3212 = vmatpush1.bf16.msra.mxu0 %v3119
  %3213 = vmatprep.subr.bf16.mxu0 0
  %3214 = vmatpush1.bf16.msra.mxu0 0
  %3215 = vmatprep.subr.bf16.mxu0 0
  %3216 = vmatpush1.bf16.msra.mxu0 0
  %3217 = vmatprep.subr.bf16.mxu0 0
  %3218 = vmatpush1.bf16.msra.mxu0 0
  %3219 = vmatprep.subr.bf16.mxu0 0
  %3220 = vmatpush1.bf16.msra.mxu0 0
  %3221 = vmatprep.subr.bf16.mxu0 0
  %3222 = vmatpush1.bf16.msra.mxu0 0
  %3223 = vmatprep.subr.bf16.mxu0 0
  %3224 = vmatpush1.bf16.msra.mxu0 0
  %3225 = vmatprep.subr.bf16.mxu0 0
  %3226 = vmatpush1.bf16.msra.mxu0 0
  %3227 = vmatprep.subr.bf16.mxu0 0
  %3228 = vmatpush1.bf16.msra.mxu0 0
  %3229 = vmatprep.subr.bf16.mxu0 0
  %3230 = vmatpush1.bf16.msra.mxu0 0
  %3231 = vmatprep.subr.bf16.mxu0 0
  %3232 = vmatpush1.bf16.msra.mxu0 0
  %3233 = vmatprep.subr.bf16.mxu0 0
  %3234 = vmatpush1.bf16.msra.mxu0 0
  %3235 = vmatprep.subr.bf16.mxu0 0
  %3236 = vmatpush1.bf16.msra.mxu0 0
  %3237 = vmatprep.mubr.bf16.mxu0 0
  %3238 = vmatmul.mubr.bf16.gmra.mrb[0].mxu0 %v3151
  %v3239 = vpop.f32.mrb[0].mxu0
  %v3240 = vadd.f32 %v3191, %v3239
  %v3241 = vpop.f32.mrb[0].mxu0
  %v3242 = vpop.f32.mrb[0].mxu0
  %v3243 = vadd.f32 %v3194, %v3242
  %v3244 = vpop.f32.mrb[0].mxu0
  %3245 = vmatprep.mubr.bf16.mxu0 0
  %3246 = vmatmul.mubr.bf16.gmra.mrb[0].mxu0 %v3154
  %v3247 = vpop.f32.mrb[0].mxu0
  %v3248 = vadd.f32 %v3199, %v3247
  %v3249 = vpop.f32.mrb[0].mxu0
  %v3250 = vpop.f32.mrb[0].mxu0
  %v3251 = vadd.f32 %v3202, %v3250
  %v3252 = vpop.f32.mrb[0].mxu0
  %3253 = vdwg.mxu0
  %vm3254 = vcmp.lt.s32.totalorder %v2020, 17
  %vm3255 = vmand %vm2021, %vm3254
  %vm3256 = vmand %vm3255, %vm2025
  %vm3257 = vmand %vm3255, %vm2026
  %vm3258 = vmand %vm3255, %vm2027
  %vm3259 = vmand %vm3255, %vm2028
  %vm3260 = vmand %vm3255, %vm2029
  %vm3261 = vmand %vm3255, %vm2030
  %vm3262 = vmand %vm3255, %vm2031
  %vm3263 = vmand %vm3255, %vm2032
  %vm3264 = vmand %vm3255, %vm2033
  %v3265 = vsub.s32 %v2020, 17
  %vm3266 = vcmp.ge.s32.totalorder %v3265, 0
  %vm3267 = vcmp.lt.s32.totalorder %v3265, 17
  %vm3268 = vmand %vm3266, %vm3267
  %v3269 = vmul.u32 %v3265, 2
  %v3270 = vadd.s32 %v3269, 34
  %vm3271 = vcmp.eq.s32.totalorder %v2002, %v3270
  %vm3272 = vcmp.eq.s32.totalorder %v2003, %v3270
  %vm3273 = vcmp.eq.s32.totalorder %v2004, %v3270
  %vm3274 = vcmp.eq.s32.totalorder %v2005, %v3270
  %vm3275 = vcmp.eq.s32.totalorder %v2006, %v3270
  %vm3276 = vcmp.eq.s32.totalorder %v2007, %v3270
  %vm3277 = vcmp.eq.s32.totalorder %v2008, %v3270
  %vm3278 = vcmp.eq.s32.totalorder %v2009, %v3270
  %vm3279 = vcmp.eq.s32.totalorder %v2010, %v3270
  %vm3280 = vmand %vm3268, %vm3271
  %vm3281 = vmand %vm3268, %vm3272
  %vm3282 = vmand %vm3268, %vm3273
  %vm3283 = vmand %vm3268, %vm3274
  %vm3284 = vmand %vm3268, %vm3275
  %vm3285 = vmand %vm3268, %vm3276
  %vm3286 = vmand %vm3268, %vm3277
  %vm3287 = vmand %vm3268, %vm3278
  %vm3288 = vmand %vm3268, %vm3279
  %vm3289 = vmor %vm3256, %vm3280
  %vm3290 = vmor %vm3257, %vm3281
  %vm3291 = vmor %vm3258, %vm3282
  %vm3292 = vmor %vm3259, %vm3283
  %vm3293 = vmor %vm3260, %vm3284
  %vm3294 = vmor %vm3261, %vm3285
  %vm3295 = vmor %vm3262, %vm3286
  %vm3296 = vmor %vm3263, %vm3287
  %vm3297 = vmor %vm3264, %vm3288
  %v3298 = vsel %vm3289, 1, 0
  %v3299 = vsel %vm3290, 1, 0
  %v3300 = vsel %vm3291, 1, 0
  %v3301 = vsel %vm3292, 1, 0
  %v3302 = vsel %vm3293, 1, 0
  %v3303 = vsel %vm3294, 1, 0
  %v3304 = vsel %vm3295, 1, 0
  %v3305 = vsel %vm3296, 1, 0
  %v3306 = vsel %vm3297, 1, 0
  %v3307 = vcvt.s32.f32 %v3298
  %v3308 = vcvt.s32.f32 %v3299
  %v3309 = vcvt.s32.f32 %v3300
  %v3310 = vcvt.s32.f32 %v3301
  %v3311 = vcvt.s32.f32 %v3302
  %v3312 = vcvt.s32.f32 %v3303
  %v3313 = vcvt.s32.f32 %v3304
  %v3314 = vcvt.s32.f32 %v3305
  %v3315 = vcvt.s32.f32 %v3306
  %v3316 = vld [vmem:[%s2] sm:$0xff]
  %v3317 = vld [vmem:[%s2 + $0x8] sm:$0xff]
  %v3318 = vld [vmem:[%s2 + $0x10] sm:$0xff]
  %v3319 = vld [vmem:[%s2 + $0x18] sm:$0xff]
  %3321 = vset.pattern.permute.xlu0 6
  %3322 = vperm.xlu0 %3321, %v3316
  %v3323 = vpop.permute.xlu0 %3322
  %3326 = vset.pattern.permute.xlu0 6
  %3327 = vperm.xlu0 %3326, %v3317
  %v3328 = vpop.permute.xlu0 %3327
  %3331 = vset.pattern.permute.xlu0 6
  %3332 = vperm.xlu0 %3331, %v3318
  %v3333 = vpop.permute.xlu0 %3332
  %3336 = vset.pattern.permute.xlu0 6
  %3337 = vperm.xlu0 %3336, %v3319
  %v3338 = vpop.permute.xlu0 %3337
  %v3341 = vsel %vm551, %v3240, 0
  %v3344 = vsel %vm551, %v3243, 0
  %v3347 = vsel %vm551, %v3248, 0
  %v3350 = vsel %vm551, %v3251, 0
  %vm3352 = vcmask 1043456
  %v3354 = vsel %vm3352, %v3315, 0
  %3356 = vmatprep.subr.mxu0 0.0
  %3357 = vmatpush1.msra.mxu0 %v3307
  %3358 = vmatprep.subr.mxu0 0.0
  %3359 = vmatpush1.msra.mxu0 %v3308
  %3360 = vmatprep.subr.mxu0 0.0
  %3361 = vmatpush1.msra.mxu0 %v3309
  %3362 = vmatprep.subr.mxu0 0.0
  %3363 = vmatpush1.msra.mxu0 %v3310
  %3364 = vmatprep.subr.mxu0 0.0
  %3365 = vmatpush1.msra.mxu0 %v3311
  %3366 = vmatprep.subr.mxu0 0.0
  %3367 = vmatpush1.msra.mxu0 %v3312
  %3368 = vmatprep.subr.mxu0 0.0
  %3369 = vmatpush1.msra.mxu0 %v3313
  %3370 = vmatprep.subr.mxu0 0.0
  %3371 = vmatpush1.msra.mxu0 %v3314
  %3372 = vmatprep.subr.mxu0 0.0
  %3373 = vmatpush1.msra.mxu0 %v3354
  %3374 = vmatprep.subr.mxu0 0.0
  %3375 = vmatpush1.msra.mxu0 0.0
  %3376 = vmatprep.subr.mxu0 0.0
  %3377 = vmatpush1.msra.mxu0 0.0
  %3378 = vmatprep.subr.mxu0 0.0
  %3379 = vmatpush1.msra.mxu0 0.0
  %3380 = vmatprep.subr.mxu0 0.0
  %3381 = vmatpush1.msra.mxu0 0.0
  %3382 = vmatprep.subr.mxu0 0.0
  %3383 = vmatpush1.msra.mxu0 0.0
  %3384 = vmatprep.subr.mxu0 0.0
  %3385 = vmatpush1.msra.mxu0 0.0
  %3386 = vmatprep.subr.mxu0 0.0
  %3387 = vmatpush1.msra.mxu0 0.0
  %3388 = vmatprep.subr.mxu0 0.0
  %3389 = vmatpush1.msra.mxu0 0.0
  %3390 = vmatprep.subr.mxu0 0.0
  %3391 = vmatpush1.msra.mxu0 0.0
  %3392 = vmatprep.subr.mxu0 0.0
  %3393 = vmatpush1.msra.mxu0 0.0
  %3394 = vmatprep.subr.mxu0 0.0
  %3395 = vmatpush1.msra.mxu0 0.0
  %3396 = vmatprep.subr.mxu0 0.0
  %3397 = vmatpush1.msra.mxu0 0.0
  %3398 = vmatprep.subr.mxu0 0.0
  %3399 = vmatpush1.msra.mxu0 0.0
  %3400 = vmatprep.subr.mxu0 0.0
  %3401 = vmatpush1.msra.mxu0 0.0
  %3402 = vmatprep.subr.mxu0 0.0
  %3403 = vmatpush1.msra.mxu0 0.0
  %3404 = vmatprep.subr.mxu0 0.0
  %3405 = vmatpush1.msra.mxu0 0.0
  %3406 = vmatprep.subr.mxu0 0.0
  %3407 = vmatpush1.msra.mxu0 0.0
  %3408 = vmatprep.subr.mxu0 0.0
  %3409 = vmatpush1.msra.mxu0 0.0
  %3410 = vmatprep.subr.mxu0 0.0
  %3411 = vmatpush1.msra.mxu0 0.0
  %3412 = vmatprep.subr.mxu0 0.0
  %3413 = vmatpush1.msra.mxu0 0.0
  %3414 = vmatprep.subr.mxu0 0.0
  %3415 = vmatpush1.msra.mxu0 0.0
  %3416 = vmatprep.subr.mxu0 0.0
  %3417 = vmatpush1.msra.mxu0 0.0
  %3418 = vmatprep.subr.mxu0 0.0
  %3419 = vmatpush1.msra.mxu0 0.0
  %3420 = vmatprep.mubr.f32.mxu0 0.0
  %3421 = vmatmul.mubr.f32.gmra.mrb[0].mxu0 %v3341
  %v3422 = vpop.f32.mrb[0].mxu0
  %v3423 = vadd.f32 %v3323, %v3422
  %v3424 = vpop.f32.mrb[0].mxu0
  %3425 = vmatprep.mubr.f32.mxu0 0.0
  %3426 = vmatmul.mubr.f32.gmra.mrb[0].mxu0 %v3344
  %v3427 = vpop.f32.mrb[0].mxu0
  %v3428 = vadd.f32 %v3328, %v3427
  %v3429 = vpop.f32.mrb[0].mxu0
  %3430 = vmatprep.mubr.f32.mxu0 0.0
  %3431 = vmatmul.mubr.f32.gmra.mrb[0].mxu0 %v3347
  %v3432 = vpop.f32.mrb[0].mxu0
  %v3433 = vadd.f32 %v3333, %v3432
  %v3434 = vpop.f32.mrb[0].mxu0
  %3435 = vmatprep.mubr.f32.mxu0 0.0
  %3436 = vmatmul.mubr.f32.gmra.mrb[0].mxu0 %v3350
  %v3437 = vpop.f32.mrb[0].mxu0
  %v3438 = vadd.f32 %v3338, %v3437
  %v3439 = vpop.f32.mrb[0].mxu0
  %3440 = vdwg.mxu0
  %v3441 = vsel %vm2610, %v3423, 0.0
  %3442 = vadd.xlane.f32.xlu0 %v3441
  %v3443 = vpop.xlane.xlu0 %3442
  %v3444 = vsel %vm2610, %v3428, 0.0
  %3445 = vadd.xlane.f32.xlu0 %v3444
  %v3446 = vpop.xlane.xlu0 %3445
  %v3447 = vsel %vm2610, %v3433, 0.0
  %3448 = vadd.xlane.f32.xlu0 %v3447
  %v3449 = vpop.xlane.xlu0 %3448
  %v3450 = vsel %vm2610, %v3438, 0.0
  %3451 = vadd.xlane.f32.xlu0 %v3450
  %v3452 = vpop.xlane.xlu0 %3451
  %v3453 = vrcp.pop 34.0
  %v3454 = vmul.f32 %v3443, %v3453
  %v3455 = vmul.f32 %v3446, %v3453
  %v3456 = vmul.f32 %v3449, %v3453
  %v3457 = vmul.f32 %v3452, %v3453
  %v3458 = vsub.f32 %v3423, %v3454
  %v3459 = vsub.f32 %v3428, %v3455
  %v3460 = vsub.f32 %v3433, %v3456
  %v3461 = vsub.f32 %v3438, %v3457
  %v3462 = vmul.f32 %v3458, %v3458
  %v3463 = vmul.f32 %v3459, %v3459
  %v3464 = vmul.f32 %v3460, %v3460
  %v3465 = vmul.f32 %v3461, %v3461
  %v3466 = vsel %vm2610, %v3462, 0.0
  %3467 = vadd.xlane.f32.xlu0 %v3466
  %v3468 = vpop.xlane.xlu0 %3467
  %v3469 = vsel %vm2610, %v3463, 0.0
  %3470 = vadd.xlane.f32.xlu0 %v3469
  %v3471 = vpop.xlane.xlu0 %3470
  %v3472 = vsel %vm2610, %v3464, 0.0
  %3473 = vadd.xlane.f32.xlu0 %v3472
  %v3474 = vpop.xlane.xlu0 %3473
  %v3475 = vsel %vm2610, %v3465, 0.0
  %3476 = vadd.xlane.f32.xlu0 %v3475
  %v3477 = vpop.xlane.xlu0 %3476
  %v3478 = vmul.f32 %v3468, %v3453
  %v3479 = vmul.f32 %v3471, %v3453
  %v3480 = vmul.f32 %v3474, %v3453
  %v3481 = vmul.f32 %v3477, %v3453
  %v3482 = vadd.f32 %v3478, 1e-05
  %v3483 = vadd.f32 %v3479, 1e-05
  %v3484 = vadd.f32 %v3480, 1e-05
  %v3485 = vadd.f32 %v3481, 1e-05
  %v3486 = vrsqrt.pop %v3482
  %v3487 = vrsqrt.pop %v3483
  %v3488 = vrsqrt.pop %v3484
  %v3489 = vrsqrt.pop %v3485
  %v3490 = vmul.f32 %v3316, %v3486
  %v3491 = vmul.f32 %v3317, %v3487
  %v3492 = vmul.f32 %v3318, %v3488
  %v3493 = vmul.f32 %v3319, %v3489
  %3495 = vset.pattern.permute.xlu0 7
  %3496 = vperm.xlu0 %3495, %v3490
  %v3497 = vpop.permute.xlu0 %3496
  %3500 = vset.pattern.permute.xlu0 7
  %3501 = vperm.xlu0 %3500, %v3491
  %v3502 = vpop.permute.xlu0 %3501
  %3505 = vset.pattern.permute.xlu0 7
  %3506 = vperm.xlu0 %3505, %v3492
  %v3507 = vpop.permute.xlu0 %3506
  %3510 = vset.pattern.permute.xlu0 7
  %3511 = vperm.xlu0 %3510, %v3493
  %v3512 = vpop.permute.xlu0 %3511
  %v3514 = vmul.f32 %v3458, %v3497
  %v3515 = vmul.f32 %v3459, %v3502
  %v3516 = vmul.f32 %v3460, %v3507
  %v3517 = vmul.f32 %v3461, %v3512
  %3518 = vset.pattern.permute.xlu0 8
  %3519 = vperm.xlu0 %3518, %v3316
  %v3520 = vpop.permute.xlu0 %3519
  %3522 = vset.pattern.permute.xlu0 8
  %3523 = vperm.xlu0 %3522, %v3317
  %v3524 = vpop.permute.xlu0 %3523
  %3526 = vset.pattern.permute.xlu0 8
  %3527 = vperm.xlu0 %3526, %v3318
  %v3528 = vpop.permute.xlu0 %3527
  %3530 = vset.pattern.permute.xlu0 8
  %3531 = vperm.xlu0 %3530, %v3319
  %v3532 = vpop.permute.xlu0 %3531
  %v3534 = vadd.f32 %v3514, %v3520
  %v3535 = vadd.f32 %v3515, %v3524
  %v3536 = vadd.f32 %v3516, %v3528
  %v3537 = vadd.f32 %v3517, %v3532
  %v3538 = vmax.f32 %v3534, 0.0
  %v3539 = vmax.f32 %v3535, 0.0
  %v3540 = vmax.f32 %v3536, 0.0
  %v3541 = vmax.f32 %v3537, 0.0
  %3546 = vrot.lane.b32.xlu0 %v3538, 1
  %v3547 = vpop.permute.xlu0 %3546
  %3548 = vrot.lane.b32.xlu0 %v3539, 1
  %v3549 = vpop.permute.xlu0 %3548
  %3550 = vrot.lane.b32.xlu0 %v3540, 1
  %v3551 = vpop.permute.xlu0 %3550
  %3552 = vrot.lane.b32.xlu0 %v3541, 1
  %v3553 = vpop.permute.xlu0 %3552
  %vm3558 = vcmask 146440
  %3559 = vst.msk [vmem:[#allocation6] sm:$0xff] %vm3558, %v3547
  %3560 = vst.msk [vmem:[#allocation6 + $0x8] sm:$0xff] %vm3558, %v3549
  %3561 = vst.msk [vmem:[#allocation6 + $0x10] sm:$0xff] %vm3558, %v3551
  %3562 = vst.msk [vmem:[#allocation6 + $0x18] sm:$0xff] %vm3558, %v3553
  %3563 = vrot.lane.b32.xlu0 %v3538, 3
  %v3564 = vpop.permute.xlu0 %3563
  %3565 = vrot.lane.b32.xlu0 %v3539, 3
  %v3566 = vpop.permute.xlu0 %3565
  %3567 = vrot.lane.b32.xlu0 %v3540, 3
  %v3568 = vpop.permute.xlu0 %3567
  %3569 = vrot.lane.b32.xlu0 %v3541, 3
  %v3570 = vpop.permute.xlu0 %3569
  %vm3575 = vcmask 302240
  %3576 = vst.msk [vmem:[#allocation6] sm:$0xff] %vm3575, %v3564
  %3577 = vst.msk [vmem:[#allocation6 + $0x8] sm:$0xff] %vm3575, %v3566
  %3578 = vst.msk [vmem:[#allocation6 + $0x10] sm:$0xff] %vm3575, %v3568
  %3579 = vst.msk [vmem:[#allocation6 + $0x18] sm:$0xff] %vm3575, %v3570
  %v3580 = vld [vmem:[#allocation6] sm:$0xff]
  %v3581 = vld [vmem:[#allocation6 + $0x8] sm:$0xff]
  %v3582 = vld [vmem:[#allocation6 + $0x10] sm:$0xff]
  %v3583 = vld [vmem:[#allocation6 + $0x18] sm:$0xff]
  %3584 = vst.msk [vmem:[#allocation2] sm:$0xff] %vm527, %v3580
  %3585 = vst.msk [vmem:[#allocation2 + $0x10] sm:$0xff] %vm527, %v3581
  %3586 = vst.msk [vmem:[#allocation2 + $0x20] sm:$0xff] %vm527, %v3582
  %3587 = vst.msk [vmem:[#allocation2 + $0x30] sm:$0xff] %vm527, %v3583
  %v3588 = vld [vmem:[#allocation6] sm:$0xff]
  %v3589 = vld [vmem:[#allocation6 + $0x8] sm:$0xff]
  %v3590 = vld [vmem:[#allocation6 + $0x10] sm:$0xff]
  %v3591 = vld [vmem:[#allocation6 + $0x18] sm:$0xff]
  %3596 = vrot.lane.b32.xlu0 %v3588, 126
  %v3597 = vpop.permute.xlu0 %3596
  %3598 = vrot.lane.b32.xlu0 %v3589, 126
  %v3599 = vpop.permute.xlu0 %3598
  %3600 = vrot.lane.b32.xlu0 %v3590, 126
  %v3601 = vpop.permute.xlu0 %3600
  %3602 = vrot.lane.b32.xlu0 %v3591, 126
  %v3603 = vpop.permute.xlu0 %3602
  %vm3608 = vcmask 277640
  %3609 = vst.msk [vmem:[#allocation2] sm:$0xff] %vm3608, %v3597
  %3610 = vst.msk [vmem:[#allocation2 + $0x10] sm:$0xff] %vm3608, %v3599
  %3611 = vst.msk [vmem:[#allocation2 + $0x20] sm:$0xff] %vm3608, %v3601
  %3612 = vst.msk [vmem:[#allocation2 + $0x30] sm:$0xff] %vm3608, %v3603
  %v3613 = vld [vmem:[#allocation6] sm:$0xff]
  %v3614 = vld [vmem:[#allocation6 + $0x8] sm:$0xff]
  %v3615 = vld [vmem:[#allocation6 + $0x10] sm:$0xff]
  %v3616 = vld [vmem:[#allocation6 + $0x18] sm:$0xff]
  %3621 = vrot.lane.b32.xlu0 %v3613, 127
  %v3622 = vpop.permute.xlu0 %3621
  %3623 = vrot.lane.b32.xlu0 %v3614, 127
  %v3624 = vpop.permute.xlu0 %3623
  %3625 = vrot.lane.b32.xlu0 %v3615, 127
  %v3626 = vpop.permute.xlu0 %3625
  %3627 = vrot.lane.b32.xlu0 %v3616, 127
  %v3628 = vpop.permute.xlu0 %3627
  %3633 = vst.msk [vmem:[#allocation2 + $0x40] sm:$0xff] %vm527, %v3622
  %3634 = vst.msk [vmem:[#allocation2 + $0x50] sm:$0xff] %vm527, %v3624
  %3635 = vst.msk [vmem:[#allocation2 + $0x60] sm:$0xff] %vm527, %v3626
  %3636 = vst.msk [vmem:[#allocation2 + $0x70] sm:$0xff] %vm527, %v3628
  %v3637 = vld [vmem:[#allocation6] sm:$0xff]
  %v3638 = vld [vmem:[#allocation6 + $0x8] sm:$0xff]
  %v3639 = vld [vmem:[#allocation6 + $0x10] sm:$0xff]
  %v3640 = vld [vmem:[#allocation6 + $0x18] sm:$0xff]
  %3645 = vrot.lane.b32.xlu0 %v3637, 125
  %v3646 = vpop.permute.xlu0 %3645
  %3647 = vrot.lane.b32.xlu0 %v3638, 125
  %v3648 = vpop.permute.xlu0 %3647
  %3649 = vrot.lane.b32.xlu0 %v3639, 125
  %v3650 = vpop.permute.xlu0 %3649
  %3651 = vrot.lane.b32.xlu0 %v3640, 125
  %v3652 = vpop.permute.xlu0 %3651
  %3657 = vst.msk [vmem:[#allocation2 + $0x40] sm:$0xff] %vm3608, %v3646
  %3658 = vst.msk [vmem:[#allocation2 + $0x50] sm:$0xff] %vm3608, %v3648
  %3659 = vst.msk [vmem:[#allocation2 + $0x60] sm:$0xff] %vm3608, %v3650
  %3660 = vst.msk [vmem:[#allocation2 + $0x70] sm:$0xff] %vm3608, %v3652
  %v3661 = vld [vmem:[#allocation6] sm:$0xff]
  %v3662 = vld [vmem:[#allocation6 + $0x8] sm:$0xff]
  %v3663 = vld [vmem:[#allocation6 + $0x10] sm:$0xff]
  %v3664 = vld [vmem:[#allocation6 + $0x18] sm:$0xff]
  %3669 = vrot.lane.b32.xlu0 %v3661, 126
  %v3670 = vpop.permute.xlu0 %3669
  %3671 = vrot.lane.b32.xlu0 %v3662, 126
  %v3672 = vpop.permute.xlu0 %3671
  %3673 = vrot.lane.b32.xlu0 %v3663, 126
  %v3674 = vpop.permute.xlu0 %3673
  %3675 = vrot.lane.b32.xlu0 %v3664, 126
  %v3676 = vpop.permute.xlu0 %3675
  %3681 = vst.msk [vmem:[#allocation2 + $0x80] sm:$0xff] %vm527, %v3670
  %3682 = vst.msk [vmem:[#allocation2 + $0x90] sm:$0xff] %vm527, %v3672
  %3683 = vst.msk [vmem:[#allocation2 + $0xa0] sm:$0xff] %vm527, %v3674
  %3684 = vst.msk [vmem:[#allocation2 + $0xb0] sm:$0xff] %vm527, %v3676
  %v3685 = vld [vmem:[#allocation6] sm:$0xff]
  %v3686 = vld [vmem:[#allocation6 + $0x8] sm:$0xff]
  %v3687 = vld [vmem:[#allocation6 + $0x10] sm:$0xff]
  %v3688 = vld [vmem:[#allocation6 + $0x18] sm:$0xff]
  %3693 = vrot.lane.b32.xlu0 %v3685, 124
  %v3694 = vpop.permute.xlu0 %3693
  %3695 = vrot.lane.b32.xlu0 %v3686, 124
  %v3696 = vpop.permute.xlu0 %3695
  %3697 = vrot.lane.b32.xlu0 %v3687, 124
  %v3698 = vpop.permute.xlu0 %3697
  %3699 = vrot.lane.b32.xlu0 %v3688, 124
  %v3700 = vpop.permute.xlu0 %3699
  %3705 = vst.msk [vmem:[#allocation2 + $0x80] sm:$0xff] %vm3608, %v3694
  %3706 = vst.msk [vmem:[#allocation2 + $0x90] sm:$0xff] %vm3608, %v3696
  %3707 = vst.msk [vmem:[#allocation2 + $0xa0] sm:$0xff] %vm3608, %v3698
  %3708 = vst.msk [vmem:[#allocation2 + $0xb0] sm:$0xff] %vm3608, %v3700
  %v3709 = vld [vmem:[%s1 + $0x20] sm:$0xf]
  %v3710 = vld [vmem:[%s1 + $0x4c] sm:$0xf]
  %v3711 = vld [vmem:[%s1 + $0x78] sm:$0xf]
  %v3712 = vld [vmem:[%s1 + $0xa4] sm:$0xf]
  %v3713 = vld [vmem:[#allocation2] sm:$0xff]
  %v3714 = vld [vmem:[#allocation2 + $0x10] sm:$0xff]
  %v3715 = vld [vmem:[#allocation2 + $0x20] sm:$0xff]
  %v3716 = vld [vmem:[#allocation2 + $0x30] sm:$0xff]
  %v3717 = vld [vmem:[#allocation2 + $0x40] sm:$0xff]
  %v3718 = vld [vmem:[#allocation2 + $0x50] sm:$0xff]
  %v3719 = vld [vmem:[#allocation2 + $0x60] sm:$0xff]
  %v3720 = vld [vmem:[#allocation2 + $0x70] sm:$0xff]
  %v3721 = vld [vmem:[#allocation2 + $0x80] sm:$0xff]
  %v3722 = vld [vmem:[#allocation2 + $0x90] sm:$0xff]
  %v3723 = vld [vmem:[#allocation2 + $0xa0] sm:$0xff]
  %v3724 = vld [vmem:[#allocation2 + $0xb0] sm:$0xff]
  %v3725 = vpack.c.bf16 %v3714, %v3713
  %v3726 = vpack.c.bf16 %v3716, %v3715
  %v3727 = vpack.c.bf16 %v3718, %v3717
  %v3728 = vpack.c.bf16 %v3720, %v3719
  %v3729 = vpack.c.bf16 %v3722, %v3721
  %v3730 = vpack.c.bf16 %v3724, %v3723
  %v3731 = vld [vmem:[%s2] sm:$0xff]
  %v3732 = vld [vmem:[%s2 + $0x8] sm:$0xff]
  %v3733 = vld [vmem:[%s2 + $0x10] sm:$0xff]
  %v3734 = vld [vmem:[%s2 + $0x18] sm:$0xff]
  %3736 = vset.pattern.permute.xlu0 9
  %3737 = vperm.xlu0 %3736, %v3731
  %v3738 = vpop.permute.xlu0 %3737
  %3741 = vset.pattern.permute.xlu0 9
  %3742 = vperm.xlu0 %3741, %v3732
  %v3743 = vpop.permute.xlu0 %3742
  %3746 = vset.pattern.permute.xlu0 9
  %3747 = vperm.xlu0 %3746, %v3733
  %v3748 = vpop.permute.xlu0 %3747
  %3751 = vset.pattern.permute.xlu0 9
  %3752 = vperm.xlu0 %3751, %v3734
  %v3753 = vpop.permute.xlu0 %3752
  %v3759 = vunpack.c.l.b16 %v3709
  %v3760 = vunpack.c.l.b16 %v3710
  %v3761 = vunpack.c.l.b16 %v3711
  %v3762 = vunpack.c.l.b16 %v3712
  %v3763 = vpack.c.b16 %v3760, %v3759
  %v3764 = vpack.c.b16 %v3762, %v3761
  %vm3765 = vcmask 785408
  %v3767 = vsel %vm3765, %v3763, 0
  %v3770 = vsel %vm3765, %v3764, 0
  %3772 = vmatprep.subr.bf16.mxu0 0
  %3773 = vmatpush1.bf16.msra.mxu0 %v3725
  %3774 = vmatprep.subr.bf16.mxu0 0
  %3775 = vmatpush1.bf16.msra.mxu0 %v3726
  %3776 = vmatprep.subr.bf16.mxu0 0
  %3777 = vmatpush1.bf16.msra.mxu0 %v3727
  %3778 = vmatprep.subr.bf16.mxu0 0
  %3779 = vmatpush1.bf16.msra.mxu0 %v3728
  %3780 = vmatprep.subr.bf16.mxu0 0
  %3781 = vmatpush1.bf16.msra.mxu0 %v3729
  %3782 = vmatprep.subr.bf16.mxu0 0
  %3783 = vmatpush1.bf16.msra.mxu0 %v3730
  %3784 = vmatprep.subr.bf16.mxu0 0
  %3785 = vmatpush1.bf16.msra.mxu0 0
  %3786 = vmatprep.subr.bf16.mxu0 0
  %3787 = vmatpush1.bf16.msra.mxu0 0
  %3788 = vmatprep.subr.bf16.mxu0 0
  %3789 = vmatpush1.bf16.msra.mxu0 0
  %3790 = vmatprep.subr.bf16.mxu0 0
  %3791 = vmatpush1.bf16.msra.mxu0 0
  %3792 = vmatprep.subr.bf16.mxu0 0
  %3793 = vmatpush1.bf16.msra.mxu0 0
  %3794 = vmatprep.subr.bf16.mxu0 0
  %3795 = vmatpush1.bf16.msra.mxu0 0
  %3796 = vmatprep.subr.bf16.mxu0 0
  %3797 = vmatpush1.bf16.msra.mxu0 0
  %3798 = vmatprep.subr.bf16.mxu0 0
  %3799 = vmatpush1.bf16.msra.mxu0 0
  %3800 = vmatprep.subr.bf16.mxu0 0
  %3801 = vmatpush1.bf16.msra.mxu0 0
  %3802 = vmatprep.subr.bf16.mxu0 0
  %3803 = vmatpush1.bf16.msra.mxu0 0
  %3804 = vmatprep.mubr.bf16.mxu0 0
  %3805 = vmatmul.mubr.bf16.gmra.mrb[0].mxu0 %v3767
  %v3806 = vpop.f32.mrb[0].mxu0
  %v3807 = vadd.f32 %v3738, %v3806
  %v3808 = vpop.f32.mrb[0].mxu0
  %v3809 = vpop.f32.mrb[0].mxu0
  %v3810 = vadd.f32 %v3743, %v3809
  %v3811 = vpop.f32.mrb[0].mxu0
  %3812 = vmatprep.mubr.bf16.mxu0 0
  %3813 = vmatmul.mubr.bf16.gmra.mrb[0].mxu0 %v3770
  %v3814 = vpop.f32.mrb[0].mxu0
  %v3815 = vadd.f32 %v3748, %v3814
  %v3816 = vpop.f32.mrb[0].mxu0
  %v3817 = vpop.f32.mrb[0].mxu0
  %v3818 = vadd.f32 %v3753, %v3817
  %v3819 = vpop.f32.mrb[0].mxu0
  %3820 = vdwg.mxu0
  %v3821 = vsel %vm2610, %v3807, 0.0
  %3822 = vadd.xlane.f32.xlu0 %v3821
  %v3823 = vpop.xlane.xlu0 %3822
  %v3824 = vsel %vm2610, %v3810, 0.0
  %3825 = vadd.xlane.f32.xlu0 %v3824
  %v3826 = vpop.xlane.xlu0 %3825
  %v3827 = vsel %vm2610, %v3815, 0.0
  %3828 = vadd.xlane.f32.xlu0 %v3827
  %v3829 = vpop.xlane.xlu0 %3828
  %v3830 = vsel %vm2610, %v3818, 0.0
  %3831 = vadd.xlane.f32.xlu0 %v3830
  %v3832 = vpop.xlane.xlu0 %3831
  %v3833 = vmul.f32 %v3823, %v3453
  %v3834 = vmul.f32 %v3826, %v3453
  %v3835 = vmul.f32 %v3829, %v3453
  %v3836 = vmul.f32 %v3832, %v3453
  %v3837 = vsub.f32 %v3807, %v3833
  %v3838 = vsub.f32 %v3810, %v3834
  %v3839 = vsub.f32 %v3815, %v3835
  %v3840 = vsub.f32 %v3818, %v3836
  %v3841 = vmul.f32 %v3837, %v3837
  %v3842 = vmul.f32 %v3838, %v3838
  %v3843 = vmul.f32 %v3839, %v3839
  %v3844 = vmul.f32 %v3840, %v3840
  %v3845 = vsel %vm2610, %v3841, 0.0
  %3846 = vadd.xlane.f32.xlu0 %v3845
  %v3847 = vpop.xlane.xlu0 %3846
  %v3848 = vsel %vm2610, %v3842, 0.0
  %3849 = vadd.xlane.f32.xlu0 %v3848
  %v3850 = vpop.xlane.xlu0 %3849
  %v3851 = vsel %vm2610, %v3843, 0.0
  %3852 = vadd.xlane.f32.xlu0 %v3851
  %v3853 = vpop.xlane.xlu0 %3852
  %v3854 = vsel %vm2610, %v3844, 0.0
  %3855 = vadd.xlane.f32.xlu0 %v3854
  %v3856 = vpop.xlane.xlu0 %3855
  %v3857 = vmul.f32 %v3847, %v3453
  %v3858 = vmul.f32 %v3850, %v3453
  %v3859 = vmul.f32 %v3853, %v3453
  %v3860 = vmul.f32 %v3856, %v3453
  %v3861 = vadd.f32 %v3857, 1e-05
  %v3862 = vadd.f32 %v3858, 1e-05
  %v3863 = vadd.f32 %v3859, 1e-05
  %v3864 = vadd.f32 %v3860, 1e-05
  %v3865 = vrsqrt.pop %v3861
  %v3866 = vrsqrt.pop %v3862
  %v3867 = vrsqrt.pop %v3863
  %v3868 = vrsqrt.pop %v3864
  %v3869 = vmul.f32 %v3731, %v3865
  %v3870 = vmul.f32 %v3732, %v3866
  %v3871 = vmul.f32 %v3733, %v3867
  %v3872 = vmul.f32 %v3734, %v3868
  %3874 = vset.pattern.permute.xlu0 10
  %3875 = vperm.xlu0 %3874, %v3869
  %v3876 = vpop.permute.xlu0 %3875
  %3879 = vset.pattern.permute.xlu0 10
  %3880 = vperm.xlu0 %3879, %v3870
  %v3881 = vpop.permute.xlu0 %3880
  %3884 = vset.pattern.permute.xlu0 10
  %3885 = vperm.xlu0 %3884, %v3871
  %v3886 = vpop.permute.xlu0 %3885
  %3889 = vset.pattern.permute.xlu0 10
  %3890 = vperm.xlu0 %3889, %v3872
  %v3891 = vpop.permute.xlu0 %3890
  %v3893 = vmul.f32 %v3837, %v3876
  %v3894 = vmul.f32 %v3838, %v3881
  %v3895 = vmul.f32 %v3839, %v3886
  %v3896 = vmul.f32 %v3840, %v3891
  %3897 = vset.pattern.permute.xlu0 11
  %3898 = vperm.xlu0 %3897, %v3731
  %v3899 = vpop.permute.xlu0 %3898
  %3901 = vset.pattern.permute.xlu0 11
  %3902 = vperm.xlu0 %3901, %v3732
  %v3903 = vpop.permute.xlu0 %3902
  %3905 = vset.pattern.permute.xlu0 11
  %3906 = vperm.xlu0 %3905, %v3733
  %v3907 = vpop.permute.xlu0 %3906
  %3909 = vset.pattern.permute.xlu0 11
  %3910 = vperm.xlu0 %3909, %v3734
  %v3911 = vpop.permute.xlu0 %3910
  %v3913 = vadd.f32 %v3893, %v3899
  %v3914 = vadd.f32 %v3894, %v3903
  %v3915 = vadd.f32 %v3895, %v3907
  %v3916 = vadd.f32 %v3896, %v3911
  %v3917 = vmax.f32 %v3913, 0.0
  %v3918 = vmax.f32 %v3914, 0.0
  %v3919 = vmax.f32 %v3915, 0.0
  %v3920 = vmax.f32 %v3916, 0.0
  %3925 = vrot.lane.b32.xlu0 %v3917, 1
  %v3926 = vpop.permute.xlu0 %3925
  %3927 = vrot.lane.b32.xlu0 %v3918, 1
  %v3928 = vpop.permute.xlu0 %3927
  %3929 = vrot.lane.b32.xlu0 %v3919, 1
  %v3930 = vpop.permute.xlu0 %3929
  %3931 = vrot.lane.b32.xlu0 %v3920, 1
  %v3932 = vpop.permute.xlu0 %3931
  %3937 = vst.msk [vmem:[#allocation7] sm:$0xff] %vm3558, %v3926
  %3938 = vst.msk [vmem:[#allocation7 + $0x8] sm:$0xff] %vm3558, %v3928
  %3939 = vst.msk [vmem:[#allocation7 + $0x10] sm:$0xff] %vm3558, %v3930
  %3940 = vst.msk [vmem:[#allocation7 + $0x18] sm:$0xff] %vm3558, %v3932
  %3941 = vrot.lane.b32.xlu0 %v3917, 3
  %v3942 = vpop.permute.xlu0 %3941
  %3943 = vrot.lane.b32.xlu0 %v3918, 3
  %v3944 = vpop.permute.xlu0 %3943
  %3945 = vrot.lane.b32.xlu0 %v3919, 3
  %v3946 = vpop.permute.xlu0 %3945
  %3947 = vrot.lane.b32.xlu0 %v3920, 3
  %v3948 = vpop.permute.xlu0 %3947
  %3953 = vst.msk [vmem:[#allocation7] sm:$0xff] %vm3575, %v3942
  %3954 = vst.msk [vmem:[#allocation7 + $0x8] sm:$0xff] %vm3575, %v3944
  %3955 = vst.msk [vmem:[#allocation7 + $0x10] sm:$0xff] %vm3575, %v3946
  %3956 = vst.msk [vmem:[#allocation7 + $0x18] sm:$0xff] %vm3575, %v3948
  %v3957 = vld [vmem:[#allocation7] sm:$0xff]
  %v3958 = vld [vmem:[#allocation7 + $0x8] sm:$0xff]
  %v3959 = vld [vmem:[#allocation7 + $0x10] sm:$0xff]
  %v3960 = vld [vmem:[#allocation7 + $0x18] sm:$0xff]
  %3961 = vst.msk [vmem:[#allocation2] sm:$0xff] %vm527, %v3957
  %3962 = vst.msk [vmem:[#allocation2 + $0x10] sm:$0xff] %vm527, %v3958
  %3963 = vst.msk [vmem:[#allocation2 + $0x20] sm:$0xff] %vm527, %v3959
  %3964 = vst.msk [vmem:[#allocation2 + $0x30] sm:$0xff] %vm527, %v3960
  %v3965 = vld [vmem:[#allocation7] sm:$0xff]
  %v3966 = vld [vmem:[#allocation7 + $0x8] sm:$0xff]
  %v3967 = vld [vmem:[#allocation7 + $0x10] sm:$0xff]
  %v3968 = vld [vmem:[#allocation7 + $0x18] sm:$0xff]
  %3973 = vrot.lane.b32.xlu0 %v3965, 126
  %v3974 = vpop.permute.xlu0 %3973
  %3975 = vrot.lane.b32.xlu0 %v3966, 126
  %v3976 = vpop.permute.xlu0 %3975
  %3977 = vrot.lane.b32.xlu0 %v3967, 126
  %v3978 = vpop.permute.xlu0 %3977
  %3979 = vrot.lane.b32.xlu0 %v3968, 126
  %v3980 = vpop.permute.xlu0 %3979
  %3985 = vst.msk [vmem:[#allocation2] sm:$0xff] %vm3608, %v3974
  %3986 = vst.msk [vmem:[#allocation2 + $0x10] sm:$0xff] %vm3608, %v3976
  %3987 = vst.msk [vmem:[#allocation2 + $0x20] sm:$0xff] %vm3608, %v3978
  %3988 = vst.msk [vmem:[#allocation2 + $0x30] sm:$0xff] %vm3608, %v3980
  %v3989 = vld [vmem:[#allocation7] sm:$0xff]
  %v3990 = vld [vmem:[#allocation7 + $0x8] sm:$0xff]
  %v3991 = vld [vmem:[#allocation7 + $0x10] sm:$0xff]
  %v3992 = vld [vmem:[#allocation7 + $0x18] sm:$0xff]
  %3997 = vrot.lane.b32.xlu0 %v3989, 127
  %v3998 = vpop.permute.xlu0 %3997
  %3999 = vrot.lane.b32.xlu0 %v3990, 127
  %v4000 = vpop.permute.xlu0 %3999
  %4001 = vrot.lane.b32.xlu0 %v3991, 127
  %v4002 = vpop.permute.xlu0 %4001
  %4003 = vrot.lane.b32.xlu0 %v3992, 127
  %v4004 = vpop.permute.xlu0 %4003
  %4009 = vst.msk [vmem:[#allocation2 + $0x40] sm:$0xff] %vm527, %v3998
  %4010 = vst.msk [vmem:[#allocation2 + $0x50] sm:$0xff] %vm527, %v4000
  %4011 = vst.msk [vmem:[#allocation2 + $0x60] sm:$0xff] %vm527, %v4002
  %4012 = vst.msk [vmem:[#allocation2 + $0x70] sm:$0xff] %vm527, %v4004
  %v4013 = vld [vmem:[#allocation7] sm:$0xff]
  %v4014 = vld [vmem:[#allocation7 + $0x8] sm:$0xff]
  %v4015 = vld [vmem:[#allocation7 + $0x10] sm:$0xff]
  %v4016 = vld [vmem:[#allocation7 + $0x18] sm:$0xff]
  %4021 = vrot.lane.b32.xlu0 %v4013, 125
  %v4022 = vpop.permute.xlu0 %4021
  %4023 = vrot.lane.b32.xlu0 %v4014, 125
  %v4024 = vpop.permute.xlu0 %4023
  %4025 = vrot.lane.b32.xlu0 %v4015, 125
  %v4026 = vpop.permute.xlu0 %4025
  %4027 = vrot.lane.b32.xlu0 %v4016, 125
  %v4028 = vpop.permute.xlu0 %4027
  %4033 = vst.msk [vmem:[#allocation2 + $0x40] sm:$0xff] %vm3608, %v4022
  %4034 = vst.msk [vmem:[#allocation2 + $0x50] sm:$0xff] %vm3608, %v4024
  %4035 = vst.msk [vmem:[#allocation2 + $0x60] sm:$0xff] %vm3608, %v4026
  %4036 = vst.msk [vmem:[#allocation2 + $0x70] sm:$0xff] %vm3608, %v4028
  %v4037 = vld [vmem:[#allocation7] sm:$0xff]
  %v4038 = vld [vmem:[#allocation7 + $0x8] sm:$0xff]
  %v4039 = vld [vmem:[#allocation7 + $0x10] sm:$0xff]
  %v4040 = vld [vmem:[#allocation7 + $0x18] sm:$0xff]
  %4045 = vrot.lane.b32.xlu0 %v4037, 126
  %v4046 = vpop.permute.xlu0 %4045
  %4047 = vrot.lane.b32.xlu0 %v4038, 126
  %v4048 = vpop.permute.xlu0 %4047
  %4049 = vrot.lane.b32.xlu0 %v4039, 126
  %v4050 = vpop.permute.xlu0 %4049
  %4051 = vrot.lane.b32.xlu0 %v4040, 126
  %v4052 = vpop.permute.xlu0 %4051
  %4057 = vst.msk [vmem:[#allocation2 + $0x80] sm:$0xff] %vm527, %v4046
  %4058 = vst.msk [vmem:[#allocation2 + $0x90] sm:$0xff] %vm527, %v4048
  %4059 = vst.msk [vmem:[#allocation2 + $0xa0] sm:$0xff] %vm527, %v4050
  %4060 = vst.msk [vmem:[#allocation2 + $0xb0] sm:$0xff] %vm527, %v4052
  %v4061 = vld [vmem:[#allocation7] sm:$0xff]
  %v4062 = vld [vmem:[#allocation7 + $0x8] sm:$0xff]
  %v4063 = vld [vmem:[#allocation7 + $0x10] sm:$0xff]
  %v4064 = vld [vmem:[#allocation7 + $0x18] sm:$0xff]
  %4069 = vrot.lane.b32.xlu0 %v4061, 124
  %v4070 = vpop.permute.xlu0 %4069
  %4071 = vrot.lane.b32.xlu0 %v4062, 124
  %v4072 = vpop.permute.xlu0 %4071
  %4073 = vrot.lane.b32.xlu0 %v4063, 124
  %v4074 = vpop.permute.xlu0 %4073
  %4075 = vrot.lane.b32.xlu0 %v4064, 124
  %v4076 = vpop.permute.xlu0 %4075
  %4081 = vst.msk [vmem:[#allocation2 + $0x80] sm:$0xff] %vm3608, %v4070
  %4082 = vst.msk [vmem:[#allocation2 + $0x90] sm:$0xff] %vm3608, %v4072
  %4083 = vst.msk [vmem:[#allocation2 + $0xa0] sm:$0xff] %vm3608, %v4074
  %4084 = vst.msk [vmem:[#allocation2 + $0xb0] sm:$0xff] %vm3608, %v4076
  %v4085 = vld [vmem:[%s1 + $0x24] sm:$0xf]
  %v4086 = vld [vmem:[%s1 + $0x50] sm:$0xf]
  %v4087 = vld [vmem:[#allocation2] sm:$0xff]
  %v4088 = vld [vmem:[#allocation2 + $0x10] sm:$0xff]
  %v4089 = vld [vmem:[#allocation2 + $0x20] sm:$0xff]
  %v4090 = vld [vmem:[#allocation2 + $0x30] sm:$0xff]
  %v4091 = vld [vmem:[#allocation2 + $0x40] sm:$0xff]
  %v4092 = vld [vmem:[#allocation2 + $0x50] sm:$0xff]
  %v4093 = vld [vmem:[#allocation2 + $0x60] sm:$0xff]
  %v4094 = vld [vmem:[#allocation2 + $0x70] sm:$0xff]
  %v4095 = vld [vmem:[#allocation2 + $0x80] sm:$0xff]
  %v4096 = vld [vmem:[#allocation2 + $0x90] sm:$0xff]
  %v4097 = vld [vmem:[#allocation2 + $0xa0] sm:$0xff]
  %v4098 = vld [vmem:[#allocation2 + $0xb0] sm:$0xff]
  %v4099 = vpack.c.bf16 %v4088, %v4087
  %v4100 = vpack.c.bf16 %v4090, %v4089
  %v4101 = vpack.c.bf16 %v4092, %v4091
  %v4102 = vpack.c.bf16 %v4094, %v4093
  %v4103 = vpack.c.bf16 %v4096, %v4095
  %v4104 = vpack.c.bf16 %v4098, %v4097
  %v4107 = vunpack.c.l.b16 %v4085
  %v4108 = vunpack.c.l.b16 %v4086
  %v4109 = vpack.c.b16 %v4108, %v4107
  %v4111 = vsel %vm3765, %v4109, 0
  %4113 = vmatprep.subr.bf16.mxu0 0
  %4114 = vmatpush1.bf16.msra.mxu0 %v4099
  %4115 = vmatprep.subr.bf16.mxu0 0
  %4116 = vmatpush1.bf16.msra.mxu0 %v4100
  %4117 = vmatprep.subr.bf16.mxu0 0
  %4118 = vmatpush1.bf16.msra.mxu0 %v4101
  %4119 = vmatprep.subr.bf16.mxu0 0
  %4120 = vmatpush1.bf16.msra.mxu0 %v4102
  %4121 = vmatprep.subr.bf16.mxu0 0
  %4122 = vmatpush1.bf16.msra.mxu0 %v4103
  %4123 = vmatprep.subr.bf16.mxu0 0
  %4124 = vmatpush1.bf16.msra.mxu0 %v4104
  %4125 = vmatprep.subr.bf16.mxu0 0
  %4126 = vmatpush1.bf16.msra.mxu0 0
  %4127 = vmatprep.subr.bf16.mxu0 0
  %4128 = vmatpush1.bf16.msra.mxu0 0
  %4129 = vmatprep.subr.bf16.mxu0 0
  %4130 = vmatpush1.bf16.msra.mxu0 0
  %4131 = vmatprep.subr.bf16.mxu0 0
  %4132 = vmatpush1.bf16.msra.mxu0 0
  %4133 = vmatprep.subr.bf16.mxu0 0
  %4134 = vmatpush1.bf16.msra.mxu0 0
  %4135 = vmatprep.subr.bf16.mxu0 0
  %4136 = vmatpush1.bf16.msra.mxu0 0
  %4137 = vmatprep.subr.bf16.mxu0 0
  %4138 = vmatpush1.bf16.msra.mxu0 0
  %4139 = vmatprep.subr.bf16.mxu0 0
  %4140 = vmatpush1.bf16.msra.mxu0 0
  %4141 = vmatprep.subr.bf16.mxu0 0
  %4142 = vmatpush1.bf16.msra.mxu0 0
  %4143 = vmatprep.subr.bf16.mxu0 0
  %4144 = vmatpush1.bf16.msra.mxu0 0
  %4145 = vmatprep.mubr.bf16.mxu0 0
  %4146 = vmatmul.mubr.bf16.gmra.mrb[0].mxu0 %v4111
  %v4147 = vpop.f32.mrb[0].mxu0
  %v4148 = vadd.f32 0.0, %v4147
  %v4149 = vpop.f32.mrb[0].mxu0
  %v4150 = vpop.f32.mrb[0].mxu0
  %v4151 = vadd.f32 0.0, %v4150
  %v4152 = vpop.f32.mrb[0].mxu0
  %4153 = vdwg.mxu0
  %vm4154 = vcmp.lt.s32.totalorder %v2020, 9
  %vm4155 = vmand %vm2021, %vm4154
  %vm4156 = vmand %vm4155, %vm2025
  %vm4157 = vmand %vm4155, %vm2026
  %vm4158 = vmand %vm4155, %vm2027
  %vm4159 = vmand %vm4155, %vm2028
  %vm4160 = vmand %vm4155, %vm2029
  %v4161 = vsub.s32 %v2020, 9
  %vm4162 = vcmp.ge.s32.totalorder %v4161, 0
  %vm4163 = vcmp.lt.s32.totalorder %v4161, 9
  %vm4164 = vmand %vm4162, %vm4163
  %v4165 = vmul.u32 %v4161, 2
  %v4166 = vadd.s32 %v4165, 17
  %vm4167 = vcmp.eq.s32.totalorder %v2002, %v4166
  %vm4168 = vcmp.eq.s32.totalorder %v2003, %v4166
  %vm4169 = vcmp.eq.s32.totalorder %v2004, %v4166
  %vm4170 = vcmp.eq.s32.totalorder %v2005, %v4166
  %vm4171 = vcmp.eq.s32.totalorder %v2006, %v4166
  %vm4172 = vmand %vm4164, %vm4167
  %vm4173 = vmand %vm4164, %vm4168
  %vm4174 = vmand %vm4164, %vm4169
  %vm4175 = vmand %vm4164, %vm4170
  %vm4176 = vmand %vm4164, %vm4171
  %vm4177 = vmor %vm4156, %vm4172
  %vm4178 = vmor %vm4157, %vm4173
  %vm4179 = vmor %vm4158, %vm4174
  %vm4180 = vmor %vm4159, %vm4175
  %vm4181 = vmor %vm4160, %vm4176
  %v4182 = vsel %vm4177, 1, 0
  %v4183 = vsel %vm4178, 1, 0
  %v4184 = vsel %vm4179, 1, 0
  %v4185 = vsel %vm4180, 1, 0
  %v4186 = vsel %vm4181, 1, 0
  %v4187 = vcvt.s32.f32 %v4182
  %v4188 = vcvt.s32.f32 %v4183
  %v4189 = vcvt.s32.f32 %v4184
  %v4190 = vcvt.s32.f32 %v4185
  %v4191 = vcvt.s32.f32 %v4186
  %v4192 = vld [vmem:[%s2] sm:$0xff]
  %v4193 = vld [vmem:[%s2 + $0x8] sm:$0xff]
  %4195 = vset.pattern.permute.xlu0 12
  %4196 = vperm.xlu0 %4195, %v4192
  %v4197 = vpop.permute.xlu0 %4196
  %4200 = vset.pattern.permute.xlu0 12
  %4201 = vperm.xlu0 %4200, %v4193
  %v4202 = vpop.permute.xlu0 %4201
  %v4205 = vsel %vm2610, %v4148, 0
  %v4208 = vsel %vm2610, %v4151, 0
  %v4211 = vsel %vm320, %v4191, 0
  %4213 = vmatprep.subr.mxu0 0.0
  %4214 = vmatpush1.msra.mxu0 %v4187
  %4215 = vmatprep.subr.mxu0 0.0
  %4216 = vmatpush1.msra.mxu0 %v4188
  %4217 = vmatprep.subr.mxu0 0.0
  %4218 = vmatpush1.msra.mxu0 %v4189
  %4219 = vmatprep.subr.mxu0 0.0
  %4220 = vmatpush1.msra.mxu0 %v4190
  %4221 = vmatprep.subr.mxu0 0.0
  %4222 = vmatpush1.msra.mxu0 %v4211
  %4223 = vmatprep.subr.mxu0 0.0
  %4224 = vmatpush1.msra.mxu0 0.0
  %4225 = vmatprep.subr.mxu0 0.0
  %4226 = vmatpush1.msra.mxu0 0.0
  %4227 = vmatprep.subr.mxu0 0.0
  %4228 = vmatpush1.msra.mxu0 0.0
  %4229 = vmatprep.subr.mxu0 0.0
  %4230 = vmatpush1.msra.mxu0 0.0
  %4231 = vmatprep.subr.mxu0 0.0
  %4232 = vmatpush1.msra.mxu0 0.0
  %4233 = vmatprep.subr.mxu0 0.0
  %4234 = vmatpush1.msra.mxu0 0.0
  %4235 = vmatprep.subr.mxu0 0.0
  %4236 = vmatpush1.msra.mxu0 0.0
  %4237 = vmatprep.subr.mxu0 0.0
  %4238 = vmatpush1.msra.mxu0 0.0
  %4239 = vmatprep.subr.mxu0 0.0
  %4240 = vmatpush1.msra.mxu0 0.0
  %4241 = vmatprep.subr.mxu0 0.0
  %4242 = vmatpush1.msra.mxu0 0.0
  %4243 = vmatprep.subr.mxu0 0.0
  %4244 = vmatpush1.msra.mxu0 0.0
  %4245 = vmatprep.subr.mxu0 0.0
  %4246 = vmatpush1.msra.mxu0 0.0
  %4247 = vmatprep.subr.mxu0 0.0
  %4248 = vmatpush1.msra.mxu0 0.0
  %4249 = vmatprep.subr.mxu0 0.0
  %4250 = vmatpush1.msra.mxu0 0.0
  %4251 = vmatprep.subr.mxu0 0.0
  %4252 = vmatpush1.msra.mxu0 0.0
  %4253 = vmatprep.subr.mxu0 0.0
  %4254 = vmatpush1.msra.mxu0 0.0
  %4255 = vmatprep.subr.mxu0 0.0
  %4256 = vmatpush1.msra.mxu0 0.0
  %4257 = vmatprep.subr.mxu0 0.0
  %4258 = vmatpush1.msra.mxu0 0.0
  %4259 = vmatprep.subr.mxu0 0.0
  %4260 = vmatpush1.msra.mxu0 0.0
  %4261 = vmatprep.subr.mxu0 0.0
  %4262 = vmatpush1.msra.mxu0 0.0
  %4263 = vmatprep.subr.mxu0 0.0
  %4264 = vmatpush1.msra.mxu0 0.0
  %4265 = vmatprep.subr.mxu0 0.0
  %4266 = vmatpush1.msra.mxu0 0.0
  %4267 = vmatprep.subr.mxu0 0.0
  %4268 = vmatpush1.msra.mxu0 0.0
  %4269 = vmatprep.subr.mxu0 0.0
  %4270 = vmatpush1.msra.mxu0 0.0
  %4271 = vmatprep.subr.mxu0 0.0
  %4272 = vmatpush1.msra.mxu0 0.0
  %4273 = vmatprep.subr.mxu0 0.0
  %4274 = vmatpush1.msra.mxu0 0.0
  %4275 = vmatprep.subr.mxu0 0.0
  %4276 = vmatpush1.msra.mxu0 0.0
  %4277 = vmatprep.mubr.f32.mxu0 0.0
  %4278 = vmatmul.mubr.f32.gmra.mrb[0].mxu0 %v4205
  %v4279 = vpop.f32.mrb[0].mxu0
  %v4280 = vadd.f32 %v4197, %v4279
  %v4281 = vpop.f32.mrb[0].mxu0
  %4282 = vmatprep.mubr.f32.mxu0 0.0
  %4283 = vmatmul.mubr.f32.gmra.mrb[0].mxu0 %v4208
  %v4284 = vpop.f32.mrb[0].mxu0
  %v4285 = vadd.f32 %v4202, %v4284
  %v4286 = vpop.f32.mrb[0].mxu0
  %4287 = vdwg.mxu0
  %vm4288 = vcmask 146432
  %v4289 = vsel %vm4288, %v4280, 0.0
  %4290 = vadd.xlane.f32.xlu0 %v4289
  %v4291 = vpop.xlane.xlu0 %4290
  %v4292 = vsel %vm4288, %v4285, 0.0
  %4293 = vadd.xlane.f32.xlu0 %v4292
  %v4294 = vpop.xlane.xlu0 %4293
  %v4295 = vrcp.pop 18.0
  %v4296 = vmul.f32 %v4291, %v4295
  %v4297 = vmul.f32 %v4294, %v4295
  %v4298 = vsub.f32 %v4280, %v4296
  %v4299 = vsub.f32 %v4285, %v4297
  %v4300 = vmul.f32 %v4298, %v4298
  %v4301 = vmul.f32 %v4299, %v4299
  %v4302 = vsel %vm4288, %v4300, 0.0
  %4303 = vadd.xlane.f32.xlu0 %v4302
  %v4304 = vpop.xlane.xlu0 %4303
  %v4305 = vsel %vm4288, %v4301, 0.0
  %4306 = vadd.xlane.f32.xlu0 %v4305
  %v4307 = vpop.xlane.xlu0 %4306
  %v4308 = vmul.f32 %v4304, %v4295
  %v4309 = vmul.f32 %v4307, %v4295
  %v4310 = vadd.f32 %v4308, 1e-05
  %v4311 = vadd.f32 %v4309, 1e-05
  %v4312 = vrsqrt.pop %v4310
  %v4313 = vrsqrt.pop %v4311
  %v4314 = vmul.f32 %v4192, %v4312
  %v4315 = vmul.f32 %v4193, %v4313
  %4317 = vset.pattern.permute.xlu0 13
  %4318 = vperm.xlu0 %4317, %v4314
  %v4319 = vpop.permute.xlu0 %4318
  %4322 = vset.pattern.permute.xlu0 13
  %4323 = vperm.xlu0 %4322, %v4315
  %v4324 = vpop.permute.xlu0 %4323
  %v4326 = vmul.f32 %v4298, %v4319
  %v4327 = vmul.f32 %v4299, %v4324
  %4328 = vset.pattern.permute.xlu0 14
  %4329 = vperm.xlu0 %4328, %v4192
  %v4330 = vpop.permute.xlu0 %4329
  %4332 = vset.pattern.permute.xlu0 14
  %4333 = vperm.xlu0 %4332, %v4193
  %v4334 = vpop.permute.xlu0 %4333
  %v4336 = vadd.f32 %v4326, %v4330
  %v4337 = vadd.f32 %v4327, %v4334
  %v4338 = vmax.f32 %v4336, 0.0
  %v4339 = vmax.f32 %v4337, 0.0
  %4342 = vrot.lane.b32.xlu0 %v4338, 1
  %v4343 = vpop.permute.xlu0 %4342
  %4344 = vrot.lane.b32.xlu0 %v4339, 1
  %v4345 = vpop.permute.xlu0 %4344
  %vm4348 = vcmask 80904
  %4349 = vst.msk [vmem:[#allocation8] sm:$0xff] %vm4348, %v4343
  %4350 = vst.msk [vmem:[#allocation8 + $0x8] sm:$0xff] %vm4348, %v4345
  %4351 = vrot.lane.b32.xlu0 %v4338, 3
  %v4352 = vpop.permute.xlu0 %4351
  %4353 = vrot.lane.b32.xlu0 %v4339, 3
  %v4354 = vpop.permute.xlu0 %4353
  %vm4357 = vcmask 171104
  %4358 = vst.msk [vmem:[#allocation8] sm:$0xff] %vm4357, %v4352
  %4359 = vst.msk [vmem:[#allocation8 + $0x8] sm:$0xff] %vm4357, %v4354
  %v4360 = vld [vmem:[#allocation8] sm:$0xff]
  %v4361 = vld [vmem:[#allocation8 + $0x8] sm:$0xff]
  %4362 = vst.msk [vmem:[#allocation2] sm:$0xff] %vm500, %v4360
  %4363 = vst.msk [vmem:[#allocation2 + $0x10] sm:$0xff] %vm500, %v4361
  %v4364 = vld [vmem:[#allocation8] sm:$0xff]
  %v4365 = vld [vmem:[#allocation8 + $0x8] sm:$0xff]
  %4368 = vrot.lane.b32.xlu0 %v4364, 126
  %v4369 = vpop.permute.xlu0 %4368
  %4370 = vrot.lane.b32.xlu0 %v4365, 126
  %v4371 = vpop.permute.xlu0 %4370
  %vm4374 = vcmask 146504
  %4375 = vst.msk [vmem:[#allocation2] sm:$0xff] %vm4374, %v4369
  %4376 = vst.msk [vmem:[#allocation2 + $0x10] sm:$0xff] %vm4374, %v4371
  %v4377 = vld [vmem:[#allocation8] sm:$0xff]
  %v4378 = vld [vmem:[#allocation8 + $0x8] sm:$0xff]
  %4381 = vrot.lane.b32.xlu0 %v4377, 127
  %v4382 = vpop.permute.xlu0 %4381
  %4383 = vrot.lane.b32.xlu0 %v4378, 127
  %v4384 = vpop.permute.xlu0 %4383
  %4387 = vst.msk [vmem:[#allocation2 + $0x20] sm:$0xff] %vm500, %v4382
  %4388 = vst.msk [vmem:[#allocation2 + $0x30] sm:$0xff] %vm500, %v4384
  %v4389 = vld [vmem:[#allocation8] sm:$0xff]
  %v4390 = vld [vmem:[#allocation8 + $0x8] sm:$0xff]
  %4393 = vrot.lane.b32.xlu0 %v4389, 125
  %v4394 = vpop.permute.xlu0 %4393
  %4395 = vrot.lane.b32.xlu0 %v4390, 125
  %v4396 = vpop.permute.xlu0 %4395
  %4399 = vst.msk [vmem:[#allocation2 + $0x20] sm:$0xff] %vm4374, %v4394
  %4400 = vst.msk [vmem:[#allocation2 + $0x30] sm:$0xff] %vm4374, %v4396
  %v4401 = vld [vmem:[#allocation8] sm:$0xff]
  %v4402 = vld [vmem:[#allocation8 + $0x8] sm:$0xff]
  %4405 = vrot.lane.b32.xlu0 %v4401, 126
  %v4406 = vpop.permute.xlu0 %4405
  %4407 = vrot.lane.b32.xlu0 %v4402, 126
  %v4408 = vpop.permute.xlu0 %4407
  %4411 = vst.msk [vmem:[#allocation2 + $0x40] sm:$0xff] %vm500, %v4406
  %4412 = vst.msk [vmem:[#allocation2 + $0x50] sm:$0xff] %vm500, %v4408
  %v4413 = vld [vmem:[#allocation8] sm:$0xff]
  %v4414 = vld [vmem:[#allocation8 + $0x8] sm:$0xff]
  %4417 = vrot.lane.b32.xlu0 %v4413, 124
  %v4418 = vpop.permute.xlu0 %4417
  %4419 = vrot.lane.b32.xlu0 %v4414, 124
  %v4420 = vpop.permute.xlu0 %4419
  %4423 = vst.msk [vmem:[#allocation2 + $0x40] sm:$0xff] %vm4374, %v4418
  %4424 = vst.msk [vmem:[#allocation2 + $0x50] sm:$0xff] %vm4374, %v4420
  %v4425 = vld [vmem:[%s1 + $0x28] sm:$0xf]
  %v4426 = vld [vmem:[#allocation2] sm:$0xff]
  %v4427 = vld [vmem:[#allocation2 + $0x10] sm:$0xff]
  %v4428 = vld [vmem:[#allocation2 + $0x20] sm:$0xff]
  %v4429 = vld [vmem:[#allocation2 + $0x30] sm:$0xff]
  %v4430 = vld [vmem:[#allocation2 + $0x40] sm:$0xff]
  %v4431 = vld [vmem:[#allocation2 + $0x50] sm:$0xff]
  %v4432 = vpack.c.bf16 %v4427, %v4426
  %v4433 = vpack.c.bf16 %v4429, %v4428
  %v4434 = vpack.c.bf16 %v4431, %v4430
  %v4435 = vld [vmem:[%s2] sm:$0xff]
  %4437 = vset.pattern.permute.xlu0 15
  %4438 = vperm.xlu0 %4437, %v4435
  %v4439 = vpop.permute.xlu0 %4438
  %vm4441 = vcmask 392192
  %v4443 = vsel %vm4441, %v4425, 0
  %4445 = vmatprep.subr.bf16.mxu0 0
  %4446 = vmatpush1.bf16.msra.mxu0 %v4432
  %4447 = vmatprep.subr.bf16.mxu0 0
  %4448 = vmatpush1.bf16.msra.mxu0 %v4433
  %4449 = vmatprep.subr.bf16.mxu0 0
  %4450 = vmatpush1.bf16.msra.mxu0 %v4434
  %4451 = vmatprep.subr.bf16.mxu0 0
  %4452 = vmatpush1.bf16.msra.mxu0 0
  %4453 = vmatprep.subr.bf16.mxu0 0
  %4454 = vmatpush1.bf16.msra.mxu0 0
  %4455 = vmatprep.subr.bf16.mxu0 0
  %4456 = vmatpush1.bf16.msra.mxu0 0
  %4457 = vmatprep.subr.bf16.mxu0 0
  %4458 = vmatpush1.bf16.msra.mxu0 0
  %4459 = vmatprep.subr.bf16.mxu0 0
  %4460 = vmatpush1.bf16.msra.mxu0 0
  %4461 = vmatprep.subr.bf16.mxu0 0
  %4462 = vmatpush1.bf16.msra.mxu0 0
  %4463 = vmatprep.subr.bf16.mxu0 0
  %4464 = vmatpush1.bf16.msra.mxu0 0
  %4465 = vmatprep.subr.bf16.mxu0 0
  %4466 = vmatpush1.bf16.msra.mxu0 0
  %4467 = vmatprep.subr.bf16.mxu0 0
  %4468 = vmatpush1.bf16.msra.mxu0 0
  %4469 = vmatprep.subr.bf16.mxu0 0
  %4470 = vmatpush1.bf16.msra.mxu0 0
  %4471 = vmatprep.subr.bf16.mxu0 0
  %4472 = vmatpush1.bf16.msra.mxu0 0
  %4473 = vmatprep.subr.bf16.mxu0 0
  %4474 = vmatpush1.bf16.msra.mxu0 0
  %4475 = vmatprep.subr.bf16.mxu0 0
  %4476 = vmatpush1.bf16.msra.mxu0 0
  %4477 = vmatprep.mubr.bf16.mxu0 0
  %4478 = vmatmul.mubr.bf16.gmra.mrb[0].mxu0 %v4443
  %v4479 = vpop.f32.mrb[0].mxu0
  %v4480 = vadd.f32 %v4439, %v4479
  %v4481 = vpop.f32.mrb[0].mxu0
  %v4482 = vpop.f32.mrb[0].mxu0
  %v4483 = vpop.f32.mrb[0].mxu0
  %4484 = vdwg.mxu0
  %v4485 = vsel %vm4288, %v4480, 0.0
  %4486 = vadd.xlane.f32.xlu0 %v4485
  %v4487 = vpop.xlane.xlu0 %4486
  %v4488 = vmul.f32 %v4487, %v4295
  %v4489 = vsub.f32 %v4480, %v4488
  %v4490 = vmul.f32 %v4489, %v4489
  %v4491 = vsel %vm4288, %v4490, 0.0
  %4492 = vadd.xlane.f32.xlu0 %v4491
  %v4493 = vpop.xlane.xlu0 %4492
  %v4494 = vmul.f32 %v4493, %v4295
  %v4495 = vadd.f32 %v4494, 1e-05
  %v4496 = vrsqrt.pop %v4495
  %v4497 = vmul.f32 %v4435, %v4496
  %4499 = vset.pattern.permute.xlu0 16
  %4500 = vperm.xlu0 %4499, %v4497
  %v4501 = vpop.permute.xlu0 %4500
  %v4503 = vmul.f32 %v4489, %v4501
  %4504 = vset.pattern.permute.xlu0 17
  %4505 = vperm.xlu0 %4504, %v4435
  %v4506 = vpop.permute.xlu0 %4505
  %v4508 = vadd.f32 %v4503, %v4506
  %v4509 = vmax.f32 %v4508, 0.0
  %v4510 = vld [vmem:[%s3] sm:$0xff]
  %v4511 = vld [vmem:[%s3 + $0x8] sm:$0xff]
  %v4512 = vld [vmem:[%s3 + $0x10] sm:$0x3]
  %4516 = vrot.lane.b32.xlu0 %v4510, 120
  %v4517 = vpop.permute.xlu0 %4516
  %4518 = vrot.lane.b32.xlu0 %v4511, 120
  %v4519 = vpop.permute.xlu0 %4518
  %4520 = vrot.lane.b32.xlu0 %v4512, 120
  %v4521 = vpop.permute.xlu0 %4520
  %v4525 = vsel %vm4288, %v4509, 0
  %v4527 = vsel %vm320, %v4521, 0
  %4529 = vmatprep.subr.mxu0 0.0
  %4530 = vmatpush1.msra.mxu0 %v4517
  %4531 = vmatprep.subr.mxu0 0.0
  %4532 = vmatpush1.msra.mxu0 %v4519
  %4533 = vmatprep.subr.mxu0 0.0
  %4534 = vmatpush1.msra.mxu0 %v4527
  %4535 = vmatprep.subr.mxu0 0.0
  %4536 = vmatpush1.msra.mxu0 0.0
  %4537 = vmatprep.subr.mxu0 0.0
  %4538 = vmatpush1.msra.mxu0 0.0
  %4539 = vmatprep.subr.mxu0 0.0
  %4540 = vmatpush1.msra.mxu0 0.0
  %4541 = vmatprep.subr.mxu0 0.0
  %4542 = vmatpush1.msra.mxu0 0.0
  %4543 = vmatprep.subr.mxu0 0.0
  %4544 = vmatpush1.msra.mxu0 0.0
  %4545 = vmatprep.subr.mxu0 0.0
  %4546 = vmatpush1.msra.mxu0 0.0
  %4547 = vmatprep.subr.mxu0 0.0
  %4548 = vmatpush1.msra.mxu0 0.0
  %4549 = vmatprep.subr.mxu0 0.0
  %4550 = vmatpush1.msra.mxu0 0.0
  %4551 = vmatprep.subr.mxu0 0.0
  %4552 = vmatpush1.msra.mxu0 0.0
  %4553 = vmatprep.subr.mxu0 0.0
  %4554 = vmatpush1.msra.mxu0 0.0
  %4555 = vmatprep.subr.mxu0 0.0
  %4556 = vmatpush1.msra.mxu0 0.0
  %4557 = vmatprep.subr.mxu0 0.0
  %4558 = vmatpush1.msra.mxu0 0.0
  %4559 = vmatprep.subr.mxu0 0.0
  %4560 = vmatpush1.msra.mxu0 0.0
  %4561 = vmatprep.subr.mxu0 0.0
  %4562 = vmatpush1.msra.mxu0 0.0
  %4563 = vmatprep.subr.mxu0 0.0
  %4564 = vmatpush1.msra.mxu0 0.0
  %4565 = vmatprep.subr.mxu0 0.0
  %4566 = vmatpush1.msra.mxu0 0.0
  %4567 = vmatprep.subr.mxu0 0.0
  %4568 = vmatpush1.msra.mxu0 0.0
  %4569 = vmatprep.subr.mxu0 0.0
  %4570 = vmatpush1.msra.mxu0 0.0
  %4571 = vmatprep.subr.mxu0 0.0
  %4572 = vmatpush1.msra.mxu0 0.0
  %4573 = vmatprep.subr.mxu0 0.0
  %4574 = vmatpush1.msra.mxu0 0.0
  %4575 = vmatprep.subr.mxu0 0.0
  %4576 = vmatpush1.msra.mxu0 0.0
  %4577 = vmatprep.subr.mxu0 0.0
  %4578 = vmatpush1.msra.mxu0 0.0
  %4579 = vmatprep.subr.mxu0 0.0
  %4580 = vmatpush1.msra.mxu0 0.0
  %4581 = vmatprep.subr.mxu0 0.0
  %4582 = vmatpush1.msra.mxu0 0.0
  %4583 = vmatprep.subr.mxu0 0.0
  %4584 = vmatpush1.msra.mxu0 0.0
  %4585 = vmatprep.subr.mxu0 0.0
  %4586 = vmatpush1.msra.mxu0 0.0
  %4587 = vmatprep.subr.mxu0 0.0
  %4588 = vmatpush1.msra.mxu0 0.0
  %4589 = vmatprep.subr.mxu0 0.0
  %4590 = vmatpush1.msra.mxu0 0.0
  %4591 = vmatprep.subr.mxu0 0.0
  %4592 = vmatpush1.msra.mxu0 0.0
  %4593 = vmatprep.mubr.f32.mxu0 0.0
  %4594 = vmatmul.mubr.f32.gmra.mrb[0].mxu0 %v4525
  %v4595 = vpop.f32.mrb[0].mxu0
  %v4596 = vadd.f32 0.0, %v4595
  %v4597 = vpop.f32.mrb[0].mxu0
  %4598 = vdwg.mxu0
  %v4599 = vsel %vm650, %v4510, 0
  %4601 = vmatprep.subr.mxu0 0.0
  %4602 = vmatpush1.msra.mxu0 %v4596
  %4603 = vmatprep.subr.mxu0 0.0
  %4604 = vmatpush1.msra.mxu0 0.0
  %4605 = vmatprep.subr.mxu0 0.0
  %4606 = vmatpush1.msra.mxu0 0.0
  %4607 = vmatprep.subr.mxu0 0.0
  %4608 = vmatpush1.msra.mxu0 0.0
  %4609 = vmatprep.subr.mxu0 0.0
  %4610 = vmatpush1.msra.mxu0 0.0
  %4611 = vmatprep.subr.mxu0 0.0
  %4612 = vmatpush1.msra.mxu0 0.0
  %4613 = vmatprep.subr.mxu0 0.0
  %4614 = vmatpush1.msra.mxu0 0.0
  %4615 = vmatprep.subr.mxu0 0.0
  %4616 = vmatpush1.msra.mxu0 0.0
  %4617 = vmatprep.subr.mxu0 0.0
  %4618 = vmatpush1.msra.mxu0 0.0
  %4619 = vmatprep.subr.mxu0 0.0
  %4620 = vmatpush1.msra.mxu0 0.0
  %4621 = vmatprep.subr.mxu0 0.0
  %4622 = vmatpush1.msra.mxu0 0.0
  %4623 = vmatprep.subr.mxu0 0.0
  %4624 = vmatpush1.msra.mxu0 0.0
  %4625 = vmatprep.subr.mxu0 0.0
  %4626 = vmatpush1.msra.mxu0 0.0
  %4627 = vmatprep.subr.mxu0 0.0
  %4628 = vmatpush1.msra.mxu0 0.0
  %4629 = vmatprep.subr.mxu0 0.0
  %4630 = vmatpush1.msra.mxu0 0.0
  %4631 = vmatprep.subr.mxu0 0.0
  %4632 = vmatpush1.msra.mxu0 0.0
  %4633 = vmatprep.subr.mxu0 0.0
  %4634 = vmatpush1.msra.mxu0 0.0
  %4635 = vmatprep.subr.mxu0 0.0
  %4636 = vmatpush1.msra.mxu0 0.0
  %4637 = vmatprep.subr.mxu0 0.0
  %4638 = vmatpush1.msra.mxu0 0.0
  %4639 = vmatprep.subr.mxu0 0.0
  %4640 = vmatpush1.msra.mxu0 0.0
  %4641 = vmatprep.subr.mxu0 0.0
  %4642 = vmatpush1.msra.mxu0 0.0
  %4643 = vmatprep.subr.mxu0 0.0
  %4644 = vmatpush1.msra.mxu0 0.0
  %4645 = vmatprep.subr.mxu0 0.0
  %4646 = vmatpush1.msra.mxu0 0.0
  %4647 = vmatprep.subr.mxu0 0.0
  %4648 = vmatpush1.msra.mxu0 0.0
  %4649 = vmatprep.subr.mxu0 0.0
  %4650 = vmatpush1.msra.mxu0 0.0
  %4651 = vmatprep.subr.mxu0 0.0
  %4652 = vmatpush1.msra.mxu0 0.0
  %4653 = vmatprep.subr.mxu0 0.0
  %4654 = vmatpush1.msra.mxu0 0.0
  %4655 = vmatprep.subr.mxu0 0.0
  %4656 = vmatpush1.msra.mxu0 0.0
  %4657 = vmatprep.subr.mxu0 0.0
  %4658 = vmatpush1.msra.mxu0 0.0
  %4659 = vmatprep.subr.mxu0 0.0
  %4660 = vmatpush1.msra.mxu0 0.0
  %4661 = vmatprep.subr.mxu0 0.0
  %4662 = vmatpush1.msra.mxu0 0.0
  %4663 = vmatprep.subr.mxu0 0.0
  %4664 = vmatpush1.msra.mxu0 0.0
  %4665 = vmatprep.mubr.f32.mxu0 0.0
  %4666 = vmatmul.mubr.f32.gmra.mrb[0].mxu0 %v4599
  %v4667 = vpop.f32.mrb[0].mxu0
  %v4668 = vadd.f32 0.0, %v4667
  %v4669 = vpop.f32.mrb[0].mxu0
  %4670 = vdwg.mxu0
  %vm4671 = vcmask 130048
  %4672 = vst.msk [vmem:[%s4] sm:$0xff] %vm4671, %v4668
  // Predicated region
  $region18: #{encoder_forward.1} parent=0 // pred_check
    _
  $region19: #{encoder_forward.1} parent=0 // pred_check_branch
    %4674 = sbr.rel (0) target = $region21
  $region20: #{encoder_forward.1} parent=0 // pred_region
    _
  $region21: #{encoder_forward.1} parent=0 // pred_fallthru
    _
  // Predicated region
  $region22: #{encoder_forward.1} parent=0 // pred_check
    _
  $region23: #{encoder_forward.1} parent=0 // pred_check_branch
    %4676 = sbr.rel (0) target = $region25
  $region24: #{encoder_forward.1} parent=0 // pred_region
    _
  $region25: #{encoder_forward.1} parent=0 // pred_fallthru
    _

</llo_original>
